<compile_context>
chip_gen: v7x
topology: tpu7x:2x2x1
jax: 0.10.0
libtpu: 0.0.40
codegen_flags: <defaults>
</compile_context>

<pallas_src>
import functools
import math

import jax
import jax.numpy as jnp
from jax import lax
from jax.experimental import pallas as pl
from jax.experimental.pallas import tpu as pltpu

LANES = 128    # pad all channel dims up to a multiple of the 128-lane vreg width
MARGIN = 16    # left halo margin in the spatial pad scratch (bf16 tile height)


def _round_up(v, m):
    return ((v + m - 1) // m) * m


def _pad_channels(x, cp):
    c = x.shape[-1]
    if c == cp:
        return x
    cfg = [(0, 0)] * (x.ndim - 1) + [(0, cp - c)]
    return jnp.pad(x, cfg)


# ------------------------------ weight packing -------------------------------

def _pack_1x1(w, cin_p, cout_p):
    # (Cout, Cin, 1, 1[, 1]) -> (cin_p, cout_p) bf16, zero lane padding.
    cout, cin = w.shape[0], w.shape[1]
    w2 = jnp.transpose(w.reshape(cout, cin))                      # (cin, cout)
    wp = jnp.zeros((cin_p, cout_p), jnp.float32).at[:cin, :cout].set(w2)
    return wp.astype(jnp.bfloat16)


def _pack_taps2d(w, cin_p, cout_p):
    # Conv2d (Cout, Cin, kh, kw) -> (kh*kw*cin_p, cout_p), tap-major.
    cout, cin, kh, kw = w.shape
    taps = jnp.transpose(w, (2, 3, 1, 0)).reshape(kh * kw, cin, cout)
    wp = jnp.zeros((kh * kw, cin_p, cout_p), jnp.float32).at[:, :cin, :cout].set(taps)
    return wp.reshape(kh * kw * cin_p, cout_p).astype(jnp.bfloat16)


def _pack_taps3d(w, cin_p, cout_p):
    # Conv3d (Cout, Cin, kd, kh, kw) -> (kd*kh*kw*cin_p, cout_p), tap-major.
    cout, cin, kd, kh, kw = w.shape
    nt = kd * kh * kw
    taps = jnp.transpose(w, (2, 3, 4, 1, 0)).reshape(nt, cin, cout)
    wp = jnp.zeros((nt, cin_p, cout_p), jnp.float32).at[:, :cin, :cout].set(taps)
    return wp.reshape(nt * cin_p, cout_p).astype(jnp.bfloat16)


# ------------------------------ fused kernels --------------------------------

def _bneck2d_kernel(x_ref, w1_ref, w2_ref, w4_ref, *rest, has_ds):
    """Whole 2D bottleneck for one image: conv1(1x1)+ReLU -> conv2(3x3)+ReLU ->
    conv4(1x1) + residual + ReLU.  bf16 MXU matmuls, f32 accumulation."""
    if has_ds:
        wd_ref, o_ref, pad_ref, patch_ref = rest
    else:
        o_ref, pad_ref, patch_ref = rest
        wd_ref = None
    _, H, W, CIN = x_ref.shape
    CP = o_ref.shape[-1]
    P = H * W

    xf = x_ref[0].reshape(P, CIN)                                  # bf16 (P, CIN)

    # conv1: 1x1 channel matmul + ReLU.
    a1 = jnp.dot(xf, w1_ref[...], preferred_element_type=jnp.float32)
    a1 = jnp.maximum(a1, 0.0).astype(jnp.bfloat16)

    # conv2: 3x3, pad 1 — build (P, 9*CP) patches in VMEM from a zero-haloed
    # copy of a1 (no HBM im2col), then ONE wide-K contraction.
    pad_ref[...] = jnp.zeros(pad_ref.shape, jnp.bfloat16)
    pad_ref[1:H + 1, MARGIN:MARGIN + W, :] = a1.reshape(H, W, CP)
    for t in range(9):
        i, j = divmod(t, 3)
        tap = pad_ref[i:i + H, MARGIN - 1 + j:MARGIN - 1 + j + W, :]
        patch_ref[:, t * CP:(t + 1) * CP] = tap.reshape(P, CP)
    a2 = jnp.dot(patch_ref[...], w2_ref[...], preferred_element_type=jnp.float32)
    a2 = jnp.maximum(a2, 0.0).astype(jnp.bfloat16)

    # conv4 + residual + ReLU (f32 epilogue).
    acc = jnp.dot(a2, w4_ref[...], preferred_element_type=jnp.float32)
    if has_ds:
        acc = acc + jnp.dot(xf, wd_ref[...], preferred_element_type=jnp.float32)
    else:
        acc = acc + xf.astype(jnp.float32)
    out = jnp.maximum(acc, 0.0)
    o_ref[0] = out.reshape(H, W, CP).astype(o_ref.dtype)


def _bneck3d_kernel(x_ref, w1_ref, ws_ref, wt_ref, w4_ref, *rest, has_ds):
    """Whole 3D bottleneck for one volume: conv1(1x1x1)+ReLU -> conv_S(1,3,3)
    +ReLU -> conv_T(3,1,1)+ReLU -> conv4(1x1x1) + residual + ReLU."""
    if has_ds:
        wd_ref, o_ref, pad_s, patch_s, pad_t, patch_t = rest
    else:
        o_ref, pad_s, patch_s, pad_t, patch_t = rest
        wd_ref = None
    _, D, H, W, CIN = x_ref.shape
    CP = o_ref.shape[-1]
    P = D * H * W

    xf = x_ref[0].reshape(P, CIN)                                  # bf16 (P, CIN)

    # conv1 (1x1x1; stride applied in the wrapper) + ReLU.
    a1 = jnp.dot(xf, w1_ref[...], preferred_element_type=jnp.float32)
    a1 = jnp.maximum(a1, 0.0).astype(jnp.bfloat16)

    # conv_S (1,3,3), pad (0,1,1): in-VMEM spatial halo + one K=9*CP contraction.
    pad_s[...] = jnp.zeros(pad_s.shape, jnp.bfloat16)
    pad_s[:, 1:H + 1, MARGIN:MARGIN + W, :] = a1.reshape(D, H, W, CP)
    for t in range(9):
        i, j = divmod(t, 3)
        tap = pad_s[:, i:i + H, MARGIN - 1 + j:MARGIN - 1 + j + W, :]
        patch_s[:, t * CP:(t + 1) * CP] = tap.reshape(P, CP)
    a2 = jnp.dot(patch_s[...], ws_ref[...], preferred_element_type=jnp.float32)
    a2 = jnp.maximum(a2, 0.0).astype(jnp.bfloat16)

    # conv_T (3,1,1), pad (1,0,0): depth halo + one K=3*CP contraction.
    pad_t[...] = jnp.zeros(pad_t.shape, jnp.bfloat16)
    pad_t[1:D + 1, :, :, :] = a2.reshape(D, H, W, CP)
    for t in range(3):
        patch_t[:, t * CP:(t + 1) * CP] = pad_t[t:t + D, :, :, :].reshape(P, CP)
    a3 = jnp.dot(patch_t[...], wt_ref[...], preferred_element_type=jnp.float32)
    a3 = jnp.maximum(a3, 0.0).astype(jnp.bfloat16)

    # conv4 + residual + ReLU (f32 epilogue).
    acc = jnp.dot(a3, w4_ref[...], preferred_element_type=jnp.float32)
    if has_ds:
        acc = acc + jnp.dot(xf, wd_ref[...], preferred_element_type=jnp.float32)
    else:
        acc = acc + xf.astype(jnp.float32)
    out = jnp.maximum(acc, 0.0)
    o_ref[0] = out.reshape(D, H, W, CP).astype(o_ref.dtype)


# ------------------------------- parameters ----------------------------------

def init_bottleneck_params(key, inplanes, planes, is_3d, with_downsample, stride=1):
    ks = jax.random.split(key, 8)

    def he(k, shape):
        fan_in = math.prod(shape[1:])
        return jax.random.normal(k, shape, jnp.float32) * math.sqrt(2.0 / fan_in)

    p = {'is_3d': is_3d}
    if is_3d:
        p['stride_p'] = (1, 2, 2) if with_downsample else (stride, stride, stride)
        p['conv1_w'] = he(ks[0], (planes, inplanes, 1, 1, 1))
        p['conv2_w'] = he(ks[1], (planes, planes, 1, 3, 3))   # conv_S
        p['conv3_w'] = he(ks[2], (planes, planes, 3, 1, 1))   # conv_T
        p['conv4_w'] = he(ks[3], (planes, planes, 1, 1, 1))
        # TODO(synk): `downsample` is an externally built nn.Module in the
        # reference; modeled here as a bias-free 1x1x1 conv with stride (1,2,2).
        p['ds_w'] = he(ks[4], (planes, inplanes, 1, 1, 1)) if with_downsample else None
    else:
        p['conv1_w'] = he(ks[0], (planes, inplanes, 1, 1))
        p['conv2_w'] = he(ks[1], (planes, planes, 3, 3))
        p['conv4_w'] = he(ks[2], (planes, planes, 1, 1))
        # TODO(synk): 2D downsample modeled as a bias-free stride-1 1x1 conv.
        p['ds_w'] = he(ks[4], (planes, inplanes, 1, 1)) if with_downsample else None
    return p


# --------------------------------- wrappers -----------------------------------

def _forward_2d(p, x):
    N, C, H, W = x.shape
    planes = p['conv1_w'].shape[0]
    cin_p = _round_up(C, LANES)
    cp = _round_up(planes, LANES)
    has_ds = p['ds_w'] is not None
    if not has_ds and C != planes:
        raise ValueError("identity residual requires inplanes == planes")

    # NCHW -> NHWC, bf16, lane-pad channels to 128.
    y = jnp.transpose(x, (0, 2, 3, 1)).astype(jnp.bfloat16)
    y = _pad_channels(y, cin_p)

    w1 = _pack_1x1(p['conv1_w'], cin_p, cp)
    w2 = _pack_taps2d(p['conv2_w'], cp, cp)
    w4 = _pack_1x1(p['conv4_w'], cp, cp)
    args = [y, w1, w2, w4]
    in_specs = [
        pl.BlockSpec((1, H, W, cin_p), lambda n: (n, 0, 0, 0)),
        pl.BlockSpec(w1.shape, lambda n: (0, 0)),
        pl.BlockSpec(w2.shape, lambda n: (0, 0)),
        pl.BlockSpec(w4.shape, lambda n: (0, 0)),
    ]
    if has_ds:
        wd = _pack_1x1(p['ds_w'], cin_p, cp)
        args.append(wd)
        in_specs.append(pl.BlockSpec(wd.shape, lambda n: (0, 0)))

    out = pl.pallas_call(
        functools.partial(_bneck2d_kernel, has_ds=has_ds),
        out_shape=jax.ShapeDtypeStruct((N, H, W, cp), jnp.float32),
        grid=(N,),
        in_specs=in_specs,
        out_specs=pl.BlockSpec((1, H, W, cp), lambda n: (n, 0, 0, 0)),
        scratch_shapes=[
            pltpu.VMEM((H + 2, W + MARGIN + 1, cp), jnp.bfloat16),  # spatial halo
            pltpu.VMEM((H * W, 9 * cp), jnp.bfloat16),              # 3x3 patches
        ],
        compiler_params=pltpu.CompilerParams(dimension_semantics=("parallel",)),
    )(*args)

    out = out[..., :planes]                       # drop lane padding
    return jnp.transpose(out, (0, 3, 1, 2))       # back to NCHW


def _forward_3d(p, x):
    N, C, D, H, W = x.shape
    planes = p['conv1_w'].shape[0]
    cin_p = _round_up(C, LANES)
    cp = _round_up(planes, LANES)
    has_ds = p['ds_w'] is not None
    if not has_ds and C != planes:
        raise ValueError("identity residual requires inplanes == planes")

    sd, sh, sw = p['stride_p']
    y = jnp.transpose(x, (0, 2, 3, 4, 1)).astype(jnp.bfloat16)     # NDHWC
    y = _pad_channels(y, cin_p)
    ys = y[:, ::sd, ::sh, ::sw, :]   # conv1 / downsample are 1x1x1 -> pre-stride
    _, Do, Ho, Wo, _ = ys.shape
    P = Do * Ho * Wo

    w1 = _pack_1x1(p['conv1_w'], cin_p, cp)
    ws = _pack_taps3d(p['conv2_w'], cp, cp)       # (9*cp, cp)
    wt = _pack_taps3d(p['conv3_w'], cp, cp)       # (3*cp, cp)
    w4 = _pack_1x1(p['conv4_w'], cp, cp)
    args = [ys, w1, ws, wt, w4]
    in_specs = [
        pl.BlockSpec((1, Do, Ho, Wo, cin_p), lambda n: (n, 0, 0, 0, 0)),
        pl.BlockSpec(w1.shape, lambda n: (0, 0)),
        pl.BlockSpec(ws.shape, lambda n: (0, 0)),
        pl.BlockSpec(wt.shape, lambda n: (0, 0)),
        pl.BlockSpec(w4.shape, lambda n: (0, 0)),
    ]
    if has_ds:
        wd = _pack_1x1(p['ds_w'], cin_p, cp)
        args.append(wd)
        in_specs.append(pl.BlockSpec(wd.shape, lambda n: (0, 0)))

    out = pl.pallas_call(
        functools.partial(_bneck3d_kernel, has_ds=has_ds),
        out_shape=jax.ShapeDtypeStruct((N, Do, Ho, Wo, cp), jnp.float32),
        grid=(N,),
        in_specs=in_specs,
        out_specs=pl.BlockSpec((1, Do, Ho, Wo, cp), lambda n: (n, 0, 0, 0, 0)),
        scratch_shapes=[
            pltpu.VMEM((Do, Ho + 2, Wo + MARGIN + 1, cp), jnp.bfloat16),  # spatial halo
            pltpu.VMEM((P, 9 * cp), jnp.bfloat16),                        # conv_S patches
            pltpu.VMEM((Do + 2, Ho, Wo, cp), jnp.bfloat16),               # temporal halo
            pltpu.VMEM((P, 3 * cp), jnp.bfloat16),                        # conv_T patches
        ],
        compiler_params=pltpu.CompilerParams(dimension_semantics=("parallel",)),
    )(*args)

    out = out[..., :planes]                       # drop lane padding
    return jnp.transpose(out, (0, 4, 1, 2, 3))    # back to NCDHW


def bottleneck_forward(p, x):
    return _forward_3d(p, x) if p['is_3d'] else _forward_2d(p, x)


# --------------------------- pure-JAX reference -------------------------------

def _ref_2d(p, x):
    dn = ('NCHW', 'OIHW', 'NCHW')
    hp = lax.Precision.HIGHEST
    out = lax.conv_general_dilated(x, p['conv1_w'], (1, 1), 'VALID',
                                   dimension_numbers=dn, precision=hp)
    out = jax.nn.relu(out)
    out = lax.conv_general_dilated(out, p['conv2_w'], (1, 1), ((1, 1), (1, 1)),
                                   dimension_numbers=dn, precision=hp)
    out = jax.nn.relu(out)
    out = lax.conv_general_dilated(out, p['conv4_w'], (1, 1), 'VALID',
                                   dimension_numbers=dn, precision=hp)
    res = x if p['ds_w'] is None else lax.conv_general_dilated(
        x, p['ds_w'], (1, 1), 'VALID', dimension_numbers=dn, precision=hp)
    return jax.nn.relu(out + res)


def _ref_3d(p, x):
    dn = ('NCDHW', 'OIDHW', 'NCDHW')
    hp = lax.Precision.HIGHEST
    s = p['stride_p']
    out = lax.conv_general_dilated(x, p['conv1_w'], s, 'VALID',
                                   dimension_numbers=dn, precision=hp)
    out = jax.nn.relu(out)
    out = lax.conv_general_dilated(out, p['conv2_w'], (1, 1, 1),
                                   ((0, 0), (1, 1), (1, 1)),
                                   dimension_numbers=dn, precision=hp)
    out = jax.nn.relu(out)
    out = lax.conv_general_dilated(out, p['conv3_w'], (1, 1, 1),
                                   ((1, 1), (0, 0), (0, 0)),
                                   dimension_numbers=dn, precision=hp)
    out = jax.nn.relu(out)
    out = lax.conv_general_dilated(out, p['conv4_w'], (1, 1, 1), 'VALID',
                                   dimension_numbers=dn, precision=hp)
    res = x if p['ds_w'] is None else lax.conv_general_dilated(
        x, p['ds_w'], s, 'VALID', dimension_numbers=dn, precision=hp)
    return jax.nn.relu(out + res)


# ----------------------------------- main -------------------------------------

if __name__ == "__main__":
    key = jax.random.PRNGKey(0)
    k1, k2, k3, k4 = jax.random.split(key, 4)

    # 2D Bottleneck: inplanes = planes = 32, identity residual.
    N, C, H, W = 2, 32, 16, 16
    x2d = jax.random.normal(k3, (N, C, H, W), jnp.float32)
    p2d = init_bottleneck_params(k1, inplanes=32, planes=32,
                                 is_3d=False, with_downsample=False)
    y2d = jax.block_until_ready(bottleneck_forward(p2d, x2d))
    assert y2d.shape == (N, 32, H, W), y2d.shape
    r2d = _ref_2d(p2d, x2d)
    err2d = float(jnp.max(jnp.abs(y2d - r2d)) / (jnp.max(jnp.abs(r2d)) + 1e-6))
    assert err2d < 5e-2, f"2D mismatch: {err2d}"

    # 3D Bottleneck: inplanes=32 -> planes=64, downsample, spatial stride (1,2,2).
    D = 8
    x3d = jax.random.normal(k4, (1, 32, D, H, W), jnp.float32)
    p3d = init_bottleneck_params(k2, inplanes=32, planes=64,
                                 is_3d=True, with_downsample=True)
    y3d = jax.block_until_ready(bottleneck_forward(p3d, x3d))
    assert y3d.shape == (1, 64, D, H // 2, W // 2), y3d.shape
    r3d = _ref_3d(p3d, x3d)
    err3d = float(jnp.max(jnp.abs(y3d - r3d)) / (jnp.max(jnp.abs(r3d)) + 1e-6))
    assert err3d < 5e-2, f"3D mismatch: {err3d}"

    assert bool(jnp.all(jnp.isfinite(y2d))) and bool(jnp.all(jnp.isfinite(y3d)))
    print("KERNEL_OK")
</pallas_src>

<mosaic_0001>
module attributes {stable_mosaic.version = 11 : i64} {
  func.func @_bneck2d_kernel(%arg0: i32, %arg1: memref<1x16x16x128xbf16, #tpu.memory_space<vmem>>, %arg2: memref<128x128xbf16, #tpu.memory_space<vmem>>, %arg3: memref<1152x128xbf16, #tpu.memory_space<vmem>>, %arg4: memref<128x128xbf16, #tpu.memory_space<vmem>>, %arg5: memref<1x16x16x128xf32, #tpu.memory_space<vmem>>, %arg6: memref<18x33x128xbf16, #tpu.memory_space<vmem>>, %arg7: memref<256x1152xbf16, #tpu.memory_space<vmem>>) attributes {dimension_semantics = [#tpu.dimension_semantics<parallel>], iteration_bounds = array<i64: 2>, scalar_prefetch = 0 : i64, scratch_operands = 2 : i64, tpu.core_type = #tpu.core_type<tc>, window_params = [{transform_indices = @transform_0, window_bounds = array<i64: 1, 16, 16, 128>}, {pipeline_mode = #tpu.pipeline_mode<synchronous>, transform_indices = @transform_1, window_bounds = array<i64: 128, 128>}, {pipeline_mode = #tpu.pipeline_mode<synchronous>, transform_indices = @transform_2, window_bounds = array<i64: 1152, 128>}, {pipeline_mode = #tpu.pipeline_mode<synchronous>, transform_indices = @transform_3, window_bounds = array<i64: 128, 128>}, {transform_indices = @transform_4, window_bounds = array<i64: 1, 16, 16, 128>}]} {
    %c0 = arith.constant 0 : index
    %c0_0 = arith.constant 0 : index
    %c0_1 = arith.constant 0 : index
    %c0_2 = arith.constant 0 : index
    %0 = vector.load %arg1[%c0, %c0_0, %c0_1, %c0_2] : memref<1x16x16x128xbf16, #tpu.memory_space<vmem>>, vector<1x16x16x128xbf16>
    %1 = vector.shape_cast %0 : vector<1x16x16x128xbf16> to vector<16x16x128xbf16>
    %2 = vector.shape_cast %1 : vector<16x16x128xbf16> to vector<256x128xbf16>
    %c0_3 = arith.constant 0 : index
    %c0_4 = arith.constant 0 : index
    %3 = vector.load %arg2[%c0_3, %c0_4] : memref<128x128xbf16, #tpu.memory_space<vmem>>, vector<128x128xbf16>
    %cst = arith.constant dense<0.000000e+00> : vector<256x128xf32>
    %4 = tpu.matmul %2, %3, %cst {dimension_numbers = #tpu.dot_dimension_numbers<[1], [0], [0], [1], [0, 0, 1, 1], [], []>} : vector<256x128xbf16>, vector<128x128xbf16>, vector<256x128xf32> -> vector<256x128xf32>
    %cst_5 = arith.constant 0.000000e+00 : f32
    %5 = vector.broadcast %cst_5 : f32 to vector<256x128xf32>
    %6 = arith.maximumf %4, %5 : vector<256x128xf32>
    %7 = arith.truncf %6 : vector<256x128xf32> to vector<256x128xbf16>
    %cst_6 = arith.constant 0.000000e+00 : bf16
    %8 = vector.broadcast %cst_6 : bf16 to vector<18x33x128xbf16>
    %c0_7 = arith.constant 0 : index
    %c0_8 = arith.constant 0 : index
    %c0_9 = arith.constant 0 : index
    %9 = vector.load %arg6[%c0_7, %c0_8, %c0_9] : memref<18x33x128xbf16, #tpu.memory_space<vmem>>, vector<18x33x128xbf16>
    tpu.vector_store %arg6[%c0_7, %c0_8, %c0_9], %8 {strides = array<i32>} : memref<18x33x128xbf16, #tpu.memory_space<vmem>>, vector<18x33x128xbf16>,
    %10 = vector.shape_cast %7 : vector<256x128xbf16> to vector<16x16x128xbf16>
    %c1 = arith.constant 1 : index
    %c16 = arith.constant 16 : index
    %c0_10 = arith.constant 0 : index
    %11 = vector.load %arg6[%c1, %c16, %c0_10] : memref<18x33x128xbf16, #tpu.memory_space<vmem>>, vector<16x16x128xbf16>
    tpu.vector_store %arg6[%c1, %c16, %c0_10], %10 {strides = array<i32>} : memref<18x33x128xbf16, #tpu.memory_space<vmem>>, vector<16x16x128xbf16>,
    %c0_11 = arith.constant 0 : index
    %c15 = arith.constant 15 : index
    %c0_12 = arith.constant 0 : index
    %12 = vector.load %arg6[%c0_11, %c15, %c0_12] : memref<18x33x128xbf16, #tpu.memory_space<vmem>>, vector<16x16x128xbf16>
    %13 = vector.shape_cast %12 : vector<16x16x128xbf16> to vector<256x128xbf16>
    %c0_13 = arith.constant 0 : index
    %c0_14 = arith.constant 0 : index
    %14 = vector.load %arg7[%c0_13, %c0_14] : memref<256x1152xbf16, #tpu.memory_space<vmem>>, vector<256x128xbf16>
    tpu.vector_store %arg7[%c0_13, %c0_14], %13 {strides = array<i32>} : memref<256x1152xbf16, #tpu.memory_space<vmem>>, vector<256x128xbf16>,
    %c0_15 = arith.constant 0 : index
    %c16_16 = arith.constant 16 : index
    %c0_17 = arith.constant 0 : index
    %15 = vector.load %arg6[%c0_15, %c16_16, %c0_17] : memref<18x33x128xbf16, #tpu.memory_space<vmem>>, vector<16x16x128xbf16>
    %16 = vector.shape_cast %15 : vector<16x16x128xbf16> to vector<256x128xbf16>
    %c0_18 = arith.constant 0 : index
    %c128 = arith.constant 128 : index
    %17 = vector.load %arg7[%c0_18, %c128] : memref<256x1152xbf16, #tpu.memory_space<vmem>>, vector<256x128xbf16>
    tpu.vector_store %arg7[%c0_18, %c128], %16 {strides = array<i32>} : memref<256x1152xbf16, #tpu.memory_space<vmem>>, vector<256x128xbf16>,
    %c0_19 = arith.constant 0 : index
    %c17 = arith.constant 17 : index
    %c0_20 = arith.constant 0 : index
    %18 = vector.load %arg6[%c0_19, %c17, %c0_20] : memref<18x33x128xbf16, #tpu.memory_space<vmem>>, vector<16x16x128xbf16>
    %19 = vector.shape_cast %18 : vector<16x16x128xbf16> to vector<256x128xbf16>
    %c0_21 = arith.constant 0 : index
    %c256 = arith.constant 256 : index
    %20 = vector.load %arg7[%c0_21, %c256] : memref<256x1152xbf16, #tpu.memory_space<vmem>>, vector<256x128xbf16>
    tpu.vector_store %arg7[%c0_21, %c256], %19 {strides = array<i32>} : memref<256x1152xbf16, #tpu.memory_space<vmem>>, vector<256x128xbf16>,
    %c1_22 = arith.constant 1 : index
    %c15_23 = arith.constant 15 : index
    %c0_24 = arith.constant 0 : index
    %21 = vector.load %arg6[%c1_22, %c15_23, %c0_24] : memref<18x33x128xbf16, #tpu.memory_space<vmem>>, vector<16x16x128xbf16>
    %22 = vector.shape_cast %21 : vector<16x16x128xbf16> to vector<256x128xbf16>
    %c0_25 = arith.constant 0 : index
    %c384 = arith.constant 384 : index
    %23 = vector.load %arg7[%c0_25, %c384] : memref<256x1152xbf16, #tpu.memory_space<vmem>>, vector<256x128xbf16>
    tpu.vector_store %arg7[%c0_25, %c384], %22 {strides = array<i32>} : memref<256x1152xbf16, #tpu.memory_space<vmem>>, vector<256x128xbf16>,
    %c1_26 = arith.constant 1 : index
    %c16_27 = arith.constant 16 : index
    %c0_28 = arith.constant 0 : index
    %24 = vector.load %arg6[%c1_26, %c16_27, %c0_28] : memref<18x33x128xbf16, #tpu.memory_space<vmem>>, vector<16x16x128xbf16>
    %25 = vector.shape_cast %24 : vector<16x16x128xbf16> to vector<256x128xbf16>
    %c0_29 = arith.constant 0 : index
    %c512 = arith.constant 512 : index
    %26 = vector.load %arg7[%c0_29, %c512] : memref<256x1152xbf16, #tpu.memory_space<vmem>>, vector<256x128xbf16>
    tpu.vector_store %arg7[%c0_29, %c512], %25 {strides = array<i32>} : memref<256x1152xbf16, #tpu.memory_space<vmem>>, vector<256x128xbf16>,
    %c1_30 = arith.constant 1 : index
    %c17_31 = arith.constant 17 : index
    %c0_32 = arith.constant 0 : index
    %27 = vector.load %arg6[%c1_30, %c17_31, %c0_32] : memref<18x33x128xbf16, #tpu.memory_space<vmem>>, vector<16x16x128xbf16>
    %28 = vector.shape_cast %27 : vector<16x16x128xbf16> to vector<256x128xbf16>
    %c0_33 = arith.constant 0 : index
    %c640 = arith.constant 640 : index
    %29 = vector.load %arg7[%c0_33, %c640] : memref<256x1152xbf16, #tpu.memory_space<vmem>>, vector<256x128xbf16>
    tpu.vector_store %arg7[%c0_33, %c640], %28 {strides = array<i32>} : memref<256x1152xbf16, #tpu.memory_space<vmem>>, vector<256x128xbf16>,
    %c2 = arith.constant 2 : index
    %c15_34 = arith.constant 15 : index
    %c0_35 = arith.constant 0 : index
    %30 = vector.load %arg6[%c2, %c15_34, %c0_35] : memref<18x33x128xbf16, #tpu.memory_space<vmem>>, vector<16x16x128xbf16>
    %31 = vector.shape_cast %30 : vector<16x16x128xbf16> to vector<256x128xbf16>
    %c0_36 = arith.constant 0 : index
    %c768 = arith.constant 768 : index
    %32 = vector.load %arg7[%c0_36, %c768] : memref<256x1152xbf16, #tpu.memory_space<vmem>>, vector<256x128xbf16>
    tpu.vector_store %arg7[%c0_36, %c768], %31 {strides = array<i32>} : memref<256x1152xbf16, #tpu.memory_space<vmem>>, vector<256x128xbf16>,
    %c2_37 = arith.constant 2 : index
    %c16_38 = arith.constant 16 : index
    %c0_39 = arith.constant 0 : index
    %33 = vector.load %arg6[%c2_37, %c16_38, %c0_39] : memref<18x33x128xbf16, #tpu.memory_space<vmem>>, vector<16x16x128xbf16>
    %34 = vector.shape_cast %33 : vector<16x16x128xbf16> to vector<256x128xbf16>
    %c0_40 = arith.constant 0 : index
    %c896 = arith.constant 896 : index
    %35 = vector.load %arg7[%c0_40, %c896] : memref<256x1152xbf16, #tpu.memory_space<vmem>>, vector<256x128xbf16>
    tpu.vector_store %arg7[%c0_40, %c896], %34 {strides = array<i32>} : memref<256x1152xbf16, #tpu.memory_space<vmem>>, vector<256x128xbf16>,
    %c2_41 = arith.constant 2 : index
    %c17_42 = arith.constant 17 : index
    %c0_43 = arith.constant 0 : index
    %36 = vector.load %arg6[%c2_41, %c17_42, %c0_43] : memref<18x33x128xbf16, #tpu.memory_space<vmem>>, vector<16x16x128xbf16>
    %37 = vector.shape_cast %36 : vector<16x16x128xbf16> to vector<256x128xbf16>
    %c0_44 = arith.constant 0 : index
    %c1024 = arith.constant 1024 : index
    %38 = vector.load %arg7[%c0_44, %c1024] : memref<256x1152xbf16, #tpu.memory_space<vmem>>, vector<256x128xbf16>
    tpu.vector_store %arg7[%c0_44, %c1024], %37 {strides = array<i32>} : memref<256x1152xbf16, #tpu.memory_space<vmem>>, vector<256x128xbf16>,
    %c0_45 = arith.constant 0 : index
    %c0_46 = arith.constant 0 : index
    %39 = vector.load %arg7[%c0_45, %c0_46] : memref<256x1152xbf16, #tpu.memory_space<vmem>>, vector<256x1152xbf16>
    %c0_47 = arith.constant 0 : index
    %c0_48 = arith.constant 0 : index
    %40 = vector.load %arg3[%c0_47, %c0_48] : memref<1152x128xbf16, #tpu.memory_space<vmem>>, vector<1152x128xbf16>
    %cst_49 = arith.constant dense<0.000000e+00> : vector<256x128xf32>
    %41 = tpu.matmul %39, %40, %cst_49 {dimension_numbers = #tpu.dot_dimension_numbers<[1], [0], [0], [1], [0, 0, 1, 1], [], []>} : vector<256x1152xbf16>, vector<1152x128xbf16>, vector<256x128xf32> -> vector<256x128xf32>
    %cst_50 = arith.constant 0.000000e+00 : f32
    %42 = vector.broadcast %cst_50 : f32 to vector<256x128xf32>
    %43 = arith.maximumf %41, %42 : vector<256x128xf32>
    %44 = arith.truncf %43 : vector<256x128xf32> to vector<256x128xbf16>
    %c0_51 = arith.constant 0 : index
    %c0_52 = arith.constant 0 : index
    %45 = vector.load %arg4[%c0_51, %c0_52] : memref<128x128xbf16, #tpu.memory_space<vmem>>, vector<128x128xbf16>
    %cst_53 = arith.constant dense<0.000000e+00> : vector<256x128xf32>
    %46 = tpu.matmul %44, %45, %cst_53 {dimension_numbers = #tpu.dot_dimension_numbers<[1], [0], [0], [1], [0, 0, 1, 1], [], []>} : vector<256x128xbf16>, vector<128x128xbf16>, vector<256x128xf32> -> vector<256x128xf32>
    %47 = arith.extf %2 : vector<256x128xbf16> to vector<256x128xf32>
    %48 = arith.addf %46, %47 : vector<256x128xf32>
    %cst_54 = arith.constant 0.000000e+00 : f32
    %49 = vector.broadcast %cst_54 : f32 to vector<256x128xf32>
    %50 = arith.maximumf %48, %49 : vector<256x128xf32>
    %51 = vector.shape_cast %50 : vector<256x128xf32> to vector<16x16x128xf32>
    %c0_55 = arith.constant 0 : index
    %c0_56 = arith.constant 0 : index
    %c0_57 = arith.constant 0 : index
    %c0_58 = arith.constant 0 : index
    %52 = vector.load %arg5[%c0_55, %c0_56, %c0_57, %c0_58] : memref<1x16x16x128xf32, #tpu.memory_space<vmem>>, vector<1x16x16x128xf32>
    %53 = vector.shape_cast %52 : vector<1x16x16x128xf32> to vector<16x16x128xf32>
    %54 = vector.shape_cast %51 : vector<16x16x128xf32> to vector<1x16x16x128xf32>
    tpu.vector_store %arg5[%c0_55, %c0_56, %c0_57, %c0_58], %54 {strides = array<i32>} : memref<1x16x16x128xf32, #tpu.memory_space<vmem>>, vector<1x16x16x128xf32>,
    return
  }
  func.func @transform_0(%arg0: i32) -> (i32, i32, i32, i32) {
    %c0_i32 = arith.constant 0 : i32
    %c0_i32_0 = arith.constant 0 : i32
    %c0_i32_1 = arith.constant 0 : i32
    %c0_i32_2 = arith.constant 0 : i32
    return %arg0, %c0_i32, %c0_i32_0, %c0_i32_1 : i32, i32, i32, i32
  }
  func.func @transform_1(%arg0: i32) -> (i32, i32) {
    %c0_i32 = arith.constant 0 : i32
    %c0_i32_0 = arith.constant 0 : i32
    %c0_i32_1 = arith.constant 0 : i32
    return %c0_i32, %c0_i32_0 : i32, i32
  }
  func.func @transform_2(%arg0: i32) -> (i32, i32) {
    %c0_i32 = arith.constant 0 : i32
    %c0_i32_0 = arith.constant 0 : i32
    %c0_i32_1 = arith.constant 0 : i32
    return %c0_i32, %c0_i32_0 : i32, i32
  }
  func.func @transform_3(%arg0: i32) -> (i32, i32) {
    %c0_i32 = arith.constant 0 : i32
    %c0_i32_0 = arith.constant 0 : i32
    %c0_i32_1 = arith.constant 0 : i32
    return %c0_i32, %c0_i32_0 : i32, i32
  }
  func.func @transform_4(%arg0: i32) -> (i32, i32, i32, i32) {
    %c0_i32 = arith.constant 0 : i32
    %c0_i32_0 = arith.constant 0 : i32
    %c0_i32_1 = arith.constant 0 : i32
    %c0_i32_2 = arith.constant 0 : i32
    return %arg0, %c0_i32, %c0_i32_0, %c0_i32_1 : i32, i32, i32, i32
  }
}

</mosaic_0001>

<llo_original>
// kernel: tpu_custom_call.1
$region0: #{tpu_custom_call.1}
  #allocation0 [shape = 'u32[]', space=smem, size = 0x4, offset = 0x4, fixed_abs, tag = 'smem constant byte address 0x4 - core index']
  #allocation1 [shape = 'u32[144,128]{1,0:T(1,128)}', space=vmem, size = 0x12000, scoped, tag = 'internal scratch']
  #allocation2 [shape = 'bf16[18,33,128]{2,1,0:T(8,128)(2,1)}', space=vmem, size = 0x2d000, scoped, tag = 'scratch operand']
  #allocation3 [shape = 'bf16[256,1152]{1,0:T(16,128)(2,1)}', space=vmem, size = 0x90000, scoped, tag = 'scratch operand']
  %s0 = inlined_call_operand.hbm [shape: bf16[2,16,16,128], index: 0, kind: input, shape index: {}]
  %s1 = inlined_call_operand.hbm [shape: bf16[128,128], index: 1, kind: input, shape index: {}]
  %s2 = inlined_call_operand.hbm [shape: bf16[1152,128], index: 2, kind: input, shape index: {}]
  %s3 = inlined_call_operand.hbm [shape: bf16[128,128], index: 3, kind: input, shape index: {}]
  %s4 = inlined_call_operand.hbm [shape: f32[2,16,16,128], index: 4, kind: output, shape index: {}]
  %s5 = sld [smem:[#allocation0]]
  $region65: #{tpu_custom_call.1} parent=0
    _
  %s7 = ssub.s32 1, %s5
  %s8 = scalar_select 0, %s7, %s5
  $region1: #{tpu_custom_call.1} parent=0
    #allocation4 [shape = 'u8[131072]{0}', space=vmem, size = 0x20000, scoped, tag = 'input window, operand 0']
    #allocation5 [shape = 's32[2]{0}', space=sflag, size = 0x8, scoped, tag = 'scoped memory for tpu_custom_call.1']
    #allocation6 [shape = 's32[2]{0}', space=sflag, size = 0x8, scoped, tag = 'scoped memory for tpu_custom_call.1']
    #allocation7 [shape = 'u8[32768]{0}', space=vmem, size = 0x8000, scoped, tag = 'input window, operand 1, single buffered']
    #allocation8 [shape = 's32[1]{0}', space=sflag, size = 0x4, scoped, tag = 'scoped memory for tpu_custom_call.1']
    #allocation9 [shape = 'u8[294912]{0}', space=vmem, size = 0x48000, scoped, tag = 'input window, operand 2, single buffered']
    #allocation10 [shape = 'u8[32768]{0}', space=vmem, size = 0x8000, scoped, tag = 'input window, operand 3, single buffered']
    #allocation11 [shape = 's32[1]{0}', space=sflag, size = 0x4, scoped, tag = 'scoped memory for tpu_custom_call.1']
    #allocation12 [shape = 'u8[262144]{0}', space=vmem, size = 0x40000, scoped, tag = 'output window, operand 0']
    %9 = vsyncpa [#allocation5], 0
    %s10 = scalar_lea.sflag [#allocation5], 1
    %11 = vsyncpa %s10, 0
    %12 = vsyncpa [#allocation8], 0
    %13 = vsyncpa [#allocation11], 0
    %14 = vsyncpa [#allocation6], 0
    %s15 = scalar_lea.sflag [#allocation6], 1
    %16 = vsyncpa %s15, 0
    loop: start=0, step=1, limit=4
    $region2: #{tpu_custom_call.1} parent=1 // loop_pre_header
      _
    $region3: #{tpu_custom_call.1} parent=1 // loop_header
      %s18 = sphi 0, %s22
      %p19 = scmp.ge.s32.totalorder %s18, 4
      %s28 = sphi 0, %s30
      %s31 = sphi 0, %s28
      %s32 = sphi 0, %s31
      %s48 = sphi 0, %s32
      %s52 = sphi 0, %s52
      %s54 = sphi 0, %s52
      %s55 = sphi 0, %s54
      %s69 = sphi 0, %s55
      %s73 = sphi 0, %s73
      %s75 = sphi 0, %s73
      %s76 = sphi 0, %s75
      %s90 = sphi 0, %s76
      %s94 = sphi 0, %s94
      %s96 = sphi 0, %s94
      %s97 = sphi 0, %s96
      %s111 = sphi 0, %s97
      %s117 = sphi 0, %s119
      %s120 = sphi 0, %s117
      %s121 = sphi 0, %s120
      %s137 = sphi 0, %s121
    $region4: #{tpu_custom_call.1} parent=1 // loop_header_branch
      %21 = sbr.rel (%p19) target = $region8
    $region5: #{tpu_custom_call.1} parent=1 // loop_body
      %s23 = ssub.s32 %s18, 1
      %s24 = ssub.s32 %s18, 2
      %s25 = sadd.s32 %s18, 1
      %s26 = ssub.s32 %s18, %s25
      %p27 = scmp.eq.s32.totalorder %s26, 0
      %s29 = sadd.s32 %s28, 1
      %s30 = scalar_select %p27, %s28, %s29
      %p33 = pneg %p27
      %p34 = scmp.eq.s32.totalorder %s18, 1
      %p35 = por %p33, %p34
      %p36 = scmp.ne.s32.totalorder %s28, %s31
      %p37 = scmp.eq.s32.totalorder %s18, 0
      %p38 = por %p36, %p37
      %p39 = scmp.ne.s32.totalorder %s28, %s31
      %p40 = scmp.eq.s32.totalorder %s23, 1
      %p41 = por %p39, %p40
      %p42 = scmp.ne.s32.totalorder %s31, %s32
      %p43 = scmp.eq.s32.totalorder %s23, 0
      %p44 = por %p42, %p43
      %p45 = scmp.ne.s32.totalorder %s31, %s32
      %p46 = scmp.eq.s32.totalorder %s24, 1
      %p47 = por %p45, %p46
      %p49 = scmp.ne.s32.totalorder %s32, %s48
      %p50 = scmp.eq.s32.totalorder %s24, 0
      %p51 = por %p49, %p50
      %s53 = sadd.s32 %s52, 1
      %p56 = scmp.eq.s32.totalorder %s18, 1
      %p57 = scmp.ne.s32.totalorder %s52, %s54
      %p58 = scmp.eq.s32.totalorder %s18, 0
      %p59 = por %p57, %p58
      %p60 = scmp.ne.s32.totalorder %s52, %s54
      %p61 = scmp.eq.s32.totalorder %s23, 1
      %p62 = por %p60, %p61
      %p63 = scmp.ne.s32.totalorder %s54, %s55
      %p64 = scmp.eq.s32.totalorder %s23, 0
      %p65 = por %p63, %p64
      %p66 = scmp.ne.s32.totalorder %s54, %s55
      %p67 = scmp.eq.s32.totalorder %s24, 1
      %p68 = por %p66, %p67
      %p70 = scmp.ne.s32.totalorder %s55, %s69
      %p71 = scmp.eq.s32.totalorder %s24, 0
      %p72 = por %p70, %p71
      %s74 = sadd.s32 %s73, 1
      %p77 = scmp.eq.s32.totalorder %s18, 1
      %p78 = scmp.ne.s32.totalorder %s73, %s75
      %p79 = scmp.eq.s32.totalorder %s18, 0
      %p80 = por %p78, %p79
      %p81 = scmp.ne.s32.totalorder %s73, %s75
      %p82 = scmp.eq.s32.totalorder %s23, 1
      %p83 = por %p81, %p82
      %p84 = scmp.ne.s32.totalorder %s75, %s76
      %p85 = scmp.eq.s32.totalorder %s23, 0
      %p86 = por %p84, %p85
      %p87 = scmp.ne.s32.totalorder %s75, %s76
      %p88 = scmp.eq.s32.totalorder %s24, 1
      %p89 = por %p87, %p88
      %p91 = scmp.ne.s32.totalorder %s76, %s90
      %p92 = scmp.eq.s32.totalorder %s24, 0
      %p93 = por %p91, %p92
      %s95 = sadd.s32 %s94, 1
      %p98 = scmp.eq.s32.totalorder %s18, 1
      %p99 = scmp.ne.s32.totalorder %s94, %s96
      %p100 = scmp.eq.s32.totalorder %s18, 0
      %p101 = por %p99, %p100
      %p102 = scmp.ne.s32.totalorder %s94, %s96
      %p103 = scmp.eq.s32.totalorder %s23, 1
      %p104 = por %p102, %p103
      %p105 = scmp.ne.s32.totalorder %s96, %s97
      %p106 = scmp.eq.s32.totalorder %s23, 0
      %p107 = por %p105, %p106
      %p108 = scmp.ne.s32.totalorder %s96, %s97
      %p109 = scmp.eq.s32.totalorder %s24, 1
      %p110 = por %p108, %p109
      %p112 = scmp.ne.s32.totalorder %s97, %s111
      %p113 = scmp.eq.s32.totalorder %s24, 0
      %p114 = por %p112, %p113
      %s115 = ssub.s32 %s18, %s25
      %p116 = scmp.eq.s32.totalorder %s115, 0
      %s118 = sadd.s32 %s117, 1
      %s119 = scalar_select %p116, %s117, %s118
      %p122 = pneg %p116
      %p123 = scmp.eq.s32.totalorder %s18, 1
      %p124 = por %p122, %p123
      %p125 = scmp.ne.s32.totalorder %s117, %s120
      %p126 = scmp.eq.s32.totalorder %s18, 0
      %p127 = por %p125, %p126
      %p128 = scmp.ne.s32.totalorder %s117, %s120
      %p129 = scmp.eq.s32.totalorder %s23, 1
      %p130 = por %p128, %p129
      %p131 = scmp.ne.s32.totalorder %s120, %s121
      %p132 = scmp.eq.s32.totalorder %s23, 0
      %p133 = por %p131, %p132
      %p134 = scmp.ne.s32.totalorder %s120, %s121
      %p135 = scmp.eq.s32.totalorder %s24, 1
      %p136 = por %p134, %p135
      %p138 = scmp.ne.s32.totalorder %s121, %s137
      %p139 = scmp.eq.s32.totalorder %s24, 0
      %p140 = por %p138, %p139
      %p141 = scmp.le.s32.totalorder 1, %s18
      %p142 = scmp.lt.s32.totalorder %s18, 3
      %p143 = pnand %p141, %p142
      %p144 = pneg %p143
      // Predicated region
      $region9: #{tpu_custom_call.1} parent=5 // pred_check
        _
      $region10: #{tpu_custom_call.1} parent=5 // pred_check_branch
        %146 = sbr.rel (%p143) target = $region12
      $region11: #{tpu_custom_call.1} parent=5 // pred_region
        %s147 = ssub.s32 %s18, 1
        // Predicated region
        $region13: #{tpu_custom_call.1} parent=11 // pred_check
          %p148 = pneg %p65
        $region14: #{tpu_custom_call.1} parent=11 // pred_check_branch
          %150 = sbr.rel (%p148) target = $region16
        $region15: #{tpu_custom_call.1} parent=11 // pred_region
          %s152 = ssub.s32 1024, 1024
          %153 = vsyncadd [#allocation8], %s152
          %s154 = sshll.u32 [#allocation7], 4
          %s155 = int_to_ptr.vmem [resolvable:$true] %s154
          %160 = dma.hbm_to_vmem [thread:$0]  %s1, 1024, %s155, [#allocation8], 64, 64, 4
        $region16: #{tpu_custom_call.1} parent=11 // pred_fallthru
          _
        // Predicated region
        $region17: #{tpu_custom_call.1} parent=11 // pred_check
          %p161 = pneg %p86
        $region18: #{tpu_custom_call.1} parent=11 // pred_check_branch
          %163 = sbr.rel (%p161) target = $region20
        $region19: #{tpu_custom_call.1} parent=11 // pred_region
          %s165 = ssub.s32 9216, 9216
          %166 = vsyncadd [#allocation8], %s165
          %s167 = sshll.u32 [#allocation9], 4
          %s168 = int_to_ptr.vmem [resolvable:$true] %s167
          %173 = dma.hbm_to_vmem [thread:$0]  %s2, 9216, %s168, [#allocation8], 64, 64, 4
        $region20: #{tpu_custom_call.1} parent=11 // pred_fallthru
          _
        // Predicated region
        $region21: #{tpu_custom_call.1} parent=11 // pred_check
          %p174 = pneg %p107
        $region22: #{tpu_custom_call.1} parent=11 // pred_check_branch
          %176 = sbr.rel (%p174) target = $region24
        $region23: #{tpu_custom_call.1} parent=11 // pred_region
          %s178 = ssub.s32 1024, 1024
          %179 = vsyncadd [#allocation11], %s178
          %s180 = sshll.u32 [#allocation10], 4
          %s181 = int_to_ptr.vmem [resolvable:$true] %s180
          %186 = dma.hbm_to_vmem [thread:$0]  %s3, 1024, %s181, [#allocation11], 64, 64, 4
        $region24: #{tpu_custom_call.1} parent=11 // pred_fallthru
          _
      $region12: #{tpu_custom_call.1} parent=5 // pred_fallthru
        _
      %p187 = scmp.lt.s32.totalorder %s18, 2
      // Predicated region
      $region25: #{tpu_custom_call.1} parent=5 // pred_check
        %p188 = pneg %p187
      $region26: #{tpu_custom_call.1} parent=5 // pred_check_branch
        %190 = sbr.rel (%p188) target = $region28
      $region27: #{tpu_custom_call.1} parent=5 // pred_region
        // Predicated region
        $region29: #{tpu_custom_call.1} parent=27 // pred_check
          %p191 = pneg %p38
        $region30: #{tpu_custom_call.1} parent=27 // pred_check_branch
          %193 = sbr.rel (%p191) target = $region32
        $region31: #{tpu_custom_call.1} parent=27 // pred_region
          %s194 = sand.u32 %s28, 1
          %s195 = scalar_lea.sflag [#allocation5], %s194
          %s196 = sand.u32 %s28, 1
          %s197 = smul.addr %s196, 128
          %s198 = scalar_lea.vmem [#allocation4], %s197
          %s200 = ssub.s32 2048, 2048
          %201 = vsyncadd %s195, %s200
          %s202 = smul.addr %s18, 32
          %s203 = smul.addr %s202, 64
          %s204 = scalar_lea.hbm %s0, %s203
          %s205 = sshll.u32 %s198, 4
          %s206 = int_to_ptr.vmem [resolvable:$true] %s205
          %211 = dma.hbm_to_vmem [thread:$0]  %s204, 2048, %s206, %s195, 64, 64, 4
        $region32: #{tpu_custom_call.1} parent=27 // pred_fallthru
          _
      $region28: #{tpu_custom_call.1} parent=5 // pred_fallthru
        _
      %p212 = scmp.le.s32.totalorder 1, %s18
      %p213 = scmp.lt.s32.totalorder %s18, 3
      %p214 = pnand %p212, %p213
      %p215 = pneg %p214
      // Predicated region
      $region33: #{tpu_custom_call.1} parent=5 // pred_check
        _
      $region34: #{tpu_custom_call.1} parent=5 // pred_check_branch
        %217 = sbr.rel (%p214) target = $region36
      $region35: #{tpu_custom_call.1} parent=5 // pred_region
        %s218 = ssub.s32 %s18, 1
        %s219 = sand.u32 %s31, 1
        %s220 = scalar_lea.sflag [#allocation5], %s219
        %s221 = sand.u32 %s31, 1
        %s222 = smul.addr %s221, 128
        %s223 = scalar_lea.vmem [#allocation4], %s222
        // Predicated region
        $region37: #{tpu_custom_call.1} parent=35 // pred_check
          %p224 = pneg %p44
        $region38: #{tpu_custom_call.1} parent=35 // pred_check_branch
          %226 = sbr.rel (%p224) target = $region40
        $region39: #{tpu_custom_call.1} parent=35 // pred_region
          %227 = dma.done %s220, 2048
        $region40: #{tpu_custom_call.1} parent=35 // pred_fallthru
          _
        // Predicated region
        $region41: #{tpu_custom_call.1} parent=35 // pred_check
          %p228 = pneg %p65
        $region42: #{tpu_custom_call.1} parent=35 // pred_check_branch
          %230 = sbr.rel (%p228) target = $region44
        $region43: #{tpu_custom_call.1} parent=35 // pred_region
          %231 = dma.done [#allocation8], 1024
        $region44: #{tpu_custom_call.1} parent=35 // pred_fallthru
          _
        // Predicated region
        $region45: #{tpu_custom_call.1} parent=35 // pred_check
          %p232 = pneg %p86
        $region46: #{tpu_custom_call.1} parent=35 // pred_check_branch
          %234 = sbr.rel (%p232) target = $region48
        $region47: #{tpu_custom_call.1} parent=35 // pred_region
          %235 = dma.done [#allocation8], 9216
        $region48: #{tpu_custom_call.1} parent=35 // pred_fallthru
          _
        // Predicated region
        $region49: #{tpu_custom_call.1} parent=35 // pred_check
          %p236 = pneg %p107
        $region50: #{tpu_custom_call.1} parent=35 // pred_check_branch
          %238 = sbr.rel (%p236) target = $region52
        $region51: #{tpu_custom_call.1} parent=35 // pred_region
          %239 = dma.done [#allocation11], 1024
        $region52: #{tpu_custom_call.1} parent=35 // pred_fallthru
          _
        %s240 = sand.u32 %s31, 1
        %s241 = scalar_lea.sflag [#allocation5], %s240
        %s242 = sand.u32 %s31, 1
        %s243 = smul.addr %s242, 128
        %s244 = scalar_lea.vmem [#allocation4], %s243
        %p245 = pneg %p44
        %p246 = pneg %p41
        %p247 = pneg %p65
        %p248 = pneg %p62
        %p249 = pneg %p86
        %p250 = pneg %p83
        %p251 = pneg %p107
        %p252 = pneg %p104
        %p253 = pneg %p133
        %p254 = pneg %p130
        %s255 = sand.u32 %s120, 1
        %s256 = scalar_lea.sflag [#allocation6], %s255
        %s257 = sand.u32 %s120, 1
        %s258 = smul.addr %s257, 256
        %s259 = scalar_lea.vmem [#allocation12], %s258
        %v261 = vld [vmem:[%s223] sm:$0xf]
        %v262 = vld [vmem:[%s223 + $0x4] sm:$0xf]
        %v263 = vld [vmem:[%s223 + $0x8] sm:$0xf]
        %v264 = vld [vmem:[%s223 + $0xc] sm:$0xf]
        %v265 = vld [vmem:[%s223 + $0x10] sm:$0xf]
        %v266 = vld [vmem:[%s223 + $0x14] sm:$0xf]
        %v267 = vld [vmem:[%s223 + $0x18] sm:$0xf]
        %v268 = vld [vmem:[%s223 + $0x1c] sm:$0xf]
        %v269 = vld [vmem:[%s223 + $0x20] sm:$0xf]
        %v270 = vld [vmem:[%s223 + $0x24] sm:$0xf]
        %v271 = vld [vmem:[%s223 + $0x28] sm:$0xf]
        %v272 = vld [vmem:[%s223 + $0x2c] sm:$0xf]
        %v273 = vld [vmem:[%s223 + $0x30] sm:$0xf]
        %v274 = vld [vmem:[%s223 + $0x34] sm:$0xf]
        %v275 = vld [vmem:[%s223 + $0x38] sm:$0xf]
        %v276 = vld [vmem:[%s223 + $0x3c] sm:$0xf]
        %v277 = vld [vmem:[%s223 + $0x40] sm:$0xf]
        %v278 = vld [vmem:[%s223 + $0x44] sm:$0xf]
        %v279 = vld [vmem:[%s223 + $0x48] sm:$0xf]
        %v280 = vld [vmem:[%s223 + $0x4c] sm:$0xf]
        %v281 = vld [vmem:[%s223 + $0x50] sm:$0xf]
        %v282 = vld [vmem:[%s223 + $0x54] sm:$0xf]
        %v283 = vld [vmem:[%s223 + $0x58] sm:$0xf]
        %v284 = vld [vmem:[%s223 + $0x5c] sm:$0xf]
        %v285 = vld [vmem:[%s223 + $0x60] sm:$0xf]
        %v286 = vld [vmem:[%s223 + $0x64] sm:$0xf]
        %v287 = vld [vmem:[%s223 + $0x68] sm:$0xf]
        %v288 = vld [vmem:[%s223 + $0x6c] sm:$0xf]
        %v289 = vld [vmem:[%s223 + $0x70] sm:$0xf]
        %v290 = vld [vmem:[%s223 + $0x74] sm:$0xf]
        %v291 = vld [vmem:[%s223 + $0x78] sm:$0xf]
        %v292 = vld [vmem:[%s223 + $0x7c] sm:$0xf]
        %v293 = vld [vmem:[#allocation7] sm:$0xf]
        %v294 = vld [vmem:[#allocation7 + $0x4] sm:$0xf]
        %v295 = vld [vmem:[#allocation7 + $0x8] sm:$0xf]
        %v296 = vld [vmem:[#allocation7 + $0xc] sm:$0xf]
        %v297 = vld [vmem:[#allocation7 + $0x10] sm:$0xf]
        %v298 = vld [vmem:[#allocation7 + $0x14] sm:$0xf]
        %v299 = vld [vmem:[#allocation7 + $0x18] sm:$0xf]
        %v300 = vld [vmem:[#allocation7 + $0x1c] sm:$0xf]
        %v301 = vld [vmem:[#allocation7 + $0x20] sm:$0xf]
        %v302 = vld [vmem:[#allocation7 + $0x24] sm:$0xf]
        %v303 = vld [vmem:[#allocation7 + $0x28] sm:$0xf]
        %v304 = vld [vmem:[#allocation7 + $0x2c] sm:$0xf]
        %v305 = vld [vmem:[#allocation7 + $0x30] sm:$0xf]
        %v306 = vld [vmem:[#allocation7 + $0x34] sm:$0xf]
        %v307 = vld [vmem:[#allocation7 + $0x38] sm:$0xf]
        %v308 = vld [vmem:[#allocation7 + $0x3c] sm:$0xf]
        %v341 = vunpack.c.l.b16 %v261
        %v342 = vunpack.c.l.b16 %v262
        %v343 = vunpack.c.l.b16 %v263
        %v344 = vunpack.c.l.b16 %v264
        %v345 = vunpack.c.l.b16 %v265
        %v346 = vunpack.c.l.b16 %v266
        %v347 = vunpack.c.l.b16 %v267
        %v348 = vunpack.c.l.b16 %v268
        %v349 = vunpack.c.l.b16 %v269
        %v350 = vunpack.c.l.b16 %v270
        %v351 = vunpack.c.l.b16 %v271
        %v352 = vunpack.c.l.b16 %v272
        %v353 = vunpack.c.l.b16 %v273
        %v354 = vunpack.c.l.b16 %v274
        %v355 = vunpack.c.l.b16 %v275
        %v356 = vunpack.c.l.b16 %v276
        %v357 = vunpack.c.l.b16 %v277
        %v358 = vunpack.c.l.b16 %v278
        %v359 = vunpack.c.l.b16 %v279
        %v360 = vunpack.c.l.b16 %v280
        %v361 = vunpack.c.l.b16 %v281
        %v362 = vunpack.c.l.b16 %v282
        %v363 = vunpack.c.l.b16 %v283
        %v364 = vunpack.c.l.b16 %v284
        %v365 = vunpack.c.l.b16 %v285
        %v366 = vunpack.c.l.b16 %v286
        %v367 = vunpack.c.l.b16 %v287
        %v368 = vunpack.c.l.b16 %v288
        %v369 = vunpack.c.l.b16 %v289
        %v370 = vunpack.c.l.b16 %v290
        %v371 = vunpack.c.l.b16 %v291
        %v372 = vunpack.c.l.b16 %v292
        %v373 = vpack.c.b16 %v342, %v341
        %v374 = vpack.c.b16 %v344, %v343
        %v375 = vpack.c.b16 %v346, %v345
        %v376 = vpack.c.b16 %v348, %v347
        %v377 = vpack.c.b16 %v350, %v349
        %v378 = vpack.c.b16 %v352, %v351
        %v379 = vpack.c.b16 %v354, %v353
        %v380 = vpack.c.b16 %v356, %v355
        %v381 = vpack.c.b16 %v358, %v357
        %v382 = vpack.c.b16 %v360, %v359
        %v383 = vpack.c.b16 %v362, %v361
        %v384 = vpack.c.b16 %v364, %v363
        %v385 = vpack.c.b16 %v366, %v365
        %v386 = vpack.c.b16 %v368, %v367
        %v387 = vpack.c.b16 %v370, %v369
        %v388 = vpack.c.b16 %v372, %v371
        %v421 = vunpack.c.l.b16 %v293
        %v422 = vunpack.c.l.b16 %v294
        %v423 = vunpack.c.l.b16 %v295
        %v424 = vunpack.c.l.b16 %v296
        %v425 = vunpack.c.l.b16 %v297
        %v426 = vunpack.c.l.b16 %v298
        %v427 = vunpack.c.l.b16 %v299
        %v428 = vunpack.c.l.b16 %v300
        %v429 = vunpack.c.l.b16 %v301
        %v430 = vunpack.c.l.b16 %v302
        %v431 = vunpack.c.l.b16 %v303
        %v432 = vunpack.c.l.b16 %v304
        %v433 = vunpack.c.l.b16 %v305
        %v434 = vunpack.c.l.b16 %v306
        %v435 = vunpack.c.l.b16 %v307
        %v436 = vunpack.c.l.b16 %v308
        %v437 = vpack.c.b16 %v422, %v421
        %v438 = vpack.c.b16 %v424, %v423
        %v439 = vpack.c.b16 %v426, %v425
        %v440 = vpack.c.b16 %v428, %v427
        %v441 = vpack.c.b16 %v430, %v429
        %v442 = vpack.c.b16 %v432, %v431
        %v443 = vpack.c.b16 %v434, %v433
        %v444 = vpack.c.b16 %v436, %v435
        %453 = vmatprep.subr.bf16.mxu0 0
        %454 = vmatpush1.bf16.msra.mxu0 %v437
        %455 = vmatprep.subr.bf16.mxu0 0
        %456 = vmatpush1.bf16.msra.mxu0 %v438
        %457 = vmatprep.subr.bf16.mxu0 0
        %458 = vmatpush1.bf16.msra.mxu0 %v439
        %459 = vmatprep.subr.bf16.mxu0 0
        %460 = vmatpush1.bf16.msra.mxu0 %v440
        %461 = vmatprep.subr.bf16.mxu0 0
        %462 = vmatpush1.bf16.msra.mxu0 %v441
        %463 = vmatprep.subr.bf16.mxu0 0
        %464 = vmatpush1.bf16.msra.mxu0 %v442
        %465 = vmatprep.subr.bf16.mxu0 0
        %466 = vmatpush1.bf16.msra.mxu0 %v443
        %467 = vmatprep.subr.bf16.mxu0 0
        %468 = vmatpush1.bf16.msra.mxu0 %v444
        %469 = vmatprep.subr.bf16.mxu0 0
        %470 = vmatpush1.bf16.msra.mxu0 0
        %471 = vmatprep.subr.bf16.mxu0 0
        %472 = vmatpush1.bf16.msra.mxu0 0
        %473 = vmatprep.subr.bf16.mxu0 0
        %474 = vmatpush1.bf16.msra.mxu0 0
        %475 = vmatprep.subr.bf16.mxu0 0
        %476 = vmatpush1.bf16.msra.mxu0 0
        %477 = vmatprep.subr.bf16.mxu0 0
        %478 = vmatpush1.bf16.msra.mxu0 0
        %479 = vmatprep.subr.bf16.mxu0 0
        %480 = vmatpush1.bf16.msra.mxu0 0
        %481 = vmatprep.subr.bf16.mxu0 0
        %482 = vmatpush1.bf16.msra.mxu0 0
        %483 = vmatprep.subr.bf16.mxu0 0
        %484 = vmatpush1.bf16.msra.mxu0 0
        %485 = vmatprep.mubr.bf16.mxu0 0
        %486 = vmatmul.mubr.bf16.gmra.mrb[0].mxu0 %v373
        %v487 = vpop.f32.mrb[0].mxu0
        %v488 = vadd.f32 0.0, %v487
        %v489 = vpop.f32.mrb[0].mxu0
        %v490 = vpop.f32.mrb[0].mxu0
        %v491 = vadd.f32 0.0, %v490
        %v492 = vpop.f32.mrb[0].mxu0
        %493 = vmatprep.mubr.bf16.mxu0 0
        %494 = vmatmul.mubr.bf16.gmra.mrb[0].mxu0 %v374
        %v495 = vpop.f32.mrb[0].mxu0
        %v496 = vadd.f32 0.0, %v495
        %v497 = vpop.f32.mrb[0].mxu0
        %v498 = vpop.f32.mrb[0].mxu0
        %v499 = vadd.f32 0.0, %v498
        %v500 = vpop.f32.mrb[0].mxu0
        %501 = vmatprep.mubr.bf16.mxu0 0
        %502 = vmatmul.mubr.bf16.gmra.mrb[0].mxu0 %v375
        %v503 = vpop.f32.mrb[0].mxu0
        %v504 = vadd.f32 0.0, %v503
        %v505 = vpop.f32.mrb[0].mxu0
        %v506 = vpop.f32.mrb[0].mxu0
        %v507 = vadd.f32 0.0, %v506
        %v508 = vpop.f32.mrb[0].mxu0
        %509 = vmatprep.mubr.bf16.mxu0 0
        %510 = vmatmul.mubr.bf16.gmra.mrb[0].mxu0 %v376
        %v511 = vpop.f32.mrb[0].mxu0
        %v512 = vadd.f32 0.0, %v511
        %v513 = vpop.f32.mrb[0].mxu0
        %v514 = vpop.f32.mrb[0].mxu0
        %v515 = vadd.f32 0.0, %v514
        %v516 = vpop.f32.mrb[0].mxu0
        %517 = vmatprep.mubr.bf16.mxu0 0
        %518 = vmatmul.mubr.bf16.gmra.mrb[0].mxu0 %v377
        %v519 = vpop.f32.mrb[0].mxu0
        %v520 = vadd.f32 0.0, %v519
        %v521 = vpop.f32.mrb[0].mxu0
        %v522 = vpop.f32.mrb[0].mxu0
        %v523 = vadd.f32 0.0, %v522
        %v524 = vpop.f32.mrb[0].mxu0
        %525 = vmatprep.mubr.bf16.mxu0 0
        %526 = vmatmul.mubr.bf16.gmra.mrb[0].mxu0 %v378
        %v527 = vpop.f32.mrb[0].mxu0
        %v528 = vadd.f32 0.0, %v527
        %v529 = vpop.f32.mrb[0].mxu0
        %v530 = vpop.f32.mrb[0].mxu0
        %v531 = vadd.f32 0.0, %v530
        %v532 = vpop.f32.mrb[0].mxu0
        %533 = vmatprep.mubr.bf16.mxu0 0
        %534 = vmatmul.mubr.bf16.gmra.mrb[0].mxu0 %v379
        %v535 = vpop.f32.mrb[0].mxu0
        %v536 = vadd.f32 0.0, %v535
        %v537 = vpop.f32.mrb[0].mxu0
        %v538 = vpop.f32.mrb[0].mxu0
        %v539 = vadd.f32 0.0, %v538
        %v540 = vpop.f32.mrb[0].mxu0
        %541 = vmatprep.mubr.bf16.mxu0 0
        %542 = vmatmul.mubr.bf16.gmra.mrb[0].mxu0 %v380
        %v543 = vpop.f32.mrb[0].mxu0
        %v544 = vadd.f32 0.0, %v543
        %v545 = vpop.f32.mrb[0].mxu0
        %v546 = vpop.f32.mrb[0].mxu0
        %v547 = vadd.f32 0.0, %v546
        %v548 = vpop.f32.mrb[0].mxu0
        %549 = vmatprep.mubr.bf16.mxu0 0
        %550 = vmatmul.mubr.bf16.gmra.mrb[0].mxu0 %v381
        %v551 = vpop.f32.mrb[0].mxu0
        %v552 = vadd.f32 0.0, %v551
        %v553 = vpop.f32.mrb[0].mxu0
        %v554 = vpop.f32.mrb[0].mxu0
        %v555 = vadd.f32 0.0, %v554
        %v556 = vpop.f32.mrb[0].mxu0
        %557 = vmatprep.mubr.bf16.mxu0 0
        %558 = vmatmul.mubr.bf16.gmra.mrb[0].mxu0 %v382
        %v559 = vpop.f32.mrb[0].mxu0
        %v560 = vadd.f32 0.0, %v559
        %v561 = vpop.f32.mrb[0].mxu0
        %v562 = vpop.f32.mrb[0].mxu0
        %v563 = vadd.f32 0.0, %v562
        %v564 = vpop.f32.mrb[0].mxu0
        %565 = vmatprep.mubr.bf16.mxu0 0
        %566 = vmatmul.mubr.bf16.gmra.mrb[0].mxu0 %v383
        %v567 = vpop.f32.mrb[0].mxu0
        %v568 = vadd.f32 0.0, %v567
        %v569 = vpop.f32.mrb[0].mxu0
        %v570 = vpop.f32.mrb[0].mxu0
        %v571 = vadd.f32 0.0, %v570
        %v572 = vpop.f32.mrb[0].mxu0
        %573 = vmatprep.mubr.bf16.mxu0 0
        %574 = vmatmul.mubr.bf16.gmra.mrb[0].mxu0 %v384
        %v575 = vpop.f32.mrb[0].mxu0
        %v576 = vadd.f32 0.0, %v575
        %v577 = vpop.f32.mrb[0].mxu0
        %v578 = vpop.f32.mrb[0].mxu0
        %v579 = vadd.f32 0.0, %v578
        %v580 = vpop.f32.mrb[0].mxu0
        %581 = vmatprep.mubr.bf16.mxu0 0
        %582 = vmatmul.mubr.bf16.gmra.mrb[0].mxu0 %v385
        %v583 = vpop.f32.mrb[0].mxu0
        %v584 = vadd.f32 0.0, %v583
        %v585 = vpop.f32.mrb[0].mxu0
        %v586 = vpop.f32.mrb[0].mxu0
        %v587 = vadd.f32 0.0, %v586
        %v588 = vpop.f32.mrb[0].mxu0
        %589 = vmatprep.mubr.bf16.mxu0 0
        %590 = vmatmul.mubr.bf16.gmra.mrb[0].mxu0 %v386
        %v591 = vpop.f32.mrb[0].mxu0
        %v592 = vadd.f32 0.0, %v591
        %v593 = vpop.f32.mrb[0].mxu0
        %v594 = vpop.f32.mrb[0].mxu0
        %v595 = vadd.f32 0.0, %v594
        %v596 = vpop.f32.mrb[0].mxu0
        %597 = vmatprep.mubr.bf16.mxu0 0
        %598 = vmatmul.mubr.bf16.gmra.mrb[0].mxu0 %v387
        %v599 = vpop.f32.mrb[0].mxu0
        %v600 = vadd.f32 0.0, %v599
        %v601 = vpop.f32.mrb[0].mxu0
        %v602 = vpop.f32.mrb[0].mxu0
        %v603 = vadd.f32 0.0, %v602
        %v604 = vpop.f32.mrb[0].mxu0
        %605 = vmatprep.mubr.bf16.mxu0 0
        %606 = vmatmul.mubr.bf16.gmra.mrb[0].mxu0 %v388
        %v607 = vpop.f32.mrb[0].mxu0
        %v608 = vadd.f32 0.0, %v607
        %v609 = vpop.f32.mrb[0].mxu0
        %v610 = vpop.f32.mrb[0].mxu0
        %v611 = vadd.f32 0.0, %v610
        %v612 = vpop.f32.mrb[0].mxu0
        %613 = vdwg.mxu0
        %v614 = vmax.f32 %v488, 0.0
        %v615 = vmax.f32 %v491, 0.0
        %v616 = vmax.f32 %v496, 0.0
        %v617 = vmax.f32 %v499, 0.0
        %v618 = vmax.f32 %v504, 0.0
        %v619 = vmax.f32 %v507, 0.0
        %v620 = vmax.f32 %v512, 0.0
        %v621 = vmax.f32 %v515, 0.0
        %v622 = vmax.f32 %v520, 0.0
        %v623 = vmax.f32 %v523, 0.0
        %v624 = vmax.f32 %v528, 0.0
        %v625 = vmax.f32 %v531, 0.0
        %v626 = vmax.f32 %v536, 0.0
        %v627 = vmax.f32 %v539, 0.0
        %v628 = vmax.f32 %v544, 0.0
        %v629 = vmax.f32 %v547, 0.0
        %v630 = vmax.f32 %v552, 0.0
        %v631 = vmax.f32 %v555, 0.0
        %v632 = vmax.f32 %v560, 0.0
        %v633 = vmax.f32 %v563, 0.0
        %v634 = vmax.f32 %v568, 0.0
        %v635 = vmax.f32 %v571, 0.0
        %v636 = vmax.f32 %v576, 0.0
        %v637 = vmax.f32 %v579, 0.0
        %v638 = vmax.f32 %v584, 0.0
        %v639 = vmax.f32 %v587, 0.0
        %v640 = vmax.f32 %v592, 0.0
        %v641 = vmax.f32 %v595, 0.0
        %v642 = vmax.f32 %v600, 0.0
        %v643 = vmax.f32 %v603, 0.0
        %v644 = vmax.f32 %v608, 0.0
        %v645 = vmax.f32 %v611, 0.0
        %v646 = vpack.c.bf16 %v615, %v614
        %v647 = vpack.c.bf16 %v617, %v616
        %v648 = vpack.c.bf16 %v619, %v618
        %v649 = vpack.c.bf16 %v621, %v620
        %v650 = vpack.c.bf16 %v623, %v622
        %v651 = vpack.c.bf16 %v625, %v624
        %v652 = vpack.c.bf16 %v627, %v626
        %v653 = vpack.c.bf16 %v629, %v628
        %v654 = vpack.c.bf16 %v631, %v630
        %v655 = vpack.c.bf16 %v633, %v632
        %v656 = vpack.c.bf16 %v635, %v634
        %v657 = vpack.c.bf16 %v637, %v636
        %v658 = vpack.c.bf16 %v639, %v638
        %v659 = vpack.c.bf16 %v641, %v640
        %v660 = vpack.c.bf16 %v643, %v642
        %v661 = vpack.c.bf16 %v645, %v644
        %662 = vst [vmem:[#allocation2] sm:$0xf] 0
        %663 = vst [vmem:[#allocation2 + $0x4] sm:$0xf] 0
        %664 = vst [vmem:[#allocation2 + $0x8] sm:$0xf] 0
        %665 = vst [vmem:[#allocation2 + $0xc] sm:$0xf] 0
        %vm666 = vcmask 1040384
        %vm667 = vsmask.f32 256
        %vm668 = vmand %vm666, %vm667
        %v669 = vld [vmem:[#allocation2 + $0x10] sm:$0x1]
        %v670 = vsel %vm668, 0, %v669
        %671 = vst [vmem:[#allocation2 + $0x10] sm:$0x1] %v670
        %672 = vst [vmem:[#allocation2 + $0x14] sm:$0xf] 0
        %673 = vst [vmem:[#allocation2 + $0x18] sm:$0xf] 0
        %674 = vst [vmem:[#allocation2 + $0x1c] sm:$0xf] 0
        %675 = vst [vmem:[#allocation2 + $0x20] sm:$0xf] 0
        %v676 = vld [vmem:[#allocation2 + $0x24] sm:$0x1]
        %v677 = vsel %vm668, 0, %v676
        %678 = vst [vmem:[#allocation2 + $0x24] sm:$0x1] %v677
        %679 = vst [vmem:[#allocation2 + $0x28] sm:$0xf] 0
        %680 = vst [vmem:[#allocation2 + $0x2c] sm:$0xf] 0
        %681 = vst [vmem:[#allocation2 + $0x30] sm:$0xf] 0
        %682 = vst [vmem:[#allocation2 + $0x34] sm:$0xf] 0
        %v683 = vld [vmem:[#allocation2 + $0x38] sm:$0x1]
        %v684 = vsel %vm668, 0, %v683
        %685 = vst [vmem:[#allocation2 + $0x38] sm:$0x1] %v684
        %686 = vst [vmem:[#allocation2 + $0x3c] sm:$0xf] 0
        %687 = vst [vmem:[#allocation2 + $0x40] sm:$0xf] 0
        %688 = vst [vmem:[#allocation2 + $0x44] sm:$0xf] 0
        %689 = vst [vmem:[#allocation2 + $0x48] sm:$0xf] 0
        %v690 = vld [vmem:[#allocation2 + $0x4c] sm:$0x1]
        %v691 = vsel %vm668, 0, %v690
        %692 = vst [vmem:[#allocation2 + $0x4c] sm:$0x1] %v691
        %693 = vst [vmem:[#allocation2 + $0x50] sm:$0xf] 0
        %694 = vst [vmem:[#allocation2 + $0x54] sm:$0xf] 0
        %695 = vst [vmem:[#allocation2 + $0x58] sm:$0xf] 0
        %696 = vst [vmem:[#allocation2 + $0x5c] sm:$0xf] 0
        %v697 = vld [vmem:[#allocation2 + $0x60] sm:$0x1]
        %v698 = vsel %vm668, 0, %v697
        %699 = vst [vmem:[#allocation2 + $0x60] sm:$0x1] %v698
        %700 = vst [vmem:[#allocation2 + $0x64] sm:$0xf] 0
        %701 = vst [vmem:[#allocation2 + $0x68] sm:$0xf] 0
        %702 = vst [vmem:[#allocation2 + $0x6c] sm:$0xf] 0
        %703 = vst [vmem:[#allocation2 + $0x70] sm:$0xf] 0
        %v704 = vld [vmem:[#allocation2 + $0x74] sm:$0x1]
        %v705 = vsel %vm668, 0, %v704
        %706 = vst [vmem:[#allocation2 + $0x74] sm:$0x1] %v705
        %707 = vst [vmem:[#allocation2 + $0x78] sm:$0xf] 0
        %708 = vst [vmem:[#allocation2 + $0x7c] sm:$0xf] 0
        %709 = vst [vmem:[#allocation2 + $0x80] sm:$0xf] 0
        %710 = vst [vmem:[#allocation2 + $0x84] sm:$0xf] 0
        %v711 = vld [vmem:[#allocation2 + $0x88] sm:$0x1]
        %v712 = vsel %vm668, 0, %v711
        %713 = vst [vmem:[#allocation2 + $0x88] sm:$0x1] %v712
        %714 = vst [vmem:[#allocation2 + $0x8c] sm:$0xf] 0
        %715 = vst [vmem:[#allocation2 + $0x90] sm:$0xf] 0
        %716 = vst [vmem:[#allocation2 + $0x94] sm:$0xf] 0
        %717 = vst [vmem:[#allocation2 + $0x98] sm:$0xf] 0
        %v718 = vld [vmem:[#allocation2 + $0x9c] sm:$0x1]
        %v719 = vsel %vm668, 0, %v718
        %720 = vst [vmem:[#allocation2 + $0x9c] sm:$0x1] %v719
        %721 = vst [vmem:[#allocation2 + $0xa0] sm:$0xf] 0
        %722 = vst [vmem:[#allocation2 + $0xa4] sm:$0xf] 0
        %723 = vst [vmem:[#allocation2 + $0xa8] sm:$0xf] 0
        %724 = vst [vmem:[#allocation2 + $0xac] sm:$0xf] 0
        %v725 = vld [vmem:[#allocation2 + $0xb0] sm:$0x1]
        %v726 = vsel %vm668, 0, %v725
        %727 = vst [vmem:[#allocation2 + $0xb0] sm:$0x1] %v726
        %728 = vst [vmem:[#allocation2 + $0xb4] sm:$0xf] 0
        %729 = vst [vmem:[#allocation2 + $0xb8] sm:$0xf] 0
        %730 = vst [vmem:[#allocation2 + $0xbc] sm:$0xf] 0
        %731 = vst [vmem:[#allocation2 + $0xc0] sm:$0xf] 0
        %v732 = vld [vmem:[#allocation2 + $0xc4] sm:$0x1]
        %v733 = vsel %vm668, 0, %v732
        %734 = vst [vmem:[#allocation2 + $0xc4] sm:$0x1] %v733
        %735 = vst [vmem:[#allocation2 + $0xc8] sm:$0xf] 0
        %736 = vst [vmem:[#allocation2 + $0xcc] sm:$0xf] 0
        %737 = vst [vmem:[#allocation2 + $0xd0] sm:$0xf] 0
        %738 = vst [vmem:[#allocation2 + $0xd4] sm:$0xf] 0
        %v739 = vld [vmem:[#allocation2 + $0xd8] sm:$0x1]
        %v740 = vsel %vm668, 0, %v739
        %741 = vst [vmem:[#allocation2 + $0xd8] sm:$0x1] %v740
        %742 = vst [vmem:[#allocation2 + $0xdc] sm:$0xf] 0
        %743 = vst [vmem:[#allocation2 + $0xe0] sm:$0xf] 0
        %744 = vst [vmem:[#allocation2 + $0xe4] sm:$0xf] 0
        %745 = vst [vmem:[#allocation2 + $0xe8] sm:$0xf] 0
        %v746 = vld [vmem:[#allocation2 + $0xec] sm:$0x1]
        %v747 = vsel %vm668, 0, %v746
        %748 = vst [vmem:[#allocation2 + $0xec] sm:$0x1] %v747
        %749 = vst [vmem:[#allocation2 + $0xf0] sm:$0xf] 0
        %750 = vst [vmem:[#allocation2 + $0xf4] sm:$0xf] 0
        %751 = vst [vmem:[#allocation2 + $0xf8] sm:$0xf] 0
        %752 = vst [vmem:[#allocation2 + $0xfc] sm:$0xf] 0
        %v753 = vld [vmem:[#allocation2 + $0x100] sm:$0x1]
        %v754 = vsel %vm668, 0, %v753
        %755 = vst [vmem:[#allocation2 + $0x100] sm:$0x1] %v754
        %756 = vst [vmem:[#allocation2 + $0x104] sm:$0xf] 0
        %757 = vst [vmem:[#allocation2 + $0x108] sm:$0xf] 0
        %758 = vst [vmem:[#allocation2 + $0x10c] sm:$0xf] 0
        %759 = vst [vmem:[#allocation2 + $0x110] sm:$0xf] 0
        %v760 = vld [vmem:[#allocation2 + $0x114] sm:$0x1]
        %v761 = vsel %vm668, 0, %v760
        %762 = vst [vmem:[#allocation2 + $0x114] sm:$0x1] %v761
        %763 = vst [vmem:[#allocation2 + $0x118] sm:$0xf] 0
        %764 = vst [vmem:[#allocation2 + $0x11c] sm:$0xf] 0
        %765 = vst [vmem:[#allocation2 + $0x120] sm:$0xf] 0
        %766 = vst [vmem:[#allocation2 + $0x124] sm:$0xf] 0
        %v767 = vld [vmem:[#allocation2 + $0x128] sm:$0x1]
        %v768 = vsel %vm668, 0, %v767
        %769 = vst [vmem:[#allocation2 + $0x128] sm:$0x1] %v768
        %770 = vst [vmem:[#allocation2 + $0x12c] sm:$0xf] 0
        %771 = vst [vmem:[#allocation2 + $0x130] sm:$0xf] 0
        %772 = vst [vmem:[#allocation2 + $0x134] sm:$0xf] 0
        %773 = vst [vmem:[#allocation2 + $0x138] sm:$0xf] 0
        %v774 = vld [vmem:[#allocation2 + $0x13c] sm:$0x1]
        %v775 = vsel %vm668, 0, %v774
        %776 = vst [vmem:[#allocation2 + $0x13c] sm:$0x1] %v775
        %777 = vst [vmem:[#allocation2 + $0x140] sm:$0xf] 0
        %778 = vst [vmem:[#allocation2 + $0x144] sm:$0xf] 0
        %779 = vst [vmem:[#allocation2 + $0x148] sm:$0xf] 0
        %780 = vst [vmem:[#allocation2 + $0x14c] sm:$0xf] 0
        %v781 = vld [vmem:[#allocation2 + $0x150] sm:$0x1]
        %v782 = vsel %vm668, 0, %v781
        %783 = vst [vmem:[#allocation2 + $0x150] sm:$0x1] %v782
        %784 = vst [vmem:[#allocation2 + $0x154] sm:$0xf] 0
        %785 = vst [vmem:[#allocation2 + $0x158] sm:$0xf] 0
        %786 = vst [vmem:[#allocation2 + $0x15c] sm:$0xf] 0
        %787 = vst [vmem:[#allocation2 + $0x160] sm:$0xf] 0
        %v788 = vld [vmem:[#allocation2 + $0x164] sm:$0x1]
        %v789 = vsel %vm668, 0, %v788
        %790 = vst [vmem:[#allocation2 + $0x164] sm:$0x1] %v789
        %v807 = vunpack.c.l.b16 %v646
        %v808 = vunpack.c.h.b16 %v646
        %v809 = vunpack.c.l.b16 %v647
        %v810 = vunpack.c.h.b16 %v647
        %v811 = vunpack.c.l.b16 %v648
        %v812 = vunpack.c.h.b16 %v648
        %v813 = vunpack.c.l.b16 %v649
        %v814 = vunpack.c.h.b16 %v649
        %v815 = vunpack.c.l.b16 %v650
        %v816 = vunpack.c.h.b16 %v650
        %v817 = vunpack.c.l.b16 %v651
        %v818 = vunpack.c.h.b16 %v651
        %v819 = vunpack.c.l.b16 %v652
        %v820 = vunpack.c.h.b16 %v652
        %v821 = vunpack.c.l.b16 %v653
        %v822 = vunpack.c.h.b16 %v653
        %v823 = vunpack.c.l.b16 %v654
        %v824 = vunpack.c.h.b16 %v654
        %v825 = vunpack.c.l.b16 %v655
        %v826 = vunpack.c.h.b16 %v655
        %v827 = vunpack.c.l.b16 %v656
        %v828 = vunpack.c.h.b16 %v656
        %v829 = vunpack.c.l.b16 %v657
        %v830 = vunpack.c.h.b16 %v657
        %v831 = vunpack.c.l.b16 %v658
        %v832 = vunpack.c.h.b16 %v658
        %v833 = vunpack.c.l.b16 %v659
        %v834 = vunpack.c.h.b16 %v659
        %v835 = vunpack.c.l.b16 %v660
        %v836 = vunpack.c.h.b16 %v660
        %v837 = vunpack.c.l.b16 %v661
        %v838 = vunpack.c.h.b16 %v661
        %v839 = vpack.c.b16 %v807, %v807
        %v840 = vpack.c.b16 %v808, %v808
        %v841 = vpack.c.b16 %v809, %v809
        %v842 = vpack.c.b16 %v810, %v810
        %v843 = vpack.c.b16 %v811, %v811
        %v844 = vpack.c.b16 %v812, %v812
        %v845 = vpack.c.b16 %v813, %v813
        %v846 = vpack.c.b16 %v814, %v814
        %v847 = vpack.c.b16 %v815, %v815
        %v848 = vpack.c.b16 %v816, %v816
        %v849 = vpack.c.b16 %v817, %v817
        %v850 = vpack.c.b16 %v818, %v818
        %v851 = vpack.c.b16 %v819, %v819
        %v852 = vpack.c.b16 %v820, %v820
        %v853 = vpack.c.b16 %v821, %v821
        %v854 = vpack.c.b16 %v822, %v822
        %v855 = vpack.c.b16 %v823, %v823
        %v856 = vpack.c.b16 %v824, %v824
        %v857 = vpack.c.b16 %v825, %v825
        %v858 = vpack.c.b16 %v826, %v826
        %v859 = vpack.c.b16 %v827, %v827
        %v860 = vpack.c.b16 %v828, %v828
        %v861 = vpack.c.b16 %v829, %v829
        %v862 = vpack.c.b16 %v830, %v830
        %v863 = vpack.c.b16 %v831, %v831
        %v864 = vpack.c.b16 %v832, %v832
        %v865 = vpack.c.b16 %v833, %v833
        %v866 = vpack.c.b16 %v834, %v834
        %v867 = vpack.c.b16 %v835, %v835
        %v868 = vpack.c.b16 %v836, %v836
        %v869 = vpack.c.b16 %v837, %v837
        %v870 = vpack.c.b16 %v838, %v838
        %s903 = scalar_lea.vmem [#allocation2], 20
        %904 = vst [vmem:[%s903 + $0x8] sm:$0xf] %v839
        %905 = vst [vmem:[%s903 + $0xc] sm:$0xf] %v840
        %906 = vst [vmem:[%s903 + $0x1c] sm:$0xf] %v841
        %907 = vst [vmem:[%s903 + $0x20] sm:$0xf] %v842
        %908 = vst [vmem:[%s903 + $0x30] sm:$0xf] %v843
        %909 = vst [vmem:[%s903 + $0x34] sm:$0xf] %v844
        %910 = vst [vmem:[%s903 + $0x44] sm:$0xf] %v845
        %911 = vst [vmem:[%s903 + $0x48] sm:$0xf] %v846
        %912 = vst [vmem:[%s903 + $0x58] sm:$0xf] %v847
        %913 = vst [vmem:[%s903 + $0x5c] sm:$0xf] %v848
        %914 = vst [vmem:[%s903 + $0x6c] sm:$0xf] %v849
        %915 = vst [vmem:[%s903 + $0x70] sm:$0xf] %v850
        %916 = vst [vmem:[%s903 + $0x80] sm:$0xf] %v851
        %917 = vst [vmem:[%s903 + $0x84] sm:$0xf] %v852
        %918 = vst [vmem:[%s903 + $0x94] sm:$0xf] %v853
        %919 = vst [vmem:[%s903 + $0x98] sm:$0xf] %v854
        %920 = vst [vmem:[%s903 + $0xa8] sm:$0xf] %v855
        %921 = vst [vmem:[%s903 + $0xac] sm:$0xf] %v856
        %922 = vst [vmem:[%s903 + $0xbc] sm:$0xf] %v857
        %923 = vst [vmem:[%s903 + $0xc0] sm:$0xf] %v858
        %924 = vst [vmem:[%s903 + $0xd0] sm:$0xf] %v859
        %925 = vst [vmem:[%s903 + $0xd4] sm:$0xf] %v860
        %926 = vst [vmem:[%s903 + $0xe4] sm:$0xf] %v861
        %927 = vst [vmem:[%s903 + $0xe8] sm:$0xf] %v862
        %928 = vst [vmem:[%s903 + $0xf8] sm:$0xf] %v863
        %929 = vst [vmem:[%s903 + $0xfc] sm:$0xf] %v864
        %930 = vst [vmem:[%s903 + $0x10c] sm:$0xf] %v865
        %931 = vst [vmem:[%s903 + $0x110] sm:$0xf] %v866
        %932 = vst [vmem:[%s903 + $0x120] sm:$0xf] %v867
        %933 = vst [vmem:[%s903 + $0x124] sm:$0xf] %v868
        %934 = vst [vmem:[%s903 + $0x134] sm:$0xf] %v869
        %935 = vst [vmem:[%s903 + $0x138] sm:$0xf] %v870
        %v936 = vld [vmem:[#allocation2 + $0x4] sm:$0x8]
        %v937 = vld [vmem:[#allocation2 + $0x8] sm:$0xf]
        %v938 = vld [vmem:[#allocation2 + $0xc] sm:$0xf]
        %v939 = vld [vmem:[#allocation2 + $0x18] sm:$0x8]
        %v940 = vld [vmem:[#allocation2 + $0x1c] sm:$0xf]
        %v941 = vld [vmem:[#allocation2 + $0x20] sm:$0xf]
        %v942 = vld [vmem:[#allocation2 + $0x2c] sm:$0x8]
        %v943 = vld [vmem:[#allocation2 + $0x30] sm:$0xf]
        %v944 = vld [vmem:[#allocation2 + $0x34] sm:$0xf]
        %v945 = vld [vmem:[#allocation2 + $0x40] sm:$0x8]
        %v946 = vld [vmem:[#allocation2 + $0x44] sm:$0xf]
        %v947 = vld [vmem:[#allocation2 + $0x48] sm:$0xf]
        %v948 = vld [vmem:[#allocation2 + $0x54] sm:$0x8]
        %v949 = vld [vmem:[#allocation2 + $0x58] sm:$0xf]
        %v950 = vld [vmem:[#allocation2 + $0x5c] sm:$0xf]
        %v951 = vld [vmem:[#allocation2 + $0x68] sm:$0x8]
        %v952 = vld [vmem:[#allocation2 + $0x6c] sm:$0xf]
        %v953 = vld [vmem:[#allocation2 + $0x70] sm:$0xf]
        %v954 = vld [vmem:[#allocation2 + $0x7c] sm:$0x8]
        %v955 = vld [vmem:[#allocation2 + $0x80] sm:$0xf]
        %v956 = vld [vmem:[#allocation2 + $0x84] sm:$0xf]
        %v957 = vld [vmem:[#allocation2 + $0x90] sm:$0x8]
        %v958 = vld [vmem:[#allocation2 + $0x94] sm:$0xf]
        %v959 = vld [vmem:[#allocation2 + $0x98] sm:$0xf]
        %v960 = vld [vmem:[#allocation2 + $0xa4] sm:$0x8]
        %v961 = vld [vmem:[#allocation2 + $0xa8] sm:$0xf]
        %v962 = vld [vmem:[#allocation2 + $0xac] sm:$0xf]
        %v963 = vld [vmem:[#allocation2 + $0xb8] sm:$0x8]
        %v964 = vld [vmem:[#allocation2 + $0xbc] sm:$0xf]
        %v965 = vld [vmem:[#allocation2 + $0xc0] sm:$0xf]
        %v966 = vld [vmem:[#allocation2 + $0xcc] sm:$0x8]
        %v967 = vld [vmem:[#allocation2 + $0xd0] sm:$0xf]
        %v968 = vld [vmem:[#allocation2 + $0xd4] sm:$0xf]
        %v969 = vld [vmem:[#allocation2 + $0xe0] sm:$0x8]
        %v970 = vld [vmem:[#allocation2 + $0xe4] sm:$0xf]
        %v971 = vld [vmem:[#allocation2 + $0xe8] sm:$0xf]
        %v972 = vld [vmem:[#allocation2 + $0xf4] sm:$0x8]
        %v973 = vld [vmem:[#allocation2 + $0xf8] sm:$0xf]
        %v974 = vld [vmem:[#allocation2 + $0xfc] sm:$0xf]
        %v975 = vld [vmem:[#allocation2 + $0x108] sm:$0x8]
        %v976 = vld [vmem:[#allocation2 + $0x10c] sm:$0xf]
        %v977 = vld [vmem:[#allocation2 + $0x110] sm:$0xf]
        %v978 = vld [vmem:[#allocation2 + $0x11c] sm:$0x8]
        %v979 = vld [vmem:[#allocation2 + $0x120] sm:$0xf]
        %v980 = vld [vmem:[#allocation2 + $0x124] sm:$0xf]
        %v981 = vld [vmem:[#allocation2 + $0x130] sm:$0x8]
        %v982 = vld [vmem:[#allocation2 + $0x134] sm:$0xf]
        %v983 = vld [vmem:[#allocation2 + $0x138] sm:$0xf]
        %vm984 = vsmask.f32 4368
        %vm985 = vmor %vm667, %vm984
        %v987 = vshrl.u32 %v936, 16
        %v989 = vrot.slane %v987, 7
        %v990 = vrot.slane %v989, 4
        %v992 = vshrl.u32 %v937, 16
        %v994 = vrot.slane %v992, 7
        %v995 = vshll.u32 %v937, 16
        %v997 = vor.u32 %v994, %v995
        %v998 = vsel %vm985, %v990, %v997
        %v999 = vrot.slane %v994, 4
        %v1001 = vshrl.u32 %v938, 16
        %v1003 = vrot.slane %v1001, 7
        %v1004 = vshll.u32 %v938, 16
        %v1006 = vor.u32 %v1003, %v1004
        %v1007 = vsel %vm985, %v999, %v1006
        %v1009 = vshrl.u32 %v939, 16
        %v1011 = vrot.slane %v1009, 7
        %v1012 = vrot.slane %v1011, 4
        %v1014 = vshrl.u32 %v940, 16
        %v1016 = vrot.slane %v1014, 7
        %v1017 = vshll.u32 %v940, 16
        %v1019 = vor.u32 %v1016, %v1017
        %v1020 = vsel %vm985, %v1012, %v1019
        %v1021 = vrot.slane %v1016, 4
        %v1023 = vshrl.u32 %v941, 16
        %v1025 = vrot.slane %v1023, 7
        %v1026 = vshll.u32 %v941, 16
        %v1028 = vor.u32 %v1025, %v1026
        %v1029 = vsel %vm985, %v1021, %v1028
        %v1031 = vshrl.u32 %v942, 16
        %v1033 = vrot.slane %v1031, 7
        %v1034 = vrot.slane %v1033, 4
        %v1036 = vshrl.u32 %v943, 16
        %v1038 = vrot.slane %v1036, 7
        %v1039 = vshll.u32 %v943, 16
        %v1041 = vor.u32 %v1038, %v1039
        %v1042 = vsel %vm985, %v1034, %v1041
        %v1043 = vrot.slane %v1038, 4
        %v1045 = vshrl.u32 %v944, 16
        %v1047 = vrot.slane %v1045, 7
        %v1048 = vshll.u32 %v944, 16
        %v1050 = vor.u32 %v1047, %v1048
        %v1051 = vsel %vm985, %v1043, %v1050
        %v1053 = vshrl.u32 %v945, 16
        %v1055 = vrot.slane %v1053, 7
        %v1056 = vrot.slane %v1055, 4
        %v1058 = vshrl.u32 %v946, 16
        %v1060 = vrot.slane %v1058, 7
        %v1061 = vshll.u32 %v946, 16
        %v1063 = vor.u32 %v1060, %v1061
        %v1064 = vsel %vm985, %v1056, %v1063
        %v1065 = vrot.slane %v1060, 4
        %v1067 = vshrl.u32 %v947, 16
        %v1069 = vrot.slane %v1067, 7
        %v1070 = vshll.u32 %v947, 16
        %v1072 = vor.u32 %v1069, %v1070
        %v1073 = vsel %vm985, %v1065, %v1072
        %v1075 = vshrl.u32 %v948, 16
        %v1077 = vrot.slane %v1075, 7
        %v1078 = vrot.slane %v1077, 4
        %v1080 = vshrl.u32 %v949, 16
        %v1082 = vrot.slane %v1080, 7
        %v1083 = vshll.u32 %v949, 16
        %v1085 = vor.u32 %v1082, %v1083
        %v1086 = vsel %vm985, %v1078, %v1085
        %v1087 = vrot.slane %v1082, 4
        %v1089 = vshrl.u32 %v950, 16
        %v1091 = vrot.slane %v1089, 7
        %v1092 = vshll.u32 %v950, 16
        %v1094 = vor.u32 %v1091, %v1092
        %v1095 = vsel %vm985, %v1087, %v1094
        %v1097 = vshrl.u32 %v951, 16
        %v1099 = vrot.slane %v1097, 7
        %v1100 = vrot.slane %v1099, 4
        %v1102 = vshrl.u32 %v952, 16
        %v1104 = vrot.slane %v1102, 7
        %v1105 = vshll.u32 %v952, 16
        %v1107 = vor.u32 %v1104, %v1105
        %v1108 = vsel %vm985, %v1100, %v1107
        %v1109 = vrot.slane %v1104, 4
        %v1111 = vshrl.u32 %v953, 16
        %v1113 = vrot.slane %v1111, 7
        %v1114 = vshll.u32 %v953, 16
        %v1116 = vor.u32 %v1113, %v1114
        %v1117 = vsel %vm985, %v1109, %v1116
        %v1119 = vshrl.u32 %v954, 16
        %v1121 = vrot.slane %v1119, 7
        %v1122 = vrot.slane %v1121, 4
        %v1124 = vshrl.u32 %v955, 16
        %v1126 = vrot.slane %v1124, 7
        %v1127 = vshll.u32 %v955, 16
        %v1129 = vor.u32 %v1126, %v1127
        %v1130 = vsel %vm985, %v1122, %v1129
        %v1131 = vrot.slane %v1126, 4
        %v1133 = vshrl.u32 %v956, 16
        %v1135 = vrot.slane %v1133, 7
        %v1136 = vshll.u32 %v956, 16
        %v1138 = vor.u32 %v1135, %v1136
        %v1139 = vsel %vm985, %v1131, %v1138
        %v1141 = vshrl.u32 %v957, 16
        %v1143 = vrot.slane %v1141, 7
        %v1144 = vrot.slane %v1143, 4
        %v1146 = vshrl.u32 %v958, 16
        %v1148 = vrot.slane %v1146, 7
        %v1149 = vshll.u32 %v958, 16
        %v1151 = vor.u32 %v1148, %v1149
        %v1152 = vsel %vm985, %v1144, %v1151
        %v1153 = vrot.slane %v1148, 4
        %v1155 = vshrl.u32 %v959, 16
        %v1157 = vrot.slane %v1155, 7
        %v1158 = vshll.u32 %v959, 16
        %v1160 = vor.u32 %v1157, %v1158
        %v1161 = vsel %vm985, %v1153, %v1160
        %v1163 = vshrl.u32 %v960, 16
        %v1165 = vrot.slane %v1163, 7
        %v1166 = vrot.slane %v1165, 4
        %v1168 = vshrl.u32 %v961, 16
        %v1170 = vrot.slane %v1168, 7
        %v1171 = vshll.u32 %v961, 16
        %v1173 = vor.u32 %v1170, %v1171
        %v1174 = vsel %vm985, %v1166, %v1173
        %v1175 = vrot.slane %v1170, 4
        %v1177 = vshrl.u32 %v962, 16
        %v1179 = vrot.slane %v1177, 7
        %v1180 = vshll.u32 %v962, 16
        %v1182 = vor.u32 %v1179, %v1180
        %v1183 = vsel %vm985, %v1175, %v1182
        %v1185 = vshrl.u32 %v963, 16
        %v1187 = vrot.slane %v1185, 7
        %v1188 = vrot.slane %v1187, 4
        %v1190 = vshrl.u32 %v964, 16
        %v1192 = vrot.slane %v1190, 7
        %v1193 = vshll.u32 %v964, 16
        %v1195 = vor.u32 %v1192, %v1193
        %v1196 = vsel %vm985, %v1188, %v1195
        %v1197 = vrot.slane %v1192, 4
        %v1199 = vshrl.u32 %v965, 16
        %v1201 = vrot.slane %v1199, 7
        %v1202 = vshll.u32 %v965, 16
        %v1204 = vor.u32 %v1201, %v1202
        %v1205 = vsel %vm985, %v1197, %v1204
        %v1207 = vshrl.u32 %v966, 16
        %v1209 = vrot.slane %v1207, 7
        %v1210 = vrot.slane %v1209, 4
        %v1212 = vshrl.u32 %v967, 16
        %v1214 = vrot.slane %v1212, 7
        %v1215 = vshll.u32 %v967, 16
        %v1217 = vor.u32 %v1214, %v1215
        %v1218 = vsel %vm985, %v1210, %v1217
        %v1219 = vrot.slane %v1214, 4
        %v1221 = vshrl.u32 %v968, 16
        %v1223 = vrot.slane %v1221, 7
        %v1224 = vshll.u32 %v968, 16
        %v1226 = vor.u32 %v1223, %v1224
        %v1227 = vsel %vm985, %v1219, %v1226
        %v1229 = vshrl.u32 %v969, 16
        %v1231 = vrot.slane %v1229, 7
        %v1232 = vrot.slane %v1231, 4
        %v1234 = vshrl.u32 %v970, 16
        %v1236 = vrot.slane %v1234, 7
        %v1237 = vshll.u32 %v970, 16
        %v1239 = vor.u32 %v1236, %v1237
        %v1240 = vsel %vm985, %v1232, %v1239
        %v1241 = vrot.slane %v1236, 4
        %v1243 = vshrl.u32 %v971, 16
        %v1245 = vrot.slane %v1243, 7
        %v1246 = vshll.u32 %v971, 16
        %v1248 = vor.u32 %v1245, %v1246
        %v1249 = vsel %vm985, %v1241, %v1248
        %v1251 = vshrl.u32 %v972, 16
        %v1253 = vrot.slane %v1251, 7
        %v1254 = vrot.slane %v1253, 4
        %v1256 = vshrl.u32 %v973, 16
        %v1258 = vrot.slane %v1256, 7
        %v1259 = vshll.u32 %v973, 16
        %v1261 = vor.u32 %v1258, %v1259
        %v1262 = vsel %vm985, %v1254, %v1261
        %v1263 = vrot.slane %v1258, 4
        %v1265 = vshrl.u32 %v974, 16
        %v1267 = vrot.slane %v1265, 7
        %v1268 = vshll.u32 %v974, 16
        %v1270 = vor.u32 %v1267, %v1268
        %v1271 = vsel %vm985, %v1263, %v1270
        %v1273 = vshrl.u32 %v975, 16
        %v1275 = vrot.slane %v1273, 7
        %v1276 = vrot.slane %v1275, 4
        %v1278 = vshrl.u32 %v976, 16
        %v1280 = vrot.slane %v1278, 7
        %v1281 = vshll.u32 %v976, 16
        %v1283 = vor.u32 %v1280, %v1281
        %v1284 = vsel %vm985, %v1276, %v1283
        %v1285 = vrot.slane %v1280, 4
        %v1287 = vshrl.u32 %v977, 16
        %v1289 = vrot.slane %v1287, 7
        %v1290 = vshll.u32 %v977, 16
        %v1292 = vor.u32 %v1289, %v1290
        %v1293 = vsel %vm985, %v1285, %v1292
        %v1295 = vshrl.u32 %v978, 16
        %v1297 = vrot.slane %v1295, 7
        %v1298 = vrot.slane %v1297, 4
        %v1300 = vshrl.u32 %v979, 16
        %v1302 = vrot.slane %v1300, 7
        %v1303 = vshll.u32 %v979, 16
        %v1305 = vor.u32 %v1302, %v1303
        %v1306 = vsel %vm985, %v1298, %v1305
        %v1307 = vrot.slane %v1302, 4
        %v1309 = vshrl.u32 %v980, 16
        %v1311 = vrot.slane %v1309, 7
        %v1312 = vshll.u32 %v980, 16
        %v1314 = vor.u32 %v1311, %v1312
        %v1315 = vsel %vm985, %v1307, %v1314
        %v1317 = vshrl.u32 %v981, 16
        %v1319 = vrot.slane %v1317, 7
        %v1320 = vrot.slane %v1319, 4
        %v1322 = vshrl.u32 %v982, 16
        %v1324 = vrot.slane %v1322, 7
        %v1325 = vshll.u32 %v982, 16
        %v1327 = vor.u32 %v1324, %v1325
        %v1328 = vsel %vm985, %v1320, %v1327
        %v1329 = vrot.slane %v1324, 4
        %v1331 = vshrl.u32 %v983, 16
        %v1333 = vrot.slane %v1331, 7
        %v1334 = vshll.u32 %v983, 16
        %v1336 = vor.u32 %v1333, %v1334
        %v1337 = vsel %vm985, %v1329, %v1336
        %v1338 = vunpack.c.l.b16 %v998
        %v1339 = vunpack.c.l.b16 %v1007
        %v1340 = vunpack.c.l.b16 %v1020
        %v1341 = vunpack.c.l.b16 %v1029
        %v1342 = vunpack.c.l.b16 %v1042
        %v1343 = vunpack.c.l.b16 %v1051
        %v1344 = vunpack.c.l.b16 %v1064
        %v1345 = vunpack.c.l.b16 %v1073
        %v1346 = vunpack.c.l.b16 %v1086
        %v1347 = vunpack.c.l.b16 %v1095
        %v1348 = vunpack.c.l.b16 %v1108
        %v1349 = vunpack.c.l.b16 %v1117
        %v1350 = vunpack.c.l.b16 %v1130
        %v1351 = vunpack.c.l.b16 %v1139
        %v1352 = vunpack.c.l.b16 %v1152
        %v1353 = vunpack.c.l.b16 %v1161
        %v1354 = vunpack.c.l.b16 %v1174
        %v1355 = vunpack.c.l.b16 %v1183
        %v1356 = vunpack.c.l.b16 %v1196
        %v1357 = vunpack.c.l.b16 %v1205
        %v1358 = vunpack.c.l.b16 %v1218
        %v1359 = vunpack.c.l.b16 %v1227
        %v1360 = vunpack.c.l.b16 %v1240
        %v1361 = vunpack.c.l.b16 %v1249
        %v1362 = vunpack.c.l.b16 %v1262
        %v1363 = vunpack.c.l.b16 %v1271
        %v1364 = vunpack.c.l.b16 %v1284
        %v1365 = vunpack.c.l.b16 %v1293
        %v1366 = vunpack.c.l.b16 %v1306
        %v1367 = vunpack.c.l.b16 %v1315
        %v1368 = vunpack.c.l.b16 %v1328
        %v1369 = vunpack.c.l.b16 %v1337
        %v1370 = vpack.c.b16 %v1339, %v1338
        %v1371 = vpack.c.b16 %v1341, %v1340
        %v1372 = vpack.c.b16 %v1343, %v1342
        %v1373 = vpack.c.b16 %v1345, %v1344
        %v1374 = vpack.c.b16 %v1347, %v1346
        %v1375 = vpack.c.b16 %v1349, %v1348
        %v1376 = vpack.c.b16 %v1351, %v1350
        %v1377 = vpack.c.b16 %v1353, %v1352
        %v1378 = vpack.c.b16 %v1355, %v1354
        %v1379 = vpack.c.b16 %v1357, %v1356
        %v1380 = vpack.c.b16 %v1359, %v1358
        %v1381 = vpack.c.b16 %v1361, %v1360
        %v1382 = vpack.c.b16 %v1363, %v1362
        %v1383 = vpack.c.b16 %v1365, %v1364
        %v1384 = vpack.c.b16 %v1367, %v1366
        %v1385 = vpack.c.b16 %v1369, %v1368
        %1402 = vst [vmem:[#allocation3] sm:$0xff] %v1370
        %1403 = vst [vmem:[#allocation3 + $0x48] sm:$0xff] %v1371
        %1404 = vst [vmem:[#allocation3 + $0x90] sm:$0xff] %v1372
        %1405 = vst [vmem:[#allocation3 + $0xd8] sm:$0xff] %v1373
        %1406 = vst [vmem:[#allocation3 + $0x120] sm:$0xff] %v1374
        %1407 = vst [vmem:[#allocation3 + $0x168] sm:$0xff] %v1375
        %1408 = vst [vmem:[#allocation3 + $0x1b0] sm:$0xff] %v1376
        %1409 = vst [vmem:[#allocation3 + $0x1f8] sm:$0xff] %v1377
        %1410 = vst [vmem:[#allocation3 + $0x240] sm:$0xff] %v1378
        %1411 = vst [vmem:[#allocation3 + $0x288] sm:$0xff] %v1379
        %1412 = vst [vmem:[#allocation3 + $0x2d0] sm:$0xff] %v1380
        %1413 = vst [vmem:[#allocation3 + $0x318] sm:$0xff] %v1381
        %1414 = vst [vmem:[#allocation3 + $0x360] sm:$0xff] %v1382
        %1415 = vst [vmem:[#allocation3 + $0x3a8] sm:$0xff] %v1383
        %1416 = vst [vmem:[#allocation3 + $0x3f0] sm:$0xff] %v1384
        %1417 = vst [vmem:[#allocation3 + $0x438] sm:$0xff] %v1385
        %v1418 = vld [vmem:[#allocation2 + $0x8] sm:$0xf]
        %v1419 = vld [vmem:[#allocation2 + $0xc] sm:$0xf]
        %v1420 = vld [vmem:[#allocation2 + $0x1c] sm:$0xf]
        %v1421 = vld [vmem:[#allocation2 + $0x20] sm:$0xf]
        %v1422 = vld [vmem:[#allocation2 + $0x30] sm:$0xf]
        %v1423 = vld [vmem:[#allocation2 + $0x34] sm:$0xf]
        %v1424 = vld [vmem:[#allocation2 + $0x44] sm:$0xf]
        %v1425 = vld [vmem:[#allocation2 + $0x48] sm:$0xf]
        %v1426 = vld [vmem:[#allocation2 + $0x58] sm:$0xf]
        %v1427 = vld [vmem:[#allocation2 + $0x5c] sm:$0xf]
        %v1428 = vld [vmem:[#allocation2 + $0x6c] sm:$0xf]
        %v1429 = vld [vmem:[#allocation2 + $0x70] sm:$0xf]
        %v1430 = vld [vmem:[#allocation2 + $0x80] sm:$0xf]
        %v1431 = vld [vmem:[#allocation2 + $0x84] sm:$0xf]
        %v1432 = vld [vmem:[#allocation2 + $0x94] sm:$0xf]
        %v1433 = vld [vmem:[#allocation2 + $0x98] sm:$0xf]
        %v1434 = vld [vmem:[#allocation2 + $0xa8] sm:$0xf]
        %v1435 = vld [vmem:[#allocation2 + $0xac] sm:$0xf]
        %v1436 = vld [vmem:[#allocation2 + $0xbc] sm:$0xf]
        %v1437 = vld [vmem:[#allocation2 + $0xc0] sm:$0xf]
        %v1438 = vld [vmem:[#allocation2 + $0xd0] sm:$0xf]
        %v1439 = vld [vmem:[#allocation2 + $0xd4] sm:$0xf]
        %v1440 = vld [vmem:[#allocation2 + $0xe4] sm:$0xf]
        %v1441 = vld [vmem:[#allocation2 + $0xe8] sm:$0xf]
        %v1442 = vld [vmem:[#allocation2 + $0xf8] sm:$0xf]
        %v1443 = vld [vmem:[#allocation2 + $0xfc] sm:$0xf]
        %v1444 = vld [vmem:[#allocation2 + $0x10c] sm:$0xf]
        %v1445 = vld [vmem:[#allocation2 + $0x110] sm:$0xf]
        %v1446 = vld [vmem:[#allocation2 + $0x120] sm:$0xf]
        %v1447 = vld [vmem:[#allocation2 + $0x124] sm:$0xf]
        %v1448 = vld [vmem:[#allocation2 + $0x134] sm:$0xf]
        %v1449 = vld [vmem:[#allocation2 + $0x138] sm:$0xf]
        %v1482 = vunpack.c.l.b16 %v1418
        %v1483 = vunpack.c.l.b16 %v1419
        %v1484 = vunpack.c.l.b16 %v1420
        %v1485 = vunpack.c.l.b16 %v1421
        %v1486 = vunpack.c.l.b16 %v1422
        %v1487 = vunpack.c.l.b16 %v1423
        %v1488 = vunpack.c.l.b16 %v1424
        %v1489 = vunpack.c.l.b16 %v1425
        %v1490 = vunpack.c.l.b16 %v1426
        %v1491 = vunpack.c.l.b16 %v1427
        %v1492 = vunpack.c.l.b16 %v1428
        %v1493 = vunpack.c.l.b16 %v1429
        %v1494 = vunpack.c.l.b16 %v1430
        %v1495 = vunpack.c.l.b16 %v1431
        %v1496 = vunpack.c.l.b16 %v1432
        %v1497 = vunpack.c.l.b16 %v1433
        %v1498 = vunpack.c.l.b16 %v1434
        %v1499 = vunpack.c.l.b16 %v1435
        %v1500 = vunpack.c.l.b16 %v1436
        %v1501 = vunpack.c.l.b16 %v1437
        %v1502 = vunpack.c.l.b16 %v1438
        %v1503 = vunpack.c.l.b16 %v1439
        %v1504 = vunpack.c.l.b16 %v1440
        %v1505 = vunpack.c.l.b16 %v1441
        %v1506 = vunpack.c.l.b16 %v1442
        %v1507 = vunpack.c.l.b16 %v1443
        %v1508 = vunpack.c.l.b16 %v1444
        %v1509 = vunpack.c.l.b16 %v1445
        %v1510 = vunpack.c.l.b16 %v1446
        %v1511 = vunpack.c.l.b16 %v1447
        %v1512 = vunpack.c.l.b16 %v1448
        %v1513 = vunpack.c.l.b16 %v1449
        %v1514 = vpack.c.b16 %v1483, %v1482
        %v1515 = vpack.c.b16 %v1485, %v1484
        %v1516 = vpack.c.b16 %v1487, %v1486
        %v1517 = vpack.c.b16 %v1489, %v1488
        %v1518 = vpack.c.b16 %v1491, %v1490
        %v1519 = vpack.c.b16 %v1493, %v1492
        %v1520 = vpack.c.b16 %v1495, %v1494
        %v1521 = vpack.c.b16 %v1497, %v1496
        %v1522 = vpack.c.b16 %v1499, %v1498
        %v1523 = vpack.c.b16 %v1501, %v1500
        %v1524 = vpack.c.b16 %v1503, %v1502
        %v1525 = vpack.c.b16 %v1505, %v1504
        %v1526 = vpack.c.b16 %v1507, %v1506
        %v1527 = vpack.c.b16 %v1509, %v1508
        %v1528 = vpack.c.b16 %v1511, %v1510
        %v1529 = vpack.c.b16 %v1513, %v1512
        %1546 = vst [vmem:[#allocation3 + $0x8] sm:$0xff] %v1514
        %1547 = vst [vmem:[#allocation3 + $0x50] sm:$0xff] %v1515
        %1548 = vst [vmem:[#allocation3 + $0x98] sm:$0xff] %v1516
        %1549 = vst [vmem:[#allocation3 + $0xe0] sm:$0xff] %v1517
        %1550 = vst [vmem:[#allocation3 + $0x128] sm:$0xff] %v1518
        %1551 = vst [vmem:[#allocation3 + $0x170] sm:$0xff] %v1519
        %1552 = vst [vmem:[#allocation3 + $0x1b8] sm:$0xff] %v1520
        %1553 = vst [vmem:[#allocation3 + $0x200] sm:$0xff] %v1521
        %1554 = vst [vmem:[#allocation3 + $0x248] sm:$0xff] %v1522
        %1555 = vst [vmem:[#allocation3 + $0x290] sm:$0xff] %v1523
        %1556 = vst [vmem:[#allocation3 + $0x2d8] sm:$0xff] %v1524
        %1557 = vst [vmem:[#allocation3 + $0x320] sm:$0xff] %v1525
        %1558 = vst [vmem:[#allocation3 + $0x368] sm:$0xff] %v1526
        %1559 = vst [vmem:[#allocation3 + $0x3b0] sm:$0xff] %v1527
        %1560 = vst [vmem:[#allocation3 + $0x3f8] sm:$0xff] %v1528
        %1561 = vst [vmem:[#allocation3 + $0x440] sm:$0xff] %v1529
        %v1562 = vld [vmem:[#allocation2 + $0x8] sm:$0xf]
        %v1563 = vld [vmem:[#allocation2 + $0xc] sm:$0xf]
        %v1564 = vld [vmem:[#allocation2 + $0x10] sm:$0x1]
        %v1565 = vld [vmem:[#allocation2 + $0x1c] sm:$0xf]
        %v1566 = vld [vmem:[#allocation2 + $0x20] sm:$0xf]
        %v1567 = vld [vmem:[#allocation2 + $0x24] sm:$0x1]
        %v1568 = vld [vmem:[#allocation2 + $0x30] sm:$0xf]
        %v1569 = vld [vmem:[#allocation2 + $0x34] sm:$0xf]
        %v1570 = vld [vmem:[#allocation2 + $0x38] sm:$0x1]
        %v1571 = vld [vmem:[#allocation2 + $0x44] sm:$0xf]
        %v1572 = vld [vmem:[#allocation2 + $0x48] sm:$0xf]
        %v1573 = vld [vmem:[#allocation2 + $0x4c] sm:$0x1]
        %v1574 = vld [vmem:[#allocation2 + $0x58] sm:$0xf]
        %v1575 = vld [vmem:[#allocation2 + $0x5c] sm:$0xf]
        %v1576 = vld [vmem:[#allocation2 + $0x60] sm:$0x1]
        %v1577 = vld [vmem:[#allocation2 + $0x6c] sm:$0xf]
        %v1578 = vld [vmem:[#allocation2 + $0x70] sm:$0xf]
        %v1579 = vld [vmem:[#allocation2 + $0x74] sm:$0x1]
        %v1580 = vld [vmem:[#allocation2 + $0x80] sm:$0xf]
        %v1581 = vld [vmem:[#allocation2 + $0x84] sm:$0xf]
        %v1582 = vld [vmem:[#allocation2 + $0x88] sm:$0x1]
        %v1583 = vld [vmem:[#allocation2 + $0x94] sm:$0xf]
        %v1584 = vld [vmem:[#allocation2 + $0x98] sm:$0xf]
        %v1585 = vld [vmem:[#allocation2 + $0x9c] sm:$0x1]
        %v1586 = vld [vmem:[#allocation2 + $0xa8] sm:$0xf]
        %v1587 = vld [vmem:[#allocation2 + $0xac] sm:$0xf]
        %v1588 = vld [vmem:[#allocation2 + $0xb0] sm:$0x1]
        %v1589 = vld [vmem:[#allocation2 + $0xbc] sm:$0xf]
        %v1590 = vld [vmem:[#allocation2 + $0xc0] sm:$0xf]
        %v1591 = vld [vmem:[#allocation2 + $0xc4] sm:$0x1]
        %v1592 = vld [vmem:[#allocation2 + $0xd0] sm:$0xf]
        %v1593 = vld [vmem:[#allocation2 + $0xd4] sm:$0xf]
        %v1594 = vld [vmem:[#allocation2 + $0xd8] sm:$0x1]
        %v1595 = vld [vmem:[#allocation2 + $0xe4] sm:$0xf]
        %v1596 = vld [vmem:[#allocation2 + $0xe8] sm:$0xf]
        %v1597 = vld [vmem:[#allocation2 + $0xec] sm:$0x1]
        %v1598 = vld [vmem:[#allocation2 + $0xf8] sm:$0xf]
        %v1599 = vld [vmem:[#allocation2 + $0xfc] sm:$0xf]
        %v1600 = vld [vmem:[#allocation2 + $0x100] sm:$0x1]
        %v1601 = vld [vmem:[#allocation2 + $0x10c] sm:$0xf]
        %v1602 = vld [vmem:[#allocation2 + $0x110] sm:$0xf]
        %v1603 = vld [vmem:[#allocation2 + $0x114] sm:$0x1]
        %v1604 = vld [vmem:[#allocation2 + $0x120] sm:$0xf]
        %v1605 = vld [vmem:[#allocation2 + $0x124] sm:$0xf]
        %v1606 = vld [vmem:[#allocation2 + $0x128] sm:$0x1]
        %v1607 = vld [vmem:[#allocation2 + $0x134] sm:$0xf]
        %v1608 = vld [vmem:[#allocation2 + $0x138] sm:$0xf]
        %v1609 = vld [vmem:[#allocation2 + $0x13c] sm:$0x1]
        %vm1610 = vsmask.f32 3328
        %vm1611 = vsmask.f32 7440
        %vm1612 = vmor %vm1610, %vm1611
        %v1614 = vshrl.u32 %v1562, 16
        %v1616 = vrot.slane %v1614, 4
        %v1617 = vshll.u32 %v1562, 16
        %v1619 = vrot.slane %v1617, 5
        %v1620 = vor.u32 %v1616, %v1619
        %v1621 = vrot.slane %v1620, 4
        %v1623 = vshll.u32 %v1563, 16
        %v1625 = vrot.slane %v1623, 5
        %v1626 = vsel %vm1612, %v1621, %v1625
        %v1627 = vshrl.u32 %v1563, 16
        %v1629 = vrot.slane %v1627, 4
        %v1630 = vor.u32 %v1629, %v1625
        %v1631 = vrot.slane %v1630, 4
        %v1633 = vshll.u32 %v1564, 16
        %v1635 = vrot.slane %v1633, 5
        %v1636 = vsel %vm1612, %v1631, %v1635
        %v1638 = vshrl.u32 %v1565, 16
        %v1640 = vrot.slane %v1638, 4
        %v1641 = vshll.u32 %v1565, 16
        %v1643 = vrot.slane %v1641, 5
        %v1644 = vor.u32 %v1640, %v1643
        %v1645 = vrot.slane %v1644, 4
        %v1647 = vshll.u32 %v1566, 16
        %v1649 = vrot.slane %v1647, 5
        %v1650 = vsel %vm1612, %v1645, %v1649
        %v1651 = vshrl.u32 %v1566, 16
        %v1653 = vrot.slane %v1651, 4
        %v1654 = vor.u32 %v1653, %v1649
        %v1655 = vrot.slane %v1654, 4
        %v1657 = vshll.u32 %v1567, 16
        %v1659 = vrot.slane %v1657, 5
        %v1660 = vsel %vm1612, %v1655, %v1659
        %v1662 = vshrl.u32 %v1568, 16
        %v1664 = vrot.slane %v1662, 4
        %v1665 = vshll.u32 %v1568, 16
        %v1667 = vrot.slane %v1665, 5
        %v1668 = vor.u32 %v1664, %v1667
        %v1669 = vrot.slane %v1668, 4
        %v1671 = vshll.u32 %v1569, 16
        %v1673 = vrot.slane %v1671, 5
        %v1674 = vsel %vm1612, %v1669, %v1673
        %v1675 = vshrl.u32 %v1569, 16
        %v1677 = vrot.slane %v1675, 4
        %v1678 = vor.u32 %v1677, %v1673
        %v1679 = vrot.slane %v1678, 4
        %v1681 = vshll.u32 %v1570, 16
        %v1683 = vrot.slane %v1681, 5
        %v1684 = vsel %vm1612, %v1679, %v1683
        %v1686 = vshrl.u32 %v1571, 16
        %v1688 = vrot.slane %v1686, 4
        %v1689 = vshll.u32 %v1571, 16
        %v1691 = vrot.slane %v1689, 5
        %v1692 = vor.u32 %v1688, %v1691
        %v1693 = vrot.slane %v1692, 4
        %v1695 = vshll.u32 %v1572, 16
        %v1697 = vrot.slane %v1695, 5
        %v1698 = vsel %vm1612, %v1693, %v1697
        %v1699 = vshrl.u32 %v1572, 16
        %v1701 = vrot.slane %v1699, 4
        %v1702 = vor.u32 %v1701, %v1697
        %v1703 = vrot.slane %v1702, 4
        %v1705 = vshll.u32 %v1573, 16
        %v1707 = vrot.slane %v1705, 5
        %v1708 = vsel %vm1612, %v1703, %v1707
        %v1710 = vshrl.u32 %v1574, 16
        %v1712 = vrot.slane %v1710, 4
        %v1713 = vshll.u32 %v1574, 16
        %v1715 = vrot.slane %v1713, 5
        %v1716 = vor.u32 %v1712, %v1715
        %v1717 = vrot.slane %v1716, 4
        %v1719 = vshll.u32 %v1575, 16
        %v1721 = vrot.slane %v1719, 5
        %v1722 = vsel %vm1612, %v1717, %v1721
        %v1723 = vshrl.u32 %v1575, 16
        %v1725 = vrot.slane %v1723, 4
        %v1726 = vor.u32 %v1725, %v1721
        %v1727 = vrot.slane %v1726, 4
        %v1729 = vshll.u32 %v1576, 16
        %v1731 = vrot.slane %v1729, 5
        %v1732 = vsel %vm1612, %v1727, %v1731
        %v1734 = vshrl.u32 %v1577, 16
        %v1736 = vrot.slane %v1734, 4
        %v1737 = vshll.u32 %v1577, 16
        %v1739 = vrot.slane %v1737, 5
        %v1740 = vor.u32 %v1736, %v1739
        %v1741 = vrot.slane %v1740, 4
        %v1743 = vshll.u32 %v1578, 16
        %v1745 = vrot.slane %v1743, 5
        %v1746 = vsel %vm1612, %v1741, %v1745
        %v1747 = vshrl.u32 %v1578, 16
        %v1749 = vrot.slane %v1747, 4
        %v1750 = vor.u32 %v1749, %v1745
        %v1751 = vrot.slane %v1750, 4
        %v1753 = vshll.u32 %v1579, 16
        %v1755 = vrot.slane %v1753, 5
        %v1756 = vsel %vm1612, %v1751, %v1755
        %v1758 = vshrl.u32 %v1580, 16
        %v1760 = vrot.slane %v1758, 4
        %v1761 = vshll.u32 %v1580, 16
        %v1763 = vrot.slane %v1761, 5
        %v1764 = vor.u32 %v1760, %v1763
        %v1765 = vrot.slane %v1764, 4
        %v1767 = vshll.u32 %v1581, 16
        %v1769 = vrot.slane %v1767, 5
        %v1770 = vsel %vm1612, %v1765, %v1769
        %v1771 = vshrl.u32 %v1581, 16
        %v1773 = vrot.slane %v1771, 4
        %v1774 = vor.u32 %v1773, %v1769
        %v1775 = vrot.slane %v1774, 4
        %v1777 = vshll.u32 %v1582, 16
        %v1779 = vrot.slane %v1777, 5
        %v1780 = vsel %vm1612, %v1775, %v1779
        %v1782 = vshrl.u32 %v1583, 16
        %v1784 = vrot.slane %v1782, 4
        %v1785 = vshll.u32 %v1583, 16
        %v1787 = vrot.slane %v1785, 5
        %v1788 = vor.u32 %v1784, %v1787
        %v1789 = vrot.slane %v1788, 4
        %v1791 = vshll.u32 %v1584, 16
        %v1793 = vrot.slane %v1791, 5
        %v1794 = vsel %vm1612, %v1789, %v1793
        %v1795 = vshrl.u32 %v1584, 16
        %v1797 = vrot.slane %v1795, 4
        %v1798 = vor.u32 %v1797, %v1793
        %v1799 = vrot.slane %v1798, 4
        %v1801 = vshll.u32 %v1585, 16
        %v1803 = vrot.slane %v1801, 5
        %v1804 = vsel %vm1612, %v1799, %v1803
        %v1806 = vshrl.u32 %v1586, 16
        %v1808 = vrot.slane %v1806, 4
        %v1809 = vshll.u32 %v1586, 16
        %v1811 = vrot.slane %v1809, 5
        %v1812 = vor.u32 %v1808, %v1811
        %v1813 = vrot.slane %v1812, 4
        %v1815 = vshll.u32 %v1587, 16
        %v1817 = vrot.slane %v1815, 5
        %v1818 = vsel %vm1612, %v1813, %v1817
        %v1819 = vshrl.u32 %v1587, 16
        %v1821 = vrot.slane %v1819, 4
        %v1822 = vor.u32 %v1821, %v1817
        %v1823 = vrot.slane %v1822, 4
        %v1825 = vshll.u32 %v1588, 16
        %v1827 = vrot.slane %v1825, 5
        %v1828 = vsel %vm1612, %v1823, %v1827
        %v1830 = vshrl.u32 %v1589, 16
        %v1832 = vrot.slane %v1830, 4
        %v1833 = vshll.u32 %v1589, 16
        %v1835 = vrot.slane %v1833, 5
        %v1836 = vor.u32 %v1832, %v1835
        %v1837 = vrot.slane %v1836, 4
        %v1839 = vshll.u32 %v1590, 16
        %v1841 = vrot.slane %v1839, 5
        %v1842 = vsel %vm1612, %v1837, %v1841
        %v1843 = vshrl.u32 %v1590, 16
        %v1845 = vrot.slane %v1843, 4
        %v1846 = vor.u32 %v1845, %v1841
        %v1847 = vrot.slane %v1846, 4
        %v1849 = vshll.u32 %v1591, 16
        %v1851 = vrot.slane %v1849, 5
        %v1852 = vsel %vm1612, %v1847, %v1851
        %v1854 = vshrl.u32 %v1592, 16
        %v1856 = vrot.slane %v1854, 4
        %v1857 = vshll.u32 %v1592, 16
        %v1859 = vrot.slane %v1857, 5
        %v1860 = vor.u32 %v1856, %v1859
        %v1861 = vrot.slane %v1860, 4
        %v1863 = vshll.u32 %v1593, 16
        %v1865 = vrot.slane %v1863, 5
        %v1866 = vsel %vm1612, %v1861, %v1865
        %v1867 = vshrl.u32 %v1593, 16
        %v1869 = vrot.slane %v1867, 4
        %v1870 = vor.u32 %v1869, %v1865
        %v1871 = vrot.slane %v1870, 4
        %v1873 = vshll.u32 %v1594, 16
        %v1875 = vrot.slane %v1873, 5
        %v1876 = vsel %vm1612, %v1871, %v1875
        %v1878 = vshrl.u32 %v1595, 16
        %v1880 = vrot.slane %v1878, 4
        %v1881 = vshll.u32 %v1595, 16
        %v1883 = vrot.slane %v1881, 5
        %v1884 = vor.u32 %v1880, %v1883
        %v1885 = vrot.slane %v1884, 4
        %v1887 = vshll.u32 %v1596, 16
        %v1889 = vrot.slane %v1887, 5
        %v1890 = vsel %vm1612, %v1885, %v1889
        %v1891 = vshrl.u32 %v1596, 16
        %v1893 = vrot.slane %v1891, 4
        %v1894 = vor.u32 %v1893, %v1889
        %v1895 = vrot.slane %v1894, 4
        %v1897 = vshll.u32 %v1597, 16
        %v1899 = vrot.slane %v1897, 5
        %v1900 = vsel %vm1612, %v1895, %v1899
        %v1902 = vshrl.u32 %v1598, 16
        %v1904 = vrot.slane %v1902, 4
        %v1905 = vshll.u32 %v1598, 16
        %v1907 = vrot.slane %v1905, 5
        %v1908 = vor.u32 %v1904, %v1907
        %v1909 = vrot.slane %v1908, 4
        %v1911 = vshll.u32 %v1599, 16
        %v1913 = vrot.slane %v1911, 5
        %v1914 = vsel %vm1612, %v1909, %v1913
        %v1915 = vshrl.u32 %v1599, 16
        %v1917 = vrot.slane %v1915, 4
        %v1918 = vor.u32 %v1917, %v1913
        %v1919 = vrot.slane %v1918, 4
        %v1921 = vshll.u32 %v1600, 16
        %v1923 = vrot.slane %v1921, 5
        %v1924 = vsel %vm1612, %v1919, %v1923
        %v1926 = vshrl.u32 %v1601, 16
        %v1928 = vrot.slane %v1926, 4
        %v1929 = vshll.u32 %v1601, 16
        %v1931 = vrot.slane %v1929, 5
        %v1932 = vor.u32 %v1928, %v1931
        %v1933 = vrot.slane %v1932, 4
        %v1935 = vshll.u32 %v1602, 16
        %v1937 = vrot.slane %v1935, 5
        %v1938 = vsel %vm1612, %v1933, %v1937
        %v1939 = vshrl.u32 %v1602, 16
        %v1941 = vrot.slane %v1939, 4
        %v1942 = vor.u32 %v1941, %v1937
        %v1943 = vrot.slane %v1942, 4
        %v1945 = vshll.u32 %v1603, 16
        %v1947 = vrot.slane %v1945, 5
        %v1948 = vsel %vm1612, %v1943, %v1947
        %v1950 = vshrl.u32 %v1604, 16
        %v1952 = vrot.slane %v1950, 4
        %v1953 = vshll.u32 %v1604, 16
        %v1955 = vrot.slane %v1953, 5
        %v1956 = vor.u32 %v1952, %v1955
        %v1957 = vrot.slane %v1956, 4
        %v1959 = vshll.u32 %v1605, 16
        %v1961 = vrot.slane %v1959, 5
        %v1962 = vsel %vm1612, %v1957, %v1961
        %v1963 = vshrl.u32 %v1605, 16
        %v1965 = vrot.slane %v1963, 4
        %v1966 = vor.u32 %v1965, %v1961
        %v1967 = vrot.slane %v1966, 4
        %v1969 = vshll.u32 %v1606, 16
        %v1971 = vrot.slane %v1969, 5
        %v1972 = vsel %vm1612, %v1967, %v1971
        %v1974 = vshrl.u32 %v1607, 16
        %v1976 = vrot.slane %v1974, 4
        %v1977 = vshll.u32 %v1607, 16
        %v1979 = vrot.slane %v1977, 5
        %v1980 = vor.u32 %v1976, %v1979
        %v1981 = vrot.slane %v1980, 4
        %v1983 = vshll.u32 %v1608, 16
        %v1985 = vrot.slane %v1983, 5
        %v1986 = vsel %vm1612, %v1981, %v1985
        %v1987 = vshrl.u32 %v1608, 16
        %v1989 = vrot.slane %v1987, 4
        %v1990 = vor.u32 %v1989, %v1985
        %v1991 = vrot.slane %v1990, 4
        %v1993 = vshll.u32 %v1609, 16
        %v1995 = vrot.slane %v1993, 5
        %v1996 = vsel %vm1612, %v1991, %v1995
        %v1997 = vunpack.c.l.b16 %v1626
        %v1998 = vunpack.c.l.b16 %v1636
        %v1999 = vunpack.c.l.b16 %v1650
        %v2000 = vunpack.c.l.b16 %v1660
        %v2001 = vunpack.c.l.b16 %v1674
        %v2002 = vunpack.c.l.b16 %v1684
        %v2003 = vunpack.c.l.b16 %v1698
        %v2004 = vunpack.c.l.b16 %v1708
        %v2005 = vunpack.c.l.b16 %v1722
        %v2006 = vunpack.c.l.b16 %v1732
        %v2007 = vunpack.c.l.b16 %v1746
        %v2008 = vunpack.c.l.b16 %v1756
        %v2009 = vunpack.c.l.b16 %v1770
        %v2010 = vunpack.c.l.b16 %v1780
        %v2011 = vunpack.c.l.b16 %v1794
        %v2012 = vunpack.c.l.b16 %v1804
        %v2013 = vunpack.c.l.b16 %v1818
        %v2014 = vunpack.c.l.b16 %v1828
        %v2015 = vunpack.c.l.b16 %v1842
        %v2016 = vunpack.c.l.b16 %v1852
        %v2017 = vunpack.c.l.b16 %v1866
        %v2018 = vunpack.c.l.b16 %v1876
        %v2019 = vunpack.c.l.b16 %v1890
        %v2020 = vunpack.c.l.b16 %v1900
        %v2021 = vunpack.c.l.b16 %v1914
        %v2022 = vunpack.c.l.b16 %v1924
        %v2023 = vunpack.c.l.b16 %v1938
        %v2024 = vunpack.c.l.b16 %v1948
        %v2025 = vunpack.c.l.b16 %v1962
        %v2026 = vunpack.c.l.b16 %v1972
        %v2027 = vunpack.c.l.b16 %v1986
        %v2028 = vunpack.c.l.b16 %v1996
        %v2029 = vpack.c.b16 %v1998, %v1997
        %v2030 = vpack.c.b16 %v2000, %v1999
        %v2031 = vpack.c.b16 %v2002, %v2001
        %v2032 = vpack.c.b16 %v2004, %v2003
        %v2033 = vpack.c.b16 %v2006, %v2005
        %v2034 = vpack.c.b16 %v2008, %v2007
        %v2035 = vpack.c.b16 %v2010, %v2009
        %v2036 = vpack.c.b16 %v2012, %v2011
        %v2037 = vpack.c.b16 %v2014, %v2013
        %v2038 = vpack.c.b16 %v2016, %v2015
        %v2039 = vpack.c.b16 %v2018, %v2017
        %v2040 = vpack.c.b16 %v2020, %v2019
        %v2041 = vpack.c.b16 %v2022, %v2021
        %v2042 = vpack.c.b16 %v2024, %v2023
        %v2043 = vpack.c.b16 %v2026, %v2025
        %v2044 = vpack.c.b16 %v2028, %v2027
        %2061 = vst [vmem:[#allocation3 + $0x10] sm:$0xff] %v2029
        %2062 = vst [vmem:[#allocation3 + $0x58] sm:$0xff] %v2030
        %2063 = vst [vmem:[#allocation3 + $0xa0] sm:$0xff] %v2031
        %2064 = vst [vmem:[#allocation3 + $0xe8] sm:$0xff] %v2032
        %2065 = vst [vmem:[#allocation3 + $0x130] sm:$0xff] %v2033
        %2066 = vst [vmem:[#allocation3 + $0x178] sm:$0xff] %v2034
        %2067 = vst [vmem:[#allocation3 + $0x1c0] sm:$0xff] %v2035
        %2068 = vst [vmem:[#allocation3 + $0x208] sm:$0xff] %v2036
        %2069 = vst [vmem:[#allocation3 + $0x250] sm:$0xff] %v2037
        %2070 = vst [vmem:[#allocation3 + $0x298] sm:$0xff] %v2038
        %2071 = vst [vmem:[#allocation3 + $0x2e0] sm:$0xff] %v2039
        %2072 = vst [vmem:[#allocation3 + $0x328] sm:$0xff] %v2040
        %2073 = vst [vmem:[#allocation3 + $0x370] sm:$0xff] %v2041
        %2074 = vst [vmem:[#allocation3 + $0x3b8] sm:$0xff] %v2042
        %2075 = vst [vmem:[#allocation3 + $0x400] sm:$0xff] %v2043
        %2076 = vst [vmem:[#allocation3 + $0x448] sm:$0xff] %v2044
        %v2077 = vld [vmem:[%s903 + $0x4] sm:$0x8]
        %v2078 = vld [vmem:[%s903 + $0x8] sm:$0xf]
        %v2079 = vld [vmem:[%s903 + $0xc] sm:$0xf]
        %v2080 = vld [vmem:[%s903 + $0x18] sm:$0x8]
        %v2081 = vld [vmem:[%s903 + $0x1c] sm:$0xf]
        %v2082 = vld [vmem:[%s903 + $0x20] sm:$0xf]
        %v2083 = vld [vmem:[%s903 + $0x2c] sm:$0x8]
        %v2084 = vld [vmem:[%s903 + $0x30] sm:$0xf]
        %v2085 = vld [vmem:[%s903 + $0x34] sm:$0xf]
        %v2086 = vld [vmem:[%s903 + $0x40] sm:$0x8]
        %v2087 = vld [vmem:[%s903 + $0x44] sm:$0xf]
        %v2088 = vld [vmem:[%s903 + $0x48] sm:$0xf]
        %v2089 = vld [vmem:[%s903 + $0x54] sm:$0x8]
        %v2090 = vld [vmem:[%s903 + $0x58] sm:$0xf]
        %v2091 = vld [vmem:[%s903 + $0x5c] sm:$0xf]
        %v2092 = vld [vmem:[%s903 + $0x68] sm:$0x8]
        %v2093 = vld [vmem:[%s903 + $0x6c] sm:$0xf]
        %v2094 = vld [vmem:[%s903 + $0x70] sm:$0xf]
        %v2095 = vld [vmem:[%s903 + $0x7c] sm:$0x8]
        %v2096 = vld [vmem:[%s903 + $0x80] sm:$0xf]
        %v2097 = vld [vmem:[%s903 + $0x84] sm:$0xf]
        %v2098 = vld [vmem:[%s903 + $0x90] sm:$0x8]
        %v2099 = vld [vmem:[%s903 + $0x94] sm:$0xf]
        %v2100 = vld [vmem:[%s903 + $0x98] sm:$0xf]
        %v2101 = vld [vmem:[%s903 + $0xa4] sm:$0x8]
        %v2102 = vld [vmem:[%s903 + $0xa8] sm:$0xf]
        %v2103 = vld [vmem:[%s903 + $0xac] sm:$0xf]
        %v2104 = vld [vmem:[%s903 + $0xb8] sm:$0x8]
        %v2105 = vld [vmem:[%s903 + $0xbc] sm:$0xf]
        %v2106 = vld [vmem:[%s903 + $0xc0] sm:$0xf]
        %v2107 = vld [vmem:[%s903 + $0xcc] sm:$0x8]
        %v2108 = vld [vmem:[%s903 + $0xd0] sm:$0xf]
        %v2109 = vld [vmem:[%s903 + $0xd4] sm:$0xf]
        %v2110 = vld [vmem:[%s903 + $0xe0] sm:$0x8]
        %v2111 = vld [vmem:[%s903 + $0xe4] sm:$0xf]
        %v2112 = vld [vmem:[%s903 + $0xe8] sm:$0xf]
        %v2113 = vld [vmem:[%s903 + $0xf4] sm:$0x8]
        %v2114 = vld [vmem:[%s903 + $0xf8] sm:$0xf]
        %v2115 = vld [vmem:[%s903 + $0xfc] sm:$0xf]
        %v2116 = vld [vmem:[%s903 + $0x108] sm:$0x8]
        %v2117 = vld [vmem:[%s903 + $0x10c] sm:$0xf]
        %v2118 = vld [vmem:[%s903 + $0x110] sm:$0xf]
        %v2119 = vld [vmem:[%s903 + $0x11c] sm:$0x8]
        %v2120 = vld [vmem:[%s903 + $0x120] sm:$0xf]
        %v2121 = vld [vmem:[%s903 + $0x124] sm:$0xf]
        %v2122 = vld [vmem:[%s903 + $0x130] sm:$0x8]
        %v2123 = vld [vmem:[%s903 + $0x134] sm:$0xf]
        %v2124 = vld [vmem:[%s903 + $0x138] sm:$0xf]
        %v2126 = vshrl.u32 %v2077, 16
        %v2128 = vrot.slane %v2126, 7
        %v2129 = vrot.slane %v2128, 4
        %v2131 = vshrl.u32 %v2078, 16
        %v2133 = vrot.slane %v2131, 7
        %v2134 = vshll.u32 %v2078, 16
        %v2136 = vor.u32 %v2133, %v2134
        %v2137 = vsel %vm985, %v2129, %v2136
        %v2138 = vrot.slane %v2133, 4
        %v2140 = vshrl.u32 %v2079, 16
        %v2142 = vrot.slane %v2140, 7
        %v2143 = vshll.u32 %v2079, 16
        %v2145 = vor.u32 %v2142, %v2143
        %v2146 = vsel %vm985, %v2138, %v2145
        %v2148 = vshrl.u32 %v2080, 16
        %v2150 = vrot.slane %v2148, 7
        %v2151 = vrot.slane %v2150, 4
        %v2153 = vshrl.u32 %v2081, 16
        %v2155 = vrot.slane %v2153, 7
        %v2156 = vshll.u32 %v2081, 16
        %v2158 = vor.u32 %v2155, %v2156
        %v2159 = vsel %vm985, %v2151, %v2158
        %v2160 = vrot.slane %v2155, 4
        %v2162 = vshrl.u32 %v2082, 16
        %v2164 = vrot.slane %v2162, 7
        %v2165 = vshll.u32 %v2082, 16
        %v2167 = vor.u32 %v2164, %v2165
        %v2168 = vsel %vm985, %v2160, %v2167
        %v2170 = vshrl.u32 %v2083, 16
        %v2172 = vrot.slane %v2170, 7
        %v2173 = vrot.slane %v2172, 4
        %v2175 = vshrl.u32 %v2084, 16
        %v2177 = vrot.slane %v2175, 7
        %v2178 = vshll.u32 %v2084, 16
        %v2180 = vor.u32 %v2177, %v2178
        %v2181 = vsel %vm985, %v2173, %v2180
        %v2182 = vrot.slane %v2177, 4
        %v2184 = vshrl.u32 %v2085, 16
        %v2186 = vrot.slane %v2184, 7
        %v2187 = vshll.u32 %v2085, 16
        %v2189 = vor.u32 %v2186, %v2187
        %v2190 = vsel %vm985, %v2182, %v2189
        %v2192 = vshrl.u32 %v2086, 16
        %v2194 = vrot.slane %v2192, 7
        %v2195 = vrot.slane %v2194, 4
        %v2197 = vshrl.u32 %v2087, 16
        %v2199 = vrot.slane %v2197, 7
        %v2200 = vshll.u32 %v2087, 16
        %v2202 = vor.u32 %v2199, %v2200
        %v2203 = vsel %vm985, %v2195, %v2202
        %v2204 = vrot.slane %v2199, 4
        %v2206 = vshrl.u32 %v2088, 16
        %v2208 = vrot.slane %v2206, 7
        %v2209 = vshll.u32 %v2088, 16
        %v2211 = vor.u32 %v2208, %v2209
        %v2212 = vsel %vm985, %v2204, %v2211
        %v2214 = vshrl.u32 %v2089, 16
        %v2216 = vrot.slane %v2214, 7
        %v2217 = vrot.slane %v2216, 4
        %v2219 = vshrl.u32 %v2090, 16
        %v2221 = vrot.slane %v2219, 7
        %v2222 = vshll.u32 %v2090, 16
        %v2224 = vor.u32 %v2221, %v2222
        %v2225 = vsel %vm985, %v2217, %v2224
        %v2226 = vrot.slane %v2221, 4
        %v2228 = vshrl.u32 %v2091, 16
        %v2230 = vrot.slane %v2228, 7
        %v2231 = vshll.u32 %v2091, 16
        %v2233 = vor.u32 %v2230, %v2231
        %v2234 = vsel %vm985, %v2226, %v2233
        %v2236 = vshrl.u32 %v2092, 16
        %v2238 = vrot.slane %v2236, 7
        %v2239 = vrot.slane %v2238, 4
        %v2241 = vshrl.u32 %v2093, 16
        %v2243 = vrot.slane %v2241, 7
        %v2244 = vshll.u32 %v2093, 16
        %v2246 = vor.u32 %v2243, %v2244
        %v2247 = vsel %vm985, %v2239, %v2246
        %v2248 = vrot.slane %v2243, 4
        %v2250 = vshrl.u32 %v2094, 16
        %v2252 = vrot.slane %v2250, 7
        %v2253 = vshll.u32 %v2094, 16
        %v2255 = vor.u32 %v2252, %v2253
        %v2256 = vsel %vm985, %v2248, %v2255
        %v2258 = vshrl.u32 %v2095, 16
        %v2260 = vrot.slane %v2258, 7
        %v2261 = vrot.slane %v2260, 4
        %v2263 = vshrl.u32 %v2096, 16
        %v2265 = vrot.slane %v2263, 7
        %v2266 = vshll.u32 %v2096, 16
        %v2268 = vor.u32 %v2265, %v2266
        %v2269 = vsel %vm985, %v2261, %v2268
        %v2270 = vrot.slane %v2265, 4
        %v2272 = vshrl.u32 %v2097, 16
        %v2274 = vrot.slane %v2272, 7
        %v2275 = vshll.u32 %v2097, 16
        %v2277 = vor.u32 %v2274, %v2275
        %v2278 = vsel %vm985, %v2270, %v2277
        %v2280 = vshrl.u32 %v2098, 16
        %v2282 = vrot.slane %v2280, 7
        %v2283 = vrot.slane %v2282, 4
        %v2285 = vshrl.u32 %v2099, 16
        %v2287 = vrot.slane %v2285, 7
        %v2288 = vshll.u32 %v2099, 16
        %v2290 = vor.u32 %v2287, %v2288
        %v2291 = vsel %vm985, %v2283, %v2290
        %v2292 = vrot.slane %v2287, 4
        %v2294 = vshrl.u32 %v2100, 16
        %v2296 = vrot.slane %v2294, 7
        %v2297 = vshll.u32 %v2100, 16
        %v2299 = vor.u32 %v2296, %v2297
        %v2300 = vsel %vm985, %v2292, %v2299
        %v2302 = vshrl.u32 %v2101, 16
        %v2304 = vrot.slane %v2302, 7
        %v2305 = vrot.slane %v2304, 4
        %v2307 = vshrl.u32 %v2102, 16
        %v2309 = vrot.slane %v2307, 7
        %v2310 = vshll.u32 %v2102, 16
        %v2312 = vor.u32 %v2309, %v2310
        %v2313 = vsel %vm985, %v2305, %v2312
        %v2314 = vrot.slane %v2309, 4
        %v2316 = vshrl.u32 %v2103, 16
        %v2318 = vrot.slane %v2316, 7
        %v2319 = vshll.u32 %v2103, 16
        %v2321 = vor.u32 %v2318, %v2319
        %v2322 = vsel %vm985, %v2314, %v2321
        %v2324 = vshrl.u32 %v2104, 16
        %v2326 = vrot.slane %v2324, 7
        %v2327 = vrot.slane %v2326, 4
        %v2329 = vshrl.u32 %v2105, 16
        %v2331 = vrot.slane %v2329, 7
        %v2332 = vshll.u32 %v2105, 16
        %v2334 = vor.u32 %v2331, %v2332
        %v2335 = vsel %vm985, %v2327, %v2334
        %v2336 = vrot.slane %v2331, 4
        %v2338 = vshrl.u32 %v2106, 16
        %v2340 = vrot.slane %v2338, 7
        %v2341 = vshll.u32 %v2106, 16
        %v2343 = vor.u32 %v2340, %v2341
        %v2344 = vsel %vm985, %v2336, %v2343
        %v2346 = vshrl.u32 %v2107, 16
        %v2348 = vrot.slane %v2346, 7
        %v2349 = vrot.slane %v2348, 4
        %v2351 = vshrl.u32 %v2108, 16
        %v2353 = vrot.slane %v2351, 7
        %v2354 = vshll.u32 %v2108, 16
        %v2356 = vor.u32 %v2353, %v2354
        %v2357 = vsel %vm985, %v2349, %v2356
        %v2358 = vrot.slane %v2353, 4
        %v2360 = vshrl.u32 %v2109, 16
        %v2362 = vrot.slane %v2360, 7
        %v2363 = vshll.u32 %v2109, 16
        %v2365 = vor.u32 %v2362, %v2363
        %v2366 = vsel %vm985, %v2358, %v2365
        %v2368 = vshrl.u32 %v2110, 16
        %v2370 = vrot.slane %v2368, 7
        %v2371 = vrot.slane %v2370, 4
        %v2373 = vshrl.u32 %v2111, 16
        %v2375 = vrot.slane %v2373, 7
        %v2376 = vshll.u32 %v2111, 16
        %v2378 = vor.u32 %v2375, %v2376
        %v2379 = vsel %vm985, %v2371, %v2378
        %v2380 = vrot.slane %v2375, 4
        %v2382 = vshrl.u32 %v2112, 16
        %v2384 = vrot.slane %v2382, 7
        %v2385 = vshll.u32 %v2112, 16
        %v2387 = vor.u32 %v2384, %v2385
        %v2388 = vsel %vm985, %v2380, %v2387
        %v2390 = vshrl.u32 %v2113, 16
        %v2392 = vrot.slane %v2390, 7
        %v2393 = vrot.slane %v2392, 4
        %v2395 = vshrl.u32 %v2114, 16
        %v2397 = vrot.slane %v2395, 7
        %v2398 = vshll.u32 %v2114, 16
        %v2400 = vor.u32 %v2397, %v2398
        %v2401 = vsel %vm985, %v2393, %v2400
        %v2402 = vrot.slane %v2397, 4
        %v2404 = vshrl.u32 %v2115, 16
        %v2406 = vrot.slane %v2404, 7
        %v2407 = vshll.u32 %v2115, 16
        %v2409 = vor.u32 %v2406, %v2407
        %v2410 = vsel %vm985, %v2402, %v2409
        %v2412 = vshrl.u32 %v2116, 16
        %v2414 = vrot.slane %v2412, 7
        %v2415 = vrot.slane %v2414, 4
        %v2417 = vshrl.u32 %v2117, 16
        %v2419 = vrot.slane %v2417, 7
        %v2420 = vshll.u32 %v2117, 16
        %v2422 = vor.u32 %v2419, %v2420
        %v2423 = vsel %vm985, %v2415, %v2422
        %v2424 = vrot.slane %v2419, 4
        %v2426 = vshrl.u32 %v2118, 16
        %v2428 = vrot.slane %v2426, 7
        %v2429 = vshll.u32 %v2118, 16
        %v2431 = vor.u32 %v2428, %v2429
        %v2432 = vsel %vm985, %v2424, %v2431
        %v2434 = vshrl.u32 %v2119, 16
        %v2436 = vrot.slane %v2434, 7
        %v2437 = vrot.slane %v2436, 4
        %v2439 = vshrl.u32 %v2120, 16
        %v2441 = vrot.slane %v2439, 7
        %v2442 = vshll.u32 %v2120, 16
        %v2444 = vor.u32 %v2441, %v2442
        %v2445 = vsel %vm985, %v2437, %v2444
        %v2446 = vrot.slane %v2441, 4
        %v2448 = vshrl.u32 %v2121, 16
        %v2450 = vrot.slane %v2448, 7
        %v2451 = vshll.u32 %v2121, 16
        %v2453 = vor.u32 %v2450, %v2451
        %v2454 = vsel %vm985, %v2446, %v2453
        %v2456 = vshrl.u32 %v2122, 16
        %v2458 = vrot.slane %v2456, 7
        %v2459 = vrot.slane %v2458, 4
        %v2461 = vshrl.u32 %v2123, 16
        %v2463 = vrot.slane %v2461, 7
        %v2464 = vshll.u32 %v2123, 16
        %v2466 = vor.u32 %v2463, %v2464
        %v2467 = vsel %vm985, %v2459, %v2466
        %v2468 = vrot.slane %v2463, 4
        %v2470 = vshrl.u32 %v2124, 16
        %v2472 = vrot.slane %v2470, 7
        %v2473 = vshll.u32 %v2124, 16
        %v2475 = vor.u32 %v2472, %v2473
        %v2476 = vsel %vm985, %v2468, %v2475
        %v2477 = vunpack.c.l.b16 %v2137
        %v2478 = vunpack.c.l.b16 %v2146
        %v2479 = vunpack.c.l.b16 %v2159
        %v2480 = vunpack.c.l.b16 %v2168
        %v2481 = vunpack.c.l.b16 %v2181
        %v2482 = vunpack.c.l.b16 %v2190
        %v2483 = vunpack.c.l.b16 %v2203
        %v2484 = vunpack.c.l.b16 %v2212
        %v2485 = vunpack.c.l.b16 %v2225
        %v2486 = vunpack.c.l.b16 %v2234
        %v2487 = vunpack.c.l.b16 %v2247
        %v2488 = vunpack.c.l.b16 %v2256
        %v2489 = vunpack.c.l.b16 %v2269
        %v2490 = vunpack.c.l.b16 %v2278
        %v2491 = vunpack.c.l.b16 %v2291
        %v2492 = vunpack.c.l.b16 %v2300
        %v2493 = vunpack.c.l.b16 %v2313
        %v2494 = vunpack.c.l.b16 %v2322
        %v2495 = vunpack.c.l.b16 %v2335
        %v2496 = vunpack.c.l.b16 %v2344
        %v2497 = vunpack.c.l.b16 %v2357
        %v2498 = vunpack.c.l.b16 %v2366
        %v2499 = vunpack.c.l.b16 %v2379
        %v2500 = vunpack.c.l.b16 %v2388
        %v2501 = vunpack.c.l.b16 %v2401
        %v2502 = vunpack.c.l.b16 %v2410
        %v2503 = vunpack.c.l.b16 %v2423
        %v2504 = vunpack.c.l.b16 %v2432
        %v2505 = vunpack.c.l.b16 %v2445
        %v2506 = vunpack.c.l.b16 %v2454
        %v2507 = vunpack.c.l.b16 %v2467
        %v2508 = vunpack.c.l.b16 %v2476
        %v2509 = vpack.c.b16 %v2478, %v2477
        %v2510 = vpack.c.b16 %v2480, %v2479
        %v2511 = vpack.c.b16 %v2482, %v2481
        %v2512 = vpack.c.b16 %v2484, %v2483
        %v2513 = vpack.c.b16 %v2486, %v2485
        %v2514 = vpack.c.b16 %v2488, %v2487
        %v2515 = vpack.c.b16 %v2490, %v2489
        %v2516 = vpack.c.b16 %v2492, %v2491
        %v2517 = vpack.c.b16 %v2494, %v2493
        %v2518 = vpack.c.b16 %v2496, %v2495
        %v2519 = vpack.c.b16 %v2498, %v2497
        %v2520 = vpack.c.b16 %v2500, %v2499
        %v2521 = vpack.c.b16 %v2502, %v2501
        %v2522 = vpack.c.b16 %v2504, %v2503
        %v2523 = vpack.c.b16 %v2506, %v2505
        %v2524 = vpack.c.b16 %v2508, %v2507
        %2541 = vst [vmem:[#allocation3 + $0x18] sm:$0xff] %v2509
        %2542 = vst [vmem:[#allocation3 + $0x60] sm:$0xff] %v2510
        %2543 = vst [vmem:[#allocation3 + $0xa8] sm:$0xff] %v2511
        %2544 = vst [vmem:[#allocation3 + $0xf0] sm:$0xff] %v2512
        %2545 = vst [vmem:[#allocation3 + $0x138] sm:$0xff] %v2513
        %2546 = vst [vmem:[#allocation3 + $0x180] sm:$0xff] %v2514
        %2547 = vst [vmem:[#allocation3 + $0x1c8] sm:$0xff] %v2515
        %2548 = vst [vmem:[#allocation3 + $0x210] sm:$0xff] %v2516
        %2549 = vst [vmem:[#allocation3 + $0x258] sm:$0xff] %v2517
        %2550 = vst [vmem:[#allocation3 + $0x2a0] sm:$0xff] %v2518
        %2551 = vst [vmem:[#allocation3 + $0x2e8] sm:$0xff] %v2519
        %2552 = vst [vmem:[#allocation3 + $0x330] sm:$0xff] %v2520
        %2553 = vst [vmem:[#allocation3 + $0x378] sm:$0xff] %v2521
        %2554 = vst [vmem:[#allocation3 + $0x3c0] sm:$0xff] %v2522
        %2555 = vst [vmem:[#allocation3 + $0x408] sm:$0xff] %v2523
        %2556 = vst [vmem:[#allocation3 + $0x450] sm:$0xff] %v2524
        %v2557 = vld [vmem:[%s903 + $0x8] sm:$0xf]
        %v2558 = vld [vmem:[%s903 + $0xc] sm:$0xf]
        %v2559 = vld [vmem:[%s903 + $0x1c] sm:$0xf]
        %v2560 = vld [vmem:[%s903 + $0x20] sm:$0xf]
        %v2561 = vld [vmem:[%s903 + $0x30] sm:$0xf]
        %v2562 = vld [vmem:[%s903 + $0x34] sm:$0xf]
        %v2563 = vld [vmem:[%s903 + $0x44] sm:$0xf]
        %v2564 = vld [vmem:[%s903 + $0x48] sm:$0xf]
        %v2565 = vld [vmem:[%s903 + $0x58] sm:$0xf]
        %v2566 = vld [vmem:[%s903 + $0x5c] sm:$0xf]
        %v2567 = vld [vmem:[%s903 + $0x6c] sm:$0xf]
        %v2568 = vld [vmem:[%s903 + $0x70] sm:$0xf]
        %v2569 = vld [vmem:[%s903 + $0x80] sm:$0xf]
        %v2570 = vld [vmem:[%s903 + $0x84] sm:$0xf]
        %v2571 = vld [vmem:[%s903 + $0x94] sm:$0xf]
        %v2572 = vld [vmem:[%s903 + $0x98] sm:$0xf]
        %v2573 = vld [vmem:[%s903 + $0xa8] sm:$0xf]
        %v2574 = vld [vmem:[%s903 + $0xac] sm:$0xf]
        %v2575 = vld [vmem:[%s903 + $0xbc] sm:$0xf]
        %v2576 = vld [vmem:[%s903 + $0xc0] sm:$0xf]
        %v2577 = vld [vmem:[%s903 + $0xd0] sm:$0xf]
        %v2578 = vld [vmem:[%s903 + $0xd4] sm:$0xf]
        %v2579 = vld [vmem:[%s903 + $0xe4] sm:$0xf]
        %v2580 = vld [vmem:[%s903 + $0xe8] sm:$0xf]
        %v2581 = vld [vmem:[%s903 + $0xf8] sm:$0xf]
        %v2582 = vld [vmem:[%s903 + $0xfc] sm:$0xf]
        %v2583 = vld [vmem:[%s903 + $0x10c] sm:$0xf]
        %v2584 = vld [vmem:[%s903 + $0x110] sm:$0xf]
        %v2585 = vld [vmem:[%s903 + $0x120] sm:$0xf]
        %v2586 = vld [vmem:[%s903 + $0x124] sm:$0xf]
        %v2587 = vld [vmem:[%s903 + $0x134] sm:$0xf]
        %v2588 = vld [vmem:[%s903 + $0x138] sm:$0xf]
        %v2621 = vunpack.c.l.b16 %v2557
        %v2622 = vunpack.c.l.b16 %v2558
        %v2623 = vunpack.c.l.b16 %v2559
        %v2624 = vunpack.c.l.b16 %v2560
        %v2625 = vunpack.c.l.b16 %v2561
        %v2626 = vunpack.c.l.b16 %v2562
        %v2627 = vunpack.c.l.b16 %v2563
        %v2628 = vunpack.c.l.b16 %v2564
        %v2629 = vunpack.c.l.b16 %v2565
        %v2630 = vunpack.c.l.b16 %v2566
        %v2631 = vunpack.c.l.b16 %v2567
        %v2632 = vunpack.c.l.b16 %v2568
        %v2633 = vunpack.c.l.b16 %v2569
        %v2634 = vunpack.c.l.b16 %v2570
        %v2635 = vunpack.c.l.b16 %v2571
        %v2636 = vunpack.c.l.b16 %v2572
        %v2637 = vunpack.c.l.b16 %v2573
        %v2638 = vunpack.c.l.b16 %v2574
        %v2639 = vunpack.c.l.b16 %v2575
        %v2640 = vunpack.c.l.b16 %v2576
        %v2641 = vunpack.c.l.b16 %v2577
        %v2642 = vunpack.c.l.b16 %v2578
        %v2643 = vunpack.c.l.b16 %v2579
        %v2644 = vunpack.c.l.b16 %v2580
        %v2645 = vunpack.c.l.b16 %v2581
        %v2646 = vunpack.c.l.b16 %v2582
        %v2647 = vunpack.c.l.b16 %v2583
        %v2648 = vunpack.c.l.b16 %v2584
        %v2649 = vunpack.c.l.b16 %v2585
        %v2650 = vunpack.c.l.b16 %v2586
        %v2651 = vunpack.c.l.b16 %v2587
        %v2652 = vunpack.c.l.b16 %v2588
        %v2653 = vpack.c.b16 %v2622, %v2621
        %v2654 = vpack.c.b16 %v2624, %v2623
        %v2655 = vpack.c.b16 %v2626, %v2625
        %v2656 = vpack.c.b16 %v2628, %v2627
        %v2657 = vpack.c.b16 %v2630, %v2629
        %v2658 = vpack.c.b16 %v2632, %v2631
        %v2659 = vpack.c.b16 %v2634, %v2633
        %v2660 = vpack.c.b16 %v2636, %v2635
        %v2661 = vpack.c.b16 %v2638, %v2637
        %v2662 = vpack.c.b16 %v2640, %v2639
        %v2663 = vpack.c.b16 %v2642, %v2641
        %v2664 = vpack.c.b16 %v2644, %v2643
        %v2665 = vpack.c.b16 %v2646, %v2645
        %v2666 = vpack.c.b16 %v2648, %v2647
        %v2667 = vpack.c.b16 %v2650, %v2649
        %v2668 = vpack.c.b16 %v2652, %v2651
        %2685 = vst [vmem:[#allocation3 + $0x20] sm:$0xff] %v2653
        %2686 = vst [vmem:[#allocation3 + $0x68] sm:$0xff] %v2654
        %2687 = vst [vmem:[#allocation3 + $0xb0] sm:$0xff] %v2655
        %2688 = vst [vmem:[#allocation3 + $0xf8] sm:$0xff] %v2656
        %2689 = vst [vmem:[#allocation3 + $0x140] sm:$0xff] %v2657
        %2690 = vst [vmem:[#allocation3 + $0x188] sm:$0xff] %v2658
        %2691 = vst [vmem:[#allocation3 + $0x1d0] sm:$0xff] %v2659
        %2692 = vst [vmem:[#allocation3 + $0x218] sm:$0xff] %v2660
        %2693 = vst [vmem:[#allocation3 + $0x260] sm:$0xff] %v2661
        %2694 = vst [vmem:[#allocation3 + $0x2a8] sm:$0xff] %v2662
        %2695 = vst [vmem:[#allocation3 + $0x2f0] sm:$0xff] %v2663
        %2696 = vst [vmem:[#allocation3 + $0x338] sm:$0xff] %v2664
        %2697 = vst [vmem:[#allocation3 + $0x380] sm:$0xff] %v2665
        %2698 = vst [vmem:[#allocation3 + $0x3c8] sm:$0xff] %v2666
        %2699 = vst [vmem:[#allocation3 + $0x410] sm:$0xff] %v2667
        %2700 = vst [vmem:[#allocation3 + $0x458] sm:$0xff] %v2668
        %v2701 = vld [vmem:[%s903 + $0x8] sm:$0xf]
        %v2702 = vld [vmem:[%s903 + $0xc] sm:$0xf]
        %v2703 = vld [vmem:[%s903 + $0x10] sm:$0x1]
        %v2704 = vld [vmem:[%s903 + $0x1c] sm:$0xf]
        %v2705 = vld [vmem:[%s903 + $0x20] sm:$0xf]
        %v2706 = vld [vmem:[%s903 + $0x24] sm:$0x1]
        %v2707 = vld [vmem:[%s903 + $0x30] sm:$0xf]
        %v2708 = vld [vmem:[%s903 + $0x34] sm:$0xf]
        %v2709 = vld [vmem:[%s903 + $0x38] sm:$0x1]
        %v2710 = vld [vmem:[%s903 + $0x44] sm:$0xf]
        %v2711 = vld [vmem:[%s903 + $0x48] sm:$0xf]
        %v2712 = vld [vmem:[%s903 + $0x4c] sm:$0x1]
        %v2713 = vld [vmem:[%s903 + $0x58] sm:$0xf]
        %v2714 = vld [vmem:[%s903 + $0x5c] sm:$0xf]
        %v2715 = vld [vmem:[%s903 + $0x60] sm:$0x1]
        %v2716 = vld [vmem:[%s903 + $0x6c] sm:$0xf]
        %v2717 = vld [vmem:[%s903 + $0x70] sm:$0xf]
        %v2718 = vld [vmem:[%s903 + $0x74] sm:$0x1]
        %v2719 = vld [vmem:[%s903 + $0x80] sm:$0xf]
        %v2720 = vld [vmem:[%s903 + $0x84] sm:$0xf]
        %v2721 = vld [vmem:[%s903 + $0x88] sm:$0x1]
        %v2722 = vld [vmem:[%s903 + $0x94] sm:$0xf]
        %v2723 = vld [vmem:[%s903 + $0x98] sm:$0xf]
        %v2724 = vld [vmem:[%s903 + $0x9c] sm:$0x1]
        %v2725 = vld [vmem:[%s903 + $0xa8] sm:$0xf]
        %v2726 = vld [vmem:[%s903 + $0xac] sm:$0xf]
        %v2727 = vld [vmem:[%s903 + $0xb0] sm:$0x1]
        %v2728 = vld [vmem:[%s903 + $0xbc] sm:$0xf]
        %v2729 = vld [vmem:[%s903 + $0xc0] sm:$0xf]
        %v2730 = vld [vmem:[%s903 + $0xc4] sm:$0x1]
        %v2731 = vld [vmem:[%s903 + $0xd0] sm:$0xf]
        %v2732 = vld [vmem:[%s903 + $0xd4] sm:$0xf]
        %v2733 = vld [vmem:[%s903 + $0xd8] sm:$0x1]
        %v2734 = vld [vmem:[%s903 + $0xe4] sm:$0xf]
        %v2735 = vld [vmem:[%s903 + $0xe8] sm:$0xf]
        %v2736 = vld [vmem:[%s903 + $0xec] sm:$0x1]
        %v2737 = vld [vmem:[%s903 + $0xf8] sm:$0xf]
        %v2738 = vld [vmem:[%s903 + $0xfc] sm:$0xf]
        %v2739 = vld [vmem:[%s903 + $0x100] sm:$0x1]
        %v2740 = vld [vmem:[%s903 + $0x10c] sm:$0xf]
        %v2741 = vld [vmem:[%s903 + $0x110] sm:$0xf]
        %v2742 = vld [vmem:[%s903 + $0x114] sm:$0x1]
        %v2743 = vld [vmem:[%s903 + $0x120] sm:$0xf]
        %v2744 = vld [vmem:[%s903 + $0x124] sm:$0xf]
        %v2745 = vld [vmem:[%s903 + $0x128] sm:$0x1]
        %v2746 = vld [vmem:[%s903 + $0x134] sm:$0xf]
        %v2747 = vld [vmem:[%s903 + $0x138] sm:$0xf]
        %v2748 = vld [vmem:[%s903 + $0x13c] sm:$0x1]
        %v2750 = vshrl.u32 %v2701, 16
        %v2752 = vrot.slane %v2750, 4
        %v2753 = vshll.u32 %v2701, 16
        %v2755 = vrot.slane %v2753, 5
        %v2756 = vor.u32 %v2752, %v2755
        %v2757 = vrot.slane %v2756, 4
        %v2759 = vshll.u32 %v2702, 16
        %v2761 = vrot.slane %v2759, 5
        %v2762 = vsel %vm1612, %v2757, %v2761
        %v2763 = vshrl.u32 %v2702, 16
        %v2765 = vrot.slane %v2763, 4
        %v2766 = vor.u32 %v2765, %v2761
        %v2767 = vrot.slane %v2766, 4
        %v2769 = vshll.u32 %v2703, 16
        %v2771 = vrot.slane %v2769, 5
        %v2772 = vsel %vm1612, %v2767, %v2771
        %v2774 = vshrl.u32 %v2704, 16
        %v2776 = vrot.slane %v2774, 4
        %v2777 = vshll.u32 %v2704, 16
        %v2779 = vrot.slane %v2777, 5
        %v2780 = vor.u32 %v2776, %v2779
        %v2781 = vrot.slane %v2780, 4
        %v2783 = vshll.u32 %v2705, 16
        %v2785 = vrot.slane %v2783, 5
        %v2786 = vsel %vm1612, %v2781, %v2785
        %v2787 = vshrl.u32 %v2705, 16
        %v2789 = vrot.slane %v2787, 4
        %v2790 = vor.u32 %v2789, %v2785
        %v2791 = vrot.slane %v2790, 4
        %v2793 = vshll.u32 %v2706, 16
        %v2795 = vrot.slane %v2793, 5
        %v2796 = vsel %vm1612, %v2791, %v2795
        %v2798 = vshrl.u32 %v2707, 16
        %v2800 = vrot.slane %v2798, 4
        %v2801 = vshll.u32 %v2707, 16
        %v2803 = vrot.slane %v2801, 5
        %v2804 = vor.u32 %v2800, %v2803
        %v2805 = vrot.slane %v2804, 4
        %v2807 = vshll.u32 %v2708, 16
        %v2809 = vrot.slane %v2807, 5
        %v2810 = vsel %vm1612, %v2805, %v2809
        %v2811 = vshrl.u32 %v2708, 16
        %v2813 = vrot.slane %v2811, 4
        %v2814 = vor.u32 %v2813, %v2809
        %v2815 = vrot.slane %v2814, 4
        %v2817 = vshll.u32 %v2709, 16
        %v2819 = vrot.slane %v2817, 5
        %v2820 = vsel %vm1612, %v2815, %v2819
        %v2822 = vshrl.u32 %v2710, 16
        %v2824 = vrot.slane %v2822, 4
        %v2825 = vshll.u32 %v2710, 16
        %v2827 = vrot.slane %v2825, 5
        %v2828 = vor.u32 %v2824, %v2827
        %v2829 = vrot.slane %v2828, 4
        %v2831 = vshll.u32 %v2711, 16
        %v2833 = vrot.slane %v2831, 5
        %v2834 = vsel %vm1612, %v2829, %v2833
        %v2835 = vshrl.u32 %v2711, 16
        %v2837 = vrot.slane %v2835, 4
        %v2838 = vor.u32 %v2837, %v2833
        %v2839 = vrot.slane %v2838, 4
        %v2841 = vshll.u32 %v2712, 16
        %v2843 = vrot.slane %v2841, 5
        %v2844 = vsel %vm1612, %v2839, %v2843
        %v2846 = vshrl.u32 %v2713, 16
        %v2848 = vrot.slane %v2846, 4
        %v2849 = vshll.u32 %v2713, 16
        %v2851 = vrot.slane %v2849, 5
        %v2852 = vor.u32 %v2848, %v2851
        %v2853 = vrot.slane %v2852, 4
        %v2855 = vshll.u32 %v2714, 16
        %v2857 = vrot.slane %v2855, 5
        %v2858 = vsel %vm1612, %v2853, %v2857
        %v2859 = vshrl.u32 %v2714, 16
        %v2861 = vrot.slane %v2859, 4
        %v2862 = vor.u32 %v2861, %v2857
        %v2863 = vrot.slane %v2862, 4
        %v2865 = vshll.u32 %v2715, 16
        %v2867 = vrot.slane %v2865, 5
        %v2868 = vsel %vm1612, %v2863, %v2867
        %v2870 = vshrl.u32 %v2716, 16
        %v2872 = vrot.slane %v2870, 4
        %v2873 = vshll.u32 %v2716, 16
        %v2875 = vrot.slane %v2873, 5
        %v2876 = vor.u32 %v2872, %v2875
        %v2877 = vrot.slane %v2876, 4
        %v2879 = vshll.u32 %v2717, 16
        %v2881 = vrot.slane %v2879, 5
        %v2882 = vsel %vm1612, %v2877, %v2881
        %v2883 = vshrl.u32 %v2717, 16
        %v2885 = vrot.slane %v2883, 4
        %v2886 = vor.u32 %v2885, %v2881
        %v2887 = vrot.slane %v2886, 4
        %v2889 = vshll.u32 %v2718, 16
        %v2891 = vrot.slane %v2889, 5
        %v2892 = vsel %vm1612, %v2887, %v2891
        %v2894 = vshrl.u32 %v2719, 16
        %v2896 = vrot.slane %v2894, 4
        %v2897 = vshll.u32 %v2719, 16
        %v2899 = vrot.slane %v2897, 5
        %v2900 = vor.u32 %v2896, %v2899
        %v2901 = vrot.slane %v2900, 4
        %v2903 = vshll.u32 %v2720, 16
        %v2905 = vrot.slane %v2903, 5
        %v2906 = vsel %vm1612, %v2901, %v2905
        %v2907 = vshrl.u32 %v2720, 16
        %v2909 = vrot.slane %v2907, 4
        %v2910 = vor.u32 %v2909, %v2905
        %v2911 = vrot.slane %v2910, 4
        %v2913 = vshll.u32 %v2721, 16
        %v2915 = vrot.slane %v2913, 5
        %v2916 = vsel %vm1612, %v2911, %v2915
        %v2918 = vshrl.u32 %v2722, 16
        %v2920 = vrot.slane %v2918, 4
        %v2921 = vshll.u32 %v2722, 16
        %v2923 = vrot.slane %v2921, 5
        %v2924 = vor.u32 %v2920, %v2923
        %v2925 = vrot.slane %v2924, 4
        %v2927 = vshll.u32 %v2723, 16
        %v2929 = vrot.slane %v2927, 5
        %v2930 = vsel %vm1612, %v2925, %v2929
        %v2931 = vshrl.u32 %v2723, 16
        %v2933 = vrot.slane %v2931, 4
        %v2934 = vor.u32 %v2933, %v2929
        %v2935 = vrot.slane %v2934, 4
        %v2937 = vshll.u32 %v2724, 16
        %v2939 = vrot.slane %v2937, 5
        %v2940 = vsel %vm1612, %v2935, %v2939
        %v2942 = vshrl.u32 %v2725, 16
        %v2944 = vrot.slane %v2942, 4
        %v2945 = vshll.u32 %v2725, 16
        %v2947 = vrot.slane %v2945, 5
        %v2948 = vor.u32 %v2944, %v2947
        %v2949 = vrot.slane %v2948, 4
        %v2951 = vshll.u32 %v2726, 16
        %v2953 = vrot.slane %v2951, 5
        %v2954 = vsel %vm1612, %v2949, %v2953
        %v2955 = vshrl.u32 %v2726, 16
        %v2957 = vrot.slane %v2955, 4
        %v2958 = vor.u32 %v2957, %v2953
        %v2959 = vrot.slane %v2958, 4
        %v2961 = vshll.u32 %v2727, 16
        %v2963 = vrot.slane %v2961, 5
        %v2964 = vsel %vm1612, %v2959, %v2963
        %v2966 = vshrl.u32 %v2728, 16
        %v2968 = vrot.slane %v2966, 4
        %v2969 = vshll.u32 %v2728, 16
        %v2971 = vrot.slane %v2969, 5
        %v2972 = vor.u32 %v2968, %v2971
        %v2973 = vrot.slane %v2972, 4
        %v2975 = vshll.u32 %v2729, 16
        %v2977 = vrot.slane %v2975, 5
        %v2978 = vsel %vm1612, %v2973, %v2977
        %v2979 = vshrl.u32 %v2729, 16
        %v2981 = vrot.slane %v2979, 4
        %v2982 = vor.u32 %v2981, %v2977
        %v2983 = vrot.slane %v2982, 4
        %v2985 = vshll.u32 %v2730, 16
        %v2987 = vrot.slane %v2985, 5
        %v2988 = vsel %vm1612, %v2983, %v2987
        %v2990 = vshrl.u32 %v2731, 16
        %v2992 = vrot.slane %v2990, 4
        %v2993 = vshll.u32 %v2731, 16
        %v2995 = vrot.slane %v2993, 5
        %v2996 = vor.u32 %v2992, %v2995
        %v2997 = vrot.slane %v2996, 4
        %v2999 = vshll.u32 %v2732, 16
        %v3001 = vrot.slane %v2999, 5
        %v3002 = vsel %vm1612, %v2997, %v3001
        %v3003 = vshrl.u32 %v2732, 16
        %v3005 = vrot.slane %v3003, 4
        %v3006 = vor.u32 %v3005, %v3001
        %v3007 = vrot.slane %v3006, 4
        %v3009 = vshll.u32 %v2733, 16
        %v3011 = vrot.slane %v3009, 5
        %v3012 = vsel %vm1612, %v3007, %v3011
        %v3014 = vshrl.u32 %v2734, 16
        %v3016 = vrot.slane %v3014, 4
        %v3017 = vshll.u32 %v2734, 16
        %v3019 = vrot.slane %v3017, 5
        %v3020 = vor.u32 %v3016, %v3019
        %v3021 = vrot.slane %v3020, 4
        %v3023 = vshll.u32 %v2735, 16
        %v3025 = vrot.slane %v3023, 5
        %v3026 = vsel %vm1612, %v3021, %v3025
        %v3027 = vshrl.u32 %v2735, 16
        %v3029 = vrot.slane %v3027, 4
        %v3030 = vor.u32 %v3029, %v3025
        %v3031 = vrot.slane %v3030, 4
        %v3033 = vshll.u32 %v2736, 16
        %v3035 = vrot.slane %v3033, 5
        %v3036 = vsel %vm1612, %v3031, %v3035
        %v3038 = vshrl.u32 %v2737, 16
        %v3040 = vrot.slane %v3038, 4
        %v3041 = vshll.u32 %v2737, 16
        %v3043 = vrot.slane %v3041, 5
        %v3044 = vor.u32 %v3040, %v3043
        %v3045 = vrot.slane %v3044, 4
        %v3047 = vshll.u32 %v2738, 16
        %v3049 = vrot.slane %v3047, 5
        %v3050 = vsel %vm1612, %v3045, %v3049
        %v3051 = vshrl.u32 %v2738, 16
        %v3053 = vrot.slane %v3051, 4
        %v3054 = vor.u32 %v3053, %v3049
        %v3055 = vrot.slane %v3054, 4
        %v3057 = vshll.u32 %v2739, 16
        %v3059 = vrot.slane %v3057, 5
        %v3060 = vsel %vm1612, %v3055, %v3059
        %v3062 = vshrl.u32 %v2740, 16
        %v3064 = vrot.slane %v3062, 4
        %v3065 = vshll.u32 %v2740, 16
        %v3067 = vrot.slane %v3065, 5
        %v3068 = vor.u32 %v3064, %v3067
        %v3069 = vrot.slane %v3068, 4
        %v3071 = vshll.u32 %v2741, 16
        %v3073 = vrot.slane %v3071, 5
        %v3074 = vsel %vm1612, %v3069, %v3073
        %v3075 = vshrl.u32 %v2741, 16
        %v3077 = vrot.slane %v3075, 4
        %v3078 = vor.u32 %v3077, %v3073
        %v3079 = vrot.slane %v3078, 4
        %v3081 = vshll.u32 %v2742, 16
        %v3083 = vrot.slane %v3081, 5
        %v3084 = vsel %vm1612, %v3079, %v3083
        %v3086 = vshrl.u32 %v2743, 16
        %v3088 = vrot.slane %v3086, 4
        %v3089 = vshll.u32 %v2743, 16
        %v3091 = vrot.slane %v3089, 5
        %v3092 = vor.u32 %v3088, %v3091
        %v3093 = vrot.slane %v3092, 4
        %v3095 = vshll.u32 %v2744, 16
        %v3097 = vrot.slane %v3095, 5
        %v3098 = vsel %vm1612, %v3093, %v3097
        %v3099 = vshrl.u32 %v2744, 16
        %v3101 = vrot.slane %v3099, 4
        %v3102 = vor.u32 %v3101, %v3097
        %v3103 = vrot.slane %v3102, 4
        %v3105 = vshll.u32 %v2745, 16
        %v3107 = vrot.slane %v3105, 5
        %v3108 = vsel %vm1612, %v3103, %v3107
        %v3110 = vshrl.u32 %v2746, 16
        %v3112 = vrot.slane %v3110, 4
        %v3113 = vshll.u32 %v2746, 16
        %v3115 = vrot.slane %v3113, 5
        %v3116 = vor.u32 %v3112, %v3115
        %v3117 = vrot.slane %v3116, 4
        %v3119 = vshll.u32 %v2747, 16
        %v3121 = vrot.slane %v3119, 5
        %v3122 = vsel %vm1612, %v3117, %v3121
        %v3123 = vshrl.u32 %v2747, 16
        %v3125 = vrot.slane %v3123, 4
        %v3126 = vor.u32 %v3125, %v3121
        %v3127 = vrot.slane %v3126, 4
        %v3129 = vshll.u32 %v2748, 16
        %v3131 = vrot.slane %v3129, 5
        %v3132 = vsel %vm1612, %v3127, %v3131
        %v3133 = vunpack.c.l.b16 %v2762
        %v3134 = vunpack.c.l.b16 %v2772
        %v3135 = vunpack.c.l.b16 %v2786
        %v3136 = vunpack.c.l.b16 %v2796
        %v3137 = vunpack.c.l.b16 %v2810
        %v3138 = vunpack.c.l.b16 %v2820
        %v3139 = vunpack.c.l.b16 %v2834
        %v3140 = vunpack.c.l.b16 %v2844
        %v3141 = vunpack.c.l.b16 %v2858
        %v3142 = vunpack.c.l.b16 %v2868
        %v3143 = vunpack.c.l.b16 %v2882
        %v3144 = vunpack.c.l.b16 %v2892
        %v3145 = vunpack.c.l.b16 %v2906
        %v3146 = vunpack.c.l.b16 %v2916
        %v3147 = vunpack.c.l.b16 %v2930
        %v3148 = vunpack.c.l.b16 %v2940
        %v3149 = vunpack.c.l.b16 %v2954
        %v3150 = vunpack.c.l.b16 %v2964
        %v3151 = vunpack.c.l.b16 %v2978
        %v3152 = vunpack.c.l.b16 %v2988
        %v3153 = vunpack.c.l.b16 %v3002
        %v3154 = vunpack.c.l.b16 %v3012
        %v3155 = vunpack.c.l.b16 %v3026
        %v3156 = vunpack.c.l.b16 %v3036
        %v3157 = vunpack.c.l.b16 %v3050
        %v3158 = vunpack.c.l.b16 %v3060
        %v3159 = vunpack.c.l.b16 %v3074
        %v3160 = vunpack.c.l.b16 %v3084
        %v3161 = vunpack.c.l.b16 %v3098
        %v3162 = vunpack.c.l.b16 %v3108
        %v3163 = vunpack.c.l.b16 %v3122
        %v3164 = vunpack.c.l.b16 %v3132
        %v3165 = vpack.c.b16 %v3134, %v3133
        %v3166 = vpack.c.b16 %v3136, %v3135
        %v3167 = vpack.c.b16 %v3138, %v3137
        %v3168 = vpack.c.b16 %v3140, %v3139
        %v3169 = vpack.c.b16 %v3142, %v3141
        %v3170 = vpack.c.b16 %v3144, %v3143
        %v3171 = vpack.c.b16 %v3146, %v3145
        %v3172 = vpack.c.b16 %v3148, %v3147
        %v3173 = vpack.c.b16 %v3150, %v3149
        %v3174 = vpack.c.b16 %v3152, %v3151
        %v3175 = vpack.c.b16 %v3154, %v3153
        %v3176 = vpack.c.b16 %v3156, %v3155
        %v3177 = vpack.c.b16 %v3158, %v3157
        %v3178 = vpack.c.b16 %v3160, %v3159
        %v3179 = vpack.c.b16 %v3162, %v3161
        %v3180 = vpack.c.b16 %v3164, %v3163
        %3197 = vst [vmem:[#allocation3 + $0x28] sm:$0xff] %v3165
        %3198 = vst [vmem:[#allocation3 + $0x70] sm:$0xff] %v3166
        %3199 = vst [vmem:[#allocation3 + $0xb8] sm:$0xff] %v3167
        %3200 = vst [vmem:[#allocation3 + $0x100] sm:$0xff] %v3168
        %3201 = vst [vmem:[#allocation3 + $0x148] sm:$0xff] %v3169
        %3202 = vst [vmem:[#allocation3 + $0x190] sm:$0xff] %v3170
        %3203 = vst [vmem:[#allocation3 + $0x1d8] sm:$0xff] %v3171
        %3204 = vst [vmem:[#allocation3 + $0x220] sm:$0xff] %v3172
        %3205 = vst [vmem:[#allocation3 + $0x268] sm:$0xff] %v3173
        %3206 = vst [vmem:[#allocation3 + $0x2b0] sm:$0xff] %v3174
        %3207 = vst [vmem:[#allocation3 + $0x2f8] sm:$0xff] %v3175
        %3208 = vst [vmem:[#allocation3 + $0x340] sm:$0xff] %v3176
        %3209 = vst [vmem:[#allocation3 + $0x388] sm:$0xff] %v3177
        %3210 = vst [vmem:[#allocation3 + $0x3d0] sm:$0xff] %v3178
        %3211 = vst [vmem:[#allocation3 + $0x418] sm:$0xff] %v3179
        %3212 = vst [vmem:[#allocation3 + $0x460] sm:$0xff] %v3180
        %s3213 = scalar_lea.vmem [#allocation2], 40
        %v3214 = vld [vmem:[%s3213 + $0x4] sm:$0x8]
        %v3215 = vld [vmem:[%s3213 + $0x8] sm:$0xf]
        %v3216 = vld [vmem:[%s3213 + $0xc] sm:$0xf]
        %v3217 = vld [vmem:[%s3213 + $0x18] sm:$0x8]
        %v3218 = vld [vmem:[%s3213 + $0x1c] sm:$0xf]
        %v3219 = vld [vmem:[%s3213 + $0x20] sm:$0xf]
        %v3220 = vld [vmem:[%s3213 + $0x2c] sm:$0x8]
        %v3221 = vld [vmem:[%s3213 + $0x30] sm:$0xf]
        %v3222 = vld [vmem:[%s3213 + $0x34] sm:$0xf]
        %v3223 = vld [vmem:[%s3213 + $0x40] sm:$0x8]
        %v3224 = vld [vmem:[%s3213 + $0x44] sm:$0xf]
        %v3225 = vld [vmem:[%s3213 + $0x48] sm:$0xf]
        %v3226 = vld [vmem:[%s3213 + $0x54] sm:$0x8]
        %v3227 = vld [vmem:[%s3213 + $0x58] sm:$0xf]
        %v3228 = vld [vmem:[%s3213 + $0x5c] sm:$0xf]
        %v3229 = vld [vmem:[%s3213 + $0x68] sm:$0x8]
        %v3230 = vld [vmem:[%s3213 + $0x6c] sm:$0xf]
        %v3231 = vld [vmem:[%s3213 + $0x70] sm:$0xf]
        %v3232 = vld [vmem:[%s3213 + $0x7c] sm:$0x8]
        %v3233 = vld [vmem:[%s3213 + $0x80] sm:$0xf]
        %v3234 = vld [vmem:[%s3213 + $0x84] sm:$0xf]
        %v3235 = vld [vmem:[%s3213 + $0x90] sm:$0x8]
        %v3236 = vld [vmem:[%s3213 + $0x94] sm:$0xf]
        %v3237 = vld [vmem:[%s3213 + $0x98] sm:$0xf]
        %v3238 = vld [vmem:[%s3213 + $0xa4] sm:$0x8]
        %v3239 = vld [vmem:[%s3213 + $0xa8] sm:$0xf]
        %v3240 = vld [vmem:[%s3213 + $0xac] sm:$0xf]
        %v3241 = vld [vmem:[%s3213 + $0xb8] sm:$0x8]
        %v3242 = vld [vmem:[%s3213 + $0xbc] sm:$0xf]
        %v3243 = vld [vmem:[%s3213 + $0xc0] sm:$0xf]
        %v3244 = vld [vmem:[%s3213 + $0xcc] sm:$0x8]
        %v3245 = vld [vmem:[%s3213 + $0xd0] sm:$0xf]
        %v3246 = vld [vmem:[%s3213 + $0xd4] sm:$0xf]
        %v3247 = vld [vmem:[%s3213 + $0xe0] sm:$0x8]
        %v3248 = vld [vmem:[%s3213 + $0xe4] sm:$0xf]
        %v3249 = vld [vmem:[%s3213 + $0xe8] sm:$0xf]
        %v3250 = vld [vmem:[%s3213 + $0xf4] sm:$0x8]
        %v3251 = vld [vmem:[%s3213 + $0xf8] sm:$0xf]
        %v3252 = vld [vmem:[%s3213 + $0xfc] sm:$0xf]
        %v3253 = vld [vmem:[%s3213 + $0x108] sm:$0x8]
        %v3254 = vld [vmem:[%s3213 + $0x10c] sm:$0xf]
        %v3255 = vld [vmem:[%s3213 + $0x110] sm:$0xf]
        %v3256 = vld [vmem:[%s3213 + $0x11c] sm:$0x8]
        %v3257 = vld [vmem:[%s3213 + $0x120] sm:$0xf]
        %v3258 = vld [vmem:[%s3213 + $0x124] sm:$0xf]
        %v3259 = vld [vmem:[%s3213 + $0x130] sm:$0x8]
        %v3260 = vld [vmem:[%s3213 + $0x134] sm:$0xf]
        %v3261 = vld [vmem:[%s3213 + $0x138] sm:$0xf]
        %v3263 = vshrl.u32 %v3214, 16
        %v3265 = vrot.slane %v3263, 7
        %v3266 = vrot.slane %v3265, 4
        %v3268 = vshrl.u32 %v3215, 16
        %v3270 = vrot.slane %v3268, 7
        %v3271 = vshll.u32 %v3215, 16
        %v3273 = vor.u32 %v3270, %v3271
        %v3274 = vsel %vm985, %v3266, %v3273
        %v3275 = vrot.slane %v3270, 4
        %v3277 = vshrl.u32 %v3216, 16
        %v3279 = vrot.slane %v3277, 7
        %v3280 = vshll.u32 %v3216, 16
        %v3282 = vor.u32 %v3279, %v3280
        %v3283 = vsel %vm985, %v3275, %v3282
        %v3285 = vshrl.u32 %v3217, 16
        %v3287 = vrot.slane %v3285, 7
        %v3288 = vrot.slane %v3287, 4
        %v3290 = vshrl.u32 %v3218, 16
        %v3292 = vrot.slane %v3290, 7
        %v3293 = vshll.u32 %v3218, 16
        %v3295 = vor.u32 %v3292, %v3293
        %v3296 = vsel %vm985, %v3288, %v3295
        %v3297 = vrot.slane %v3292, 4
        %v3299 = vshrl.u32 %v3219, 16
        %v3301 = vrot.slane %v3299, 7
        %v3302 = vshll.u32 %v3219, 16
        %v3304 = vor.u32 %v3301, %v3302
        %v3305 = vsel %vm985, %v3297, %v3304
        %v3307 = vshrl.u32 %v3220, 16
        %v3309 = vrot.slane %v3307, 7
        %v3310 = vrot.slane %v3309, 4
        %v3312 = vshrl.u32 %v3221, 16
        %v3314 = vrot.slane %v3312, 7
        %v3315 = vshll.u32 %v3221, 16
        %v3317 = vor.u32 %v3314, %v3315
        %v3318 = vsel %vm985, %v3310, %v3317
        %v3319 = vrot.slane %v3314, 4
        %v3321 = vshrl.u32 %v3222, 16
        %v3323 = vrot.slane %v3321, 7
        %v3324 = vshll.u32 %v3222, 16
        %v3326 = vor.u32 %v3323, %v3324
        %v3327 = vsel %vm985, %v3319, %v3326
        %v3329 = vshrl.u32 %v3223, 16
        %v3331 = vrot.slane %v3329, 7
        %v3332 = vrot.slane %v3331, 4
        %v3334 = vshrl.u32 %v3224, 16
        %v3336 = vrot.slane %v3334, 7
        %v3337 = vshll.u32 %v3224, 16
        %v3339 = vor.u32 %v3336, %v3337
        %v3340 = vsel %vm985, %v3332, %v3339
        %v3341 = vrot.slane %v3336, 4
        %v3343 = vshrl.u32 %v3225, 16
        %v3345 = vrot.slane %v3343, 7
        %v3346 = vshll.u32 %v3225, 16
        %v3348 = vor.u32 %v3345, %v3346
        %v3349 = vsel %vm985, %v3341, %v3348
        %v3351 = vshrl.u32 %v3226, 16
        %v3353 = vrot.slane %v3351, 7
        %v3354 = vrot.slane %v3353, 4
        %v3356 = vshrl.u32 %v3227, 16
        %v3358 = vrot.slane %v3356, 7
        %v3359 = vshll.u32 %v3227, 16
        %v3361 = vor.u32 %v3358, %v3359
        %v3362 = vsel %vm985, %v3354, %v3361
        %v3363 = vrot.slane %v3358, 4
        %v3365 = vshrl.u32 %v3228, 16
        %v3367 = vrot.slane %v3365, 7
        %v3368 = vshll.u32 %v3228, 16
        %v3370 = vor.u32 %v3367, %v3368
        %v3371 = vsel %vm985, %v3363, %v3370
        %v3373 = vshrl.u32 %v3229, 16
        %v3375 = vrot.slane %v3373, 7
        %v3376 = vrot.slane %v3375, 4
        %v3378 = vshrl.u32 %v3230, 16
        %v3380 = vrot.slane %v3378, 7
        %v3381 = vshll.u32 %v3230, 16
        %v3383 = vor.u32 %v3380, %v3381
        %v3384 = vsel %vm985, %v3376, %v3383
        %v3385 = vrot.slane %v3380, 4
        %v3387 = vshrl.u32 %v3231, 16
        %v3389 = vrot.slane %v3387, 7
        %v3390 = vshll.u32 %v3231, 16
        %v3392 = vor.u32 %v3389, %v3390
        %v3393 = vsel %vm985, %v3385, %v3392
        %v3395 = vshrl.u32 %v3232, 16
        %v3397 = vrot.slane %v3395, 7
        %v3398 = vrot.slane %v3397, 4
        %v3400 = vshrl.u32 %v3233, 16
        %v3402 = vrot.slane %v3400, 7
        %v3403 = vshll.u32 %v3233, 16
        %v3405 = vor.u32 %v3402, %v3403
        %v3406 = vsel %vm985, %v3398, %v3405
        %v3407 = vrot.slane %v3402, 4
        %v3409 = vshrl.u32 %v3234, 16
        %v3411 = vrot.slane %v3409, 7
        %v3412 = vshll.u32 %v3234, 16
        %v3414 = vor.u32 %v3411, %v3412
        %v3415 = vsel %vm985, %v3407, %v3414
        %v3417 = vshrl.u32 %v3235, 16
        %v3419 = vrot.slane %v3417, 7
        %v3420 = vrot.slane %v3419, 4
        %v3422 = vshrl.u32 %v3236, 16
        %v3424 = vrot.slane %v3422, 7
        %v3425 = vshll.u32 %v3236, 16
        %v3427 = vor.u32 %v3424, %v3425
        %v3428 = vsel %vm985, %v3420, %v3427
        %v3429 = vrot.slane %v3424, 4
        %v3431 = vshrl.u32 %v3237, 16
        %v3433 = vrot.slane %v3431, 7
        %v3434 = vshll.u32 %v3237, 16
        %v3436 = vor.u32 %v3433, %v3434
        %v3437 = vsel %vm985, %v3429, %v3436
        %v3439 = vshrl.u32 %v3238, 16
        %v3441 = vrot.slane %v3439, 7
        %v3442 = vrot.slane %v3441, 4
        %v3444 = vshrl.u32 %v3239, 16
        %v3446 = vrot.slane %v3444, 7
        %v3447 = vshll.u32 %v3239, 16
        %v3449 = vor.u32 %v3446, %v3447
        %v3450 = vsel %vm985, %v3442, %v3449
        %v3451 = vrot.slane %v3446, 4
        %v3453 = vshrl.u32 %v3240, 16
        %v3455 = vrot.slane %v3453, 7
        %v3456 = vshll.u32 %v3240, 16
        %v3458 = vor.u32 %v3455, %v3456
        %v3459 = vsel %vm985, %v3451, %v3458
        %v3461 = vshrl.u32 %v3241, 16
        %v3463 = vrot.slane %v3461, 7
        %v3464 = vrot.slane %v3463, 4
        %v3466 = vshrl.u32 %v3242, 16
        %v3468 = vrot.slane %v3466, 7
        %v3469 = vshll.u32 %v3242, 16
        %v3471 = vor.u32 %v3468, %v3469
        %v3472 = vsel %vm985, %v3464, %v3471
        %v3473 = vrot.slane %v3468, 4
        %v3475 = vshrl.u32 %v3243, 16
        %v3477 = vrot.slane %v3475, 7
        %v3478 = vshll.u32 %v3243, 16
        %v3480 = vor.u32 %v3477, %v3478
        %v3481 = vsel %vm985, %v3473, %v3480
        %v3483 = vshrl.u32 %v3244, 16
        %v3485 = vrot.slane %v3483, 7
        %v3486 = vrot.slane %v3485, 4
        %v3488 = vshrl.u32 %v3245, 16
        %v3490 = vrot.slane %v3488, 7
        %v3491 = vshll.u32 %v3245, 16
        %v3493 = vor.u32 %v3490, %v3491
        %v3494 = vsel %vm985, %v3486, %v3493
        %v3495 = vrot.slane %v3490, 4
        %v3497 = vshrl.u32 %v3246, 16
        %v3499 = vrot.slane %v3497, 7
        %v3500 = vshll.u32 %v3246, 16
        %v3502 = vor.u32 %v3499, %v3500
        %v3503 = vsel %vm985, %v3495, %v3502
        %v3505 = vshrl.u32 %v3247, 16
        %v3507 = vrot.slane %v3505, 7
        %v3508 = vrot.slane %v3507, 4
        %v3510 = vshrl.u32 %v3248, 16
        %v3512 = vrot.slane %v3510, 7
        %v3513 = vshll.u32 %v3248, 16
        %v3515 = vor.u32 %v3512, %v3513
        %v3516 = vsel %vm985, %v3508, %v3515
        %v3517 = vrot.slane %v3512, 4
        %v3519 = vshrl.u32 %v3249, 16
        %v3521 = vrot.slane %v3519, 7
        %v3522 = vshll.u32 %v3249, 16
        %v3524 = vor.u32 %v3521, %v3522
        %v3525 = vsel %vm985, %v3517, %v3524
        %v3527 = vshrl.u32 %v3250, 16
        %v3529 = vrot.slane %v3527, 7
        %v3530 = vrot.slane %v3529, 4
        %v3532 = vshrl.u32 %v3251, 16
        %v3534 = vrot.slane %v3532, 7
        %v3535 = vshll.u32 %v3251, 16
        %v3537 = vor.u32 %v3534, %v3535
        %v3538 = vsel %vm985, %v3530, %v3537
        %v3539 = vrot.slane %v3534, 4
        %v3541 = vshrl.u32 %v3252, 16
        %v3543 = vrot.slane %v3541, 7
        %v3544 = vshll.u32 %v3252, 16
        %v3546 = vor.u32 %v3543, %v3544
        %v3547 = vsel %vm985, %v3539, %v3546
        %v3549 = vshrl.u32 %v3253, 16
        %v3551 = vrot.slane %v3549, 7
        %v3552 = vrot.slane %v3551, 4
        %v3554 = vshrl.u32 %v3254, 16
        %v3556 = vrot.slane %v3554, 7
        %v3557 = vshll.u32 %v3254, 16
        %v3559 = vor.u32 %v3556, %v3557
        %v3560 = vsel %vm985, %v3552, %v3559
        %v3561 = vrot.slane %v3556, 4
        %v3563 = vshrl.u32 %v3255, 16
        %v3565 = vrot.slane %v3563, 7
        %v3566 = vshll.u32 %v3255, 16
        %v3568 = vor.u32 %v3565, %v3566
        %v3569 = vsel %vm985, %v3561, %v3568
        %v3571 = vshrl.u32 %v3256, 16
        %v3573 = vrot.slane %v3571, 7
        %v3574 = vrot.slane %v3573, 4
        %v3576 = vshrl.u32 %v3257, 16
        %v3578 = vrot.slane %v3576, 7
        %v3579 = vshll.u32 %v3257, 16
        %v3581 = vor.u32 %v3578, %v3579
        %v3582 = vsel %vm985, %v3574, %v3581
        %v3583 = vrot.slane %v3578, 4
        %v3585 = vshrl.u32 %v3258, 16
        %v3587 = vrot.slane %v3585, 7
        %v3588 = vshll.u32 %v3258, 16
        %v3590 = vor.u32 %v3587, %v3588
        %v3591 = vsel %vm985, %v3583, %v3590
        %v3593 = vshrl.u32 %v3259, 16
        %v3595 = vrot.slane %v3593, 7
        %v3596 = vrot.slane %v3595, 4
        %v3598 = vshrl.u32 %v3260, 16
        %v3600 = vrot.slane %v3598, 7
        %v3601 = vshll.u32 %v3260, 16
        %v3603 = vor.u32 %v3600, %v3601
        %v3604 = vsel %vm985, %v3596, %v3603
        %v3605 = vrot.slane %v3600, 4
        %v3607 = vshrl.u32 %v3261, 16
        %v3609 = vrot.slane %v3607, 7
        %v3610 = vshll.u32 %v3261, 16
        %v3612 = vor.u32 %v3609, %v3610
        %v3613 = vsel %vm985, %v3605, %v3612
        %v3614 = vunpack.c.l.b16 %v3274
        %v3615 = vunpack.c.l.b16 %v3283
        %v3616 = vunpack.c.l.b16 %v3296
        %v3617 = vunpack.c.l.b16 %v3305
        %v3618 = vunpack.c.l.b16 %v3318
        %v3619 = vunpack.c.l.b16 %v3327
        %v3620 = vunpack.c.l.b16 %v3340
        %v3621 = vunpack.c.l.b16 %v3349
        %v3622 = vunpack.c.l.b16 %v3362
        %v3623 = vunpack.c.l.b16 %v3371
        %v3624 = vunpack.c.l.b16 %v3384
        %v3625 = vunpack.c.l.b16 %v3393
        %v3626 = vunpack.c.l.b16 %v3406
        %v3627 = vunpack.c.l.b16 %v3415
        %v3628 = vunpack.c.l.b16 %v3428
        %v3629 = vunpack.c.l.b16 %v3437
        %v3630 = vunpack.c.l.b16 %v3450
        %v3631 = vunpack.c.l.b16 %v3459
        %v3632 = vunpack.c.l.b16 %v3472
        %v3633 = vunpack.c.l.b16 %v3481
        %v3634 = vunpack.c.l.b16 %v3494
        %v3635 = vunpack.c.l.b16 %v3503
        %v3636 = vunpack.c.l.b16 %v3516
        %v3637 = vunpack.c.l.b16 %v3525
        %v3638 = vunpack.c.l.b16 %v3538
        %v3639 = vunpack.c.l.b16 %v3547
        %v3640 = vunpack.c.l.b16 %v3560
        %v3641 = vunpack.c.l.b16 %v3569
        %v3642 = vunpack.c.l.b16 %v3582
        %v3643 = vunpack.c.l.b16 %v3591
        %v3644 = vunpack.c.l.b16 %v3604
        %v3645 = vunpack.c.l.b16 %v3613
        %v3646 = vpack.c.b16 %v3615, %v3614
        %v3647 = vpack.c.b16 %v3617, %v3616
        %v3648 = vpack.c.b16 %v3619, %v3618
        %v3649 = vpack.c.b16 %v3621, %v3620
        %v3650 = vpack.c.b16 %v3623, %v3622
        %v3651 = vpack.c.b16 %v3625, %v3624
        %v3652 = vpack.c.b16 %v3627, %v3626
        %v3653 = vpack.c.b16 %v3629, %v3628
        %v3654 = vpack.c.b16 %v3631, %v3630
        %v3655 = vpack.c.b16 %v3633, %v3632
        %v3656 = vpack.c.b16 %v3635, %v3634
        %v3657 = vpack.c.b16 %v3637, %v3636
        %v3658 = vpack.c.b16 %v3639, %v3638
        %v3659 = vpack.c.b16 %v3641, %v3640
        %v3660 = vpack.c.b16 %v3643, %v3642
        %v3661 = vpack.c.b16 %v3645, %v3644
        %3678 = vst [vmem:[#allocation3 + $0x30] sm:$0xff] %v3646
        %3679 = vst [vmem:[#allocation3 + $0x78] sm:$0xff] %v3647
        %3680 = vst [vmem:[#allocation3 + $0xc0] sm:$0xff] %v3648
        %3681 = vst [vmem:[#allocation3 + $0x108] sm:$0xff] %v3649
        %3682 = vst [vmem:[#allocation3 + $0x150] sm:$0xff] %v3650
        %3683 = vst [vmem:[#allocation3 + $0x198] sm:$0xff] %v3651
        %3684 = vst [vmem:[#allocation3 + $0x1e0] sm:$0xff] %v3652
        %3685 = vst [vmem:[#allocation3 + $0x228] sm:$0xff] %v3653
        %3686 = vst [vmem:[#allocation3 + $0x270] sm:$0xff] %v3654
        %3687 = vst [vmem:[#allocation3 + $0x2b8] sm:$0xff] %v3655
        %3688 = vst [vmem:[#allocation3 + $0x300] sm:$0xff] %v3656
        %3689 = vst [vmem:[#allocation3 + $0x348] sm:$0xff] %v3657
        %3690 = vst [vmem:[#allocation3 + $0x390] sm:$0xff] %v3658
        %3691 = vst [vmem:[#allocation3 + $0x3d8] sm:$0xff] %v3659
        %3692 = vst [vmem:[#allocation3 + $0x420] sm:$0xff] %v3660
        %3693 = vst [vmem:[#allocation3 + $0x468] sm:$0xff] %v3661
        %v3694 = vld [vmem:[%s3213 + $0x8] sm:$0xf]
        %v3695 = vld [vmem:[%s3213 + $0xc] sm:$0xf]
        %v3696 = vld [vmem:[%s3213 + $0x1c] sm:$0xf]
        %v3697 = vld [vmem:[%s3213 + $0x20] sm:$0xf]
        %v3698 = vld [vmem:[%s3213 + $0x30] sm:$0xf]
        %v3699 = vld [vmem:[%s3213 + $0x34] sm:$0xf]
        %v3700 = vld [vmem:[%s3213 + $0x44] sm:$0xf]
        %v3701 = vld [vmem:[%s3213 + $0x48] sm:$0xf]
        %v3702 = vld [vmem:[%s3213 + $0x58] sm:$0xf]
        %v3703 = vld [vmem:[%s3213 + $0x5c] sm:$0xf]
        %v3704 = vld [vmem:[%s3213 + $0x6c] sm:$0xf]
        %v3705 = vld [vmem:[%s3213 + $0x70] sm:$0xf]
        %v3706 = vld [vmem:[%s3213 + $0x80] sm:$0xf]
        %v3707 = vld [vmem:[%s3213 + $0x84] sm:$0xf]
        %v3708 = vld [vmem:[%s3213 + $0x94] sm:$0xf]
        %v3709 = vld [vmem:[%s3213 + $0x98] sm:$0xf]
        %v3710 = vld [vmem:[%s3213 + $0xa8] sm:$0xf]
        %v3711 = vld [vmem:[%s3213 + $0xac] sm:$0xf]
        %v3712 = vld [vmem:[%s3213 + $0xbc] sm:$0xf]
        %v3713 = vld [vmem:[%s3213 + $0xc0] sm:$0xf]
        %v3714 = vld [vmem:[%s3213 + $0xd0] sm:$0xf]
        %v3715 = vld [vmem:[%s3213 + $0xd4] sm:$0xf]
        %v3716 = vld [vmem:[%s3213 + $0xe4] sm:$0xf]
        %v3717 = vld [vmem:[%s3213 + $0xe8] sm:$0xf]
        %v3718 = vld [vmem:[%s3213 + $0xf8] sm:$0xf]
        %v3719 = vld [vmem:[%s3213 + $0xfc] sm:$0xf]
        %v3720 = vld [vmem:[%s3213 + $0x10c] sm:$0xf]
        %v3721 = vld [vmem:[%s3213 + $0x110] sm:$0xf]
        %v3722 = vld [vmem:[%s3213 + $0x120] sm:$0xf]
        %v3723 = vld [vmem:[%s3213 + $0x124] sm:$0xf]
        %v3724 = vld [vmem:[%s3213 + $0x134] sm:$0xf]
        %v3725 = vld [vmem:[%s3213 + $0x138] sm:$0xf]
        %v3758 = vunpack.c.l.b16 %v3694
        %v3759 = vunpack.c.l.b16 %v3695
        %v3760 = vunpack.c.l.b16 %v3696
        %v3761 = vunpack.c.l.b16 %v3697
        %v3762 = vunpack.c.l.b16 %v3698
        %v3763 = vunpack.c.l.b16 %v3699
        %v3764 = vunpack.c.l.b16 %v3700
        %v3765 = vunpack.c.l.b16 %v3701
        %v3766 = vunpack.c.l.b16 %v3702
        %v3767 = vunpack.c.l.b16 %v3703
        %v3768 = vunpack.c.l.b16 %v3704
        %v3769 = vunpack.c.l.b16 %v3705
        %v3770 = vunpack.c.l.b16 %v3706
        %v3771 = vunpack.c.l.b16 %v3707
        %v3772 = vunpack.c.l.b16 %v3708
        %v3773 = vunpack.c.l.b16 %v3709
        %v3774 = vunpack.c.l.b16 %v3710
        %v3775 = vunpack.c.l.b16 %v3711
        %v3776 = vunpack.c.l.b16 %v3712
        %v3777 = vunpack.c.l.b16 %v3713
        %v3778 = vunpack.c.l.b16 %v3714
        %v3779 = vunpack.c.l.b16 %v3715
        %v3780 = vunpack.c.l.b16 %v3716
        %v3781 = vunpack.c.l.b16 %v3717
        %v3782 = vunpack.c.l.b16 %v3718
        %v3783 = vunpack.c.l.b16 %v3719
        %v3784 = vunpack.c.l.b16 %v3720
        %v3785 = vunpack.c.l.b16 %v3721
        %v3786 = vunpack.c.l.b16 %v3722
        %v3787 = vunpack.c.l.b16 %v3723
        %v3788 = vunpack.c.l.b16 %v3724
        %v3789 = vunpack.c.l.b16 %v3725
        %v3790 = vpack.c.b16 %v3759, %v3758
        %v3791 = vpack.c.b16 %v3761, %v3760
        %v3792 = vpack.c.b16 %v3763, %v3762
        %v3793 = vpack.c.b16 %v3765, %v3764
        %v3794 = vpack.c.b16 %v3767, %v3766
        %v3795 = vpack.c.b16 %v3769, %v3768
        %v3796 = vpack.c.b16 %v3771, %v3770
        %v3797 = vpack.c.b16 %v3773, %v3772
        %v3798 = vpack.c.b16 %v3775, %v3774
        %v3799 = vpack.c.b16 %v3777, %v3776
        %v3800 = vpack.c.b16 %v3779, %v3778
        %v3801 = vpack.c.b16 %v3781, %v3780
        %v3802 = vpack.c.b16 %v3783, %v3782
        %v3803 = vpack.c.b16 %v3785, %v3784
        %v3804 = vpack.c.b16 %v3787, %v3786
        %v3805 = vpack.c.b16 %v3789, %v3788
        %3822 = vst [vmem:[#allocation3 + $0x38] sm:$0xff] %v3790
        %3823 = vst [vmem:[#allocation3 + $0x80] sm:$0xff] %v3791
        %3824 = vst [vmem:[#allocation3 + $0xc8] sm:$0xff] %v3792
        %3825 = vst [vmem:[#allocation3 + $0x110] sm:$0xff] %v3793
        %3826 = vst [vmem:[#allocation3 + $0x158] sm:$0xff] %v3794
        %3827 = vst [vmem:[#allocation3 + $0x1a0] sm:$0xff] %v3795
        %3828 = vst [vmem:[#allocation3 + $0x1e8] sm:$0xff] %v3796
        %3829 = vst [vmem:[#allocation3 + $0x230] sm:$0xff] %v3797
        %3830 = vst [vmem:[#allocation3 + $0x278] sm:$0xff] %v3798
        %3831 = vst [vmem:[#allocation3 + $0x2c0] sm:$0xff] %v3799
        %3832 = vst [vmem:[#allocation3 + $0x308] sm:$0xff] %v3800
        %3833 = vst [vmem:[#allocation3 + $0x350] sm:$0xff] %v3801
        %3834 = vst [vmem:[#allocation3 + $0x398] sm:$0xff] %v3802
        %3835 = vst [vmem:[#allocation3 + $0x3e0] sm:$0xff] %v3803
        %3836 = vst [vmem:[#allocation3 + $0x428] sm:$0xff] %v3804
        %3837 = vst [vmem:[#allocation3 + $0x470] sm:$0xff] %v3805
        %v3838 = vld [vmem:[%s3213 + $0x8] sm:$0xf]
        %v3839 = vld [vmem:[%s3213 + $0xc] sm:$0xf]
        %v3840 = vld [vmem:[%s3213 + $0x10] sm:$0x1]
        %v3841 = vld [vmem:[%s3213 + $0x1c] sm:$0xf]
        %v3842 = vld [vmem:[%s3213 + $0x20] sm:$0xf]
        %v3843 = vld [vmem:[%s3213 + $0x24] sm:$0x1]
        %v3844 = vld [vmem:[%s3213 + $0x30] sm:$0xf]
        %v3845 = vld [vmem:[%s3213 + $0x34] sm:$0xf]
        %v3846 = vld [vmem:[%s3213 + $0x38] sm:$0x1]
        %v3847 = vld [vmem:[%s3213 + $0x44] sm:$0xf]
        %v3848 = vld [vmem:[%s3213 + $0x48] sm:$0xf]
        %v3849 = vld [vmem:[%s3213 + $0x4c] sm:$0x1]
        %v3850 = vld [vmem:[%s3213 + $0x58] sm:$0xf]
        %v3851 = vld [vmem:[%s3213 + $0x5c] sm:$0xf]
        %v3852 = vld [vmem:[%s3213 + $0x60] sm:$0x1]
        %v3853 = vld [vmem:[%s3213 + $0x6c] sm:$0xf]
        %v3854 = vld [vmem:[%s3213 + $0x70] sm:$0xf]
        %v3855 = vld [vmem:[%s3213 + $0x74] sm:$0x1]
        %v3856 = vld [vmem:[%s3213 + $0x80] sm:$0xf]
        %v3857 = vld [vmem:[%s3213 + $0x84] sm:$0xf]
        %v3858 = vld [vmem:[%s3213 + $0x88] sm:$0x1]
        %v3859 = vld [vmem:[%s3213 + $0x94] sm:$0xf]
        %v3860 = vld [vmem:[%s3213 + $0x98] sm:$0xf]
        %v3861 = vld [vmem:[%s3213 + $0x9c] sm:$0x1]
        %v3862 = vld [vmem:[%s3213 + $0xa8] sm:$0xf]
        %v3863 = vld [vmem:[%s3213 + $0xac] sm:$0xf]
        %v3864 = vld [vmem:[%s3213 + $0xb0] sm:$0x1]
        %v3865 = vld [vmem:[%s3213 + $0xbc] sm:$0xf]
        %v3866 = vld [vmem:[%s3213 + $0xc0] sm:$0xf]
        %v3867 = vld [vmem:[%s3213 + $0xc4] sm:$0x1]
        %v3868 = vld [vmem:[%s3213 + $0xd0] sm:$0xf]
        %v3869 = vld [vmem:[%s3213 + $0xd4] sm:$0xf]
        %v3870 = vld [vmem:[%s3213 + $0xd8] sm:$0x1]
        %v3871 = vld [vmem:[%s3213 + $0xe4] sm:$0xf]
        %v3872 = vld [vmem:[%s3213 + $0xe8] sm:$0xf]
        %v3873 = vld [vmem:[%s3213 + $0xec] sm:$0x1]
        %v3874 = vld [vmem:[%s3213 + $0xf8] sm:$0xf]
        %v3875 = vld [vmem:[%s3213 + $0xfc] sm:$0xf]
        %v3876 = vld [vmem:[%s3213 + $0x100] sm:$0x1]
        %v3877 = vld [vmem:[%s3213 + $0x10c] sm:$0xf]
        %v3878 = vld [vmem:[%s3213 + $0x110] sm:$0xf]
        %v3879 = vld [vmem:[%s3213 + $0x114] sm:$0x1]
        %v3880 = vld [vmem:[%s3213 + $0x120] sm:$0xf]
        %v3881 = vld [vmem:[%s3213 + $0x124] sm:$0xf]
        %v3882 = vld [vmem:[%s3213 + $0x128] sm:$0x1]
        %v3883 = vld [vmem:[%s3213 + $0x134] sm:$0xf]
        %v3884 = vld [vmem:[%s3213 + $0x138] sm:$0xf]
        %v3885 = vld [vmem:[%s3213 + $0x13c] sm:$0x1]
        %v3887 = vshrl.u32 %v3838, 16
        %v3889 = vrot.slane %v3887, 4
        %v3890 = vshll.u32 %v3838, 16
        %v3892 = vrot.slane %v3890, 5
        %v3893 = vor.u32 %v3889, %v3892
        %v3894 = vrot.slane %v3893, 4
        %v3896 = vshll.u32 %v3839, 16
        %v3898 = vrot.slane %v3896, 5
        %v3899 = vsel %vm1612, %v3894, %v3898
        %v3900 = vshrl.u32 %v3839, 16
        %v3902 = vrot.slane %v3900, 4
        %v3903 = vor.u32 %v3902, %v3898
        %v3904 = vrot.slane %v3903, 4
        %v3906 = vshll.u32 %v3840, 16
        %v3908 = vrot.slane %v3906, 5
        %v3909 = vsel %vm1612, %v3904, %v3908
        %v3911 = vshrl.u32 %v3841, 16
        %v3913 = vrot.slane %v3911, 4
        %v3914 = vshll.u32 %v3841, 16
        %v3916 = vrot.slane %v3914, 5
        %v3917 = vor.u32 %v3913, %v3916
        %v3918 = vrot.slane %v3917, 4
        %v3920 = vshll.u32 %v3842, 16
        %v3922 = vrot.slane %v3920, 5
        %v3923 = vsel %vm1612, %v3918, %v3922
        %v3924 = vshrl.u32 %v3842, 16
        %v3926 = vrot.slane %v3924, 4
        %v3927 = vor.u32 %v3926, %v3922
        %v3928 = vrot.slane %v3927, 4
        %v3930 = vshll.u32 %v3843, 16
        %v3932 = vrot.slane %v3930, 5
        %v3933 = vsel %vm1612, %v3928, %v3932
        %v3935 = vshrl.u32 %v3844, 16
        %v3937 = vrot.slane %v3935, 4
        %v3938 = vshll.u32 %v3844, 16
        %v3940 = vrot.slane %v3938, 5
        %v3941 = vor.u32 %v3937, %v3940
        %v3942 = vrot.slane %v3941, 4
        %v3944 = vshll.u32 %v3845, 16
        %v3946 = vrot.slane %v3944, 5
        %v3947 = vsel %vm1612, %v3942, %v3946
        %v3948 = vshrl.u32 %v3845, 16
        %v3950 = vrot.slane %v3948, 4
        %v3951 = vor.u32 %v3950, %v3946
        %v3952 = vrot.slane %v3951, 4
        %v3954 = vshll.u32 %v3846, 16
        %v3956 = vrot.slane %v3954, 5
        %v3957 = vsel %vm1612, %v3952, %v3956
        %v3959 = vshrl.u32 %v3847, 16
        %v3961 = vrot.slane %v3959, 4
        %v3962 = vshll.u32 %v3847, 16
        %v3964 = vrot.slane %v3962, 5
        %v3965 = vor.u32 %v3961, %v3964
        %v3966 = vrot.slane %v3965, 4
        %v3968 = vshll.u32 %v3848, 16
        %v3970 = vrot.slane %v3968, 5
        %v3971 = vsel %vm1612, %v3966, %v3970
        %v3972 = vshrl.u32 %v3848, 16
        %v3974 = vrot.slane %v3972, 4
        %v3975 = vor.u32 %v3974, %v3970
        %v3976 = vrot.slane %v3975, 4
        %v3978 = vshll.u32 %v3849, 16
        %v3980 = vrot.slane %v3978, 5
        %v3981 = vsel %vm1612, %v3976, %v3980
        %v3983 = vshrl.u32 %v3850, 16
        %v3985 = vrot.slane %v3983, 4
        %v3986 = vshll.u32 %v3850, 16
        %v3988 = vrot.slane %v3986, 5
        %v3989 = vor.u32 %v3985, %v3988
        %v3990 = vrot.slane %v3989, 4
        %v3992 = vshll.u32 %v3851, 16
        %v3994 = vrot.slane %v3992, 5
        %v3995 = vsel %vm1612, %v3990, %v3994
        %v3996 = vshrl.u32 %v3851, 16
        %v3998 = vrot.slane %v3996, 4
        %v3999 = vor.u32 %v3998, %v3994
        %v4000 = vrot.slane %v3999, 4
        %v4002 = vshll.u32 %v3852, 16
        %v4004 = vrot.slane %v4002, 5
        %v4005 = vsel %vm1612, %v4000, %v4004
        %v4007 = vshrl.u32 %v3853, 16
        %v4009 = vrot.slane %v4007, 4
        %v4010 = vshll.u32 %v3853, 16
        %v4012 = vrot.slane %v4010, 5
        %v4013 = vor.u32 %v4009, %v4012
        %v4014 = vrot.slane %v4013, 4
        %v4016 = vshll.u32 %v3854, 16
        %v4018 = vrot.slane %v4016, 5
        %v4019 = vsel %vm1612, %v4014, %v4018
        %v4020 = vshrl.u32 %v3854, 16
        %v4022 = vrot.slane %v4020, 4
        %v4023 = vor.u32 %v4022, %v4018
        %v4024 = vrot.slane %v4023, 4
        %v4026 = vshll.u32 %v3855, 16
        %v4028 = vrot.slane %v4026, 5
        %v4029 = vsel %vm1612, %v4024, %v4028
        %v4031 = vshrl.u32 %v3856, 16
        %v4033 = vrot.slane %v4031, 4
        %v4034 = vshll.u32 %v3856, 16
        %v4036 = vrot.slane %v4034, 5
        %v4037 = vor.u32 %v4033, %v4036
        %v4038 = vrot.slane %v4037, 4
        %v4040 = vshll.u32 %v3857, 16
        %v4042 = vrot.slane %v4040, 5
        %v4043 = vsel %vm1612, %v4038, %v4042
        %v4044 = vshrl.u32 %v3857, 16
        %v4046 = vrot.slane %v4044, 4
        %v4047 = vor.u32 %v4046, %v4042
        %v4048 = vrot.slane %v4047, 4
        %v4050 = vshll.u32 %v3858, 16
        %v4052 = vrot.slane %v4050, 5
        %v4053 = vsel %vm1612, %v4048, %v4052
        %v4055 = vshrl.u32 %v3859, 16
        %v4057 = vrot.slane %v4055, 4
        %v4058 = vshll.u32 %v3859, 16
        %v4060 = vrot.slane %v4058, 5
        %v4061 = vor.u32 %v4057, %v4060
        %v4062 = vrot.slane %v4061, 4
        %v4064 = vshll.u32 %v3860, 16
        %v4066 = vrot.slane %v4064, 5
        %v4067 = vsel %vm1612, %v4062, %v4066
        %v4068 = vshrl.u32 %v3860, 16
        %v4070 = vrot.slane %v4068, 4
        %v4071 = vor.u32 %v4070, %v4066
        %v4072 = vrot.slane %v4071, 4
        %v4074 = vshll.u32 %v3861, 16
        %v4076 = vrot.slane %v4074, 5
        %v4077 = vsel %vm1612, %v4072, %v4076
        %v4079 = vshrl.u32 %v3862, 16
        %v4081 = vrot.slane %v4079, 4
        %v4082 = vshll.u32 %v3862, 16
        %v4084 = vrot.slane %v4082, 5
        %v4085 = vor.u32 %v4081, %v4084
        %v4086 = vrot.slane %v4085, 4
        %v4088 = vshll.u32 %v3863, 16
        %v4090 = vrot.slane %v4088, 5
        %v4091 = vsel %vm1612, %v4086, %v4090
        %v4092 = vshrl.u32 %v3863, 16
        %v4094 = vrot.slane %v4092, 4
        %v4095 = vor.u32 %v4094, %v4090
        %v4096 = vrot.slane %v4095, 4
        %v4098 = vshll.u32 %v3864, 16
        %v4100 = vrot.slane %v4098, 5
        %v4101 = vsel %vm1612, %v4096, %v4100
        %v4103 = vshrl.u32 %v3865, 16
        %v4105 = vrot.slane %v4103, 4
        %v4106 = vshll.u32 %v3865, 16
        %v4108 = vrot.slane %v4106, 5
        %v4109 = vor.u32 %v4105, %v4108
        %v4110 = vrot.slane %v4109, 4
        %v4112 = vshll.u32 %v3866, 16
        %v4114 = vrot.slane %v4112, 5
        %v4115 = vsel %vm1612, %v4110, %v4114
        %v4116 = vshrl.u32 %v3866, 16
        %v4118 = vrot.slane %v4116, 4
        %v4119 = vor.u32 %v4118, %v4114
        %v4120 = vrot.slane %v4119, 4
        %v4122 = vshll.u32 %v3867, 16
        %v4124 = vrot.slane %v4122, 5
        %v4125 = vsel %vm1612, %v4120, %v4124
        %v4127 = vshrl.u32 %v3868, 16
        %v4129 = vrot.slane %v4127, 4
        %v4130 = vshll.u32 %v3868, 16
        %v4132 = vrot.slane %v4130, 5
        %v4133 = vor.u32 %v4129, %v4132
        %v4134 = vrot.slane %v4133, 4
        %v4136 = vshll.u32 %v3869, 16
        %v4138 = vrot.slane %v4136, 5
        %v4139 = vsel %vm1612, %v4134, %v4138
        %v4140 = vshrl.u32 %v3869, 16
        %v4142 = vrot.slane %v4140, 4
        %v4143 = vor.u32 %v4142, %v4138
        %v4144 = vrot.slane %v4143, 4
        %v4146 = vshll.u32 %v3870, 16
        %v4148 = vrot.slane %v4146, 5
        %v4149 = vsel %vm1612, %v4144, %v4148
        %v4151 = vshrl.u32 %v3871, 16
        %v4153 = vrot.slane %v4151, 4
        %v4154 = vshll.u32 %v3871, 16
        %v4156 = vrot.slane %v4154, 5
        %v4157 = vor.u32 %v4153, %v4156
        %v4158 = vrot.slane %v4157, 4
        %v4160 = vshll.u32 %v3872, 16
        %v4162 = vrot.slane %v4160, 5
        %v4163 = vsel %vm1612, %v4158, %v4162
        %v4164 = vshrl.u32 %v3872, 16
        %v4166 = vrot.slane %v4164, 4
        %v4167 = vor.u32 %v4166, %v4162
        %v4168 = vrot.slane %v4167, 4
        %v4170 = vshll.u32 %v3873, 16
        %v4172 = vrot.slane %v4170, 5
        %v4173 = vsel %vm1612, %v4168, %v4172
        %v4175 = vshrl.u32 %v3874, 16
        %v4177 = vrot.slane %v4175, 4
        %v4178 = vshll.u32 %v3874, 16
        %v4180 = vrot.slane %v4178, 5
        %v4181 = vor.u32 %v4177, %v4180
        %v4182 = vrot.slane %v4181, 4
        %v4184 = vshll.u32 %v3875, 16
        %v4186 = vrot.slane %v4184, 5
        %v4187 = vsel %vm1612, %v4182, %v4186
        %v4188 = vshrl.u32 %v3875, 16
        %v4190 = vrot.slane %v4188, 4
        %v4191 = vor.u32 %v4190, %v4186
        %v4192 = vrot.slane %v4191, 4
        %v4194 = vshll.u32 %v3876, 16
        %v4196 = vrot.slane %v4194, 5
        %v4197 = vsel %vm1612, %v4192, %v4196
        %v4199 = vshrl.u32 %v3877, 16
        %v4201 = vrot.slane %v4199, 4
        %v4202 = vshll.u32 %v3877, 16
        %v4204 = vrot.slane %v4202, 5
        %v4205 = vor.u32 %v4201, %v4204
        %v4206 = vrot.slane %v4205, 4
        %v4208 = vshll.u32 %v3878, 16
        %v4210 = vrot.slane %v4208, 5
        %v4211 = vsel %vm1612, %v4206, %v4210
        %v4212 = vshrl.u32 %v3878, 16
        %v4214 = vrot.slane %v4212, 4
        %v4215 = vor.u32 %v4214, %v4210
        %v4216 = vrot.slane %v4215, 4
        %v4218 = vshll.u32 %v3879, 16
        %v4220 = vrot.slane %v4218, 5
        %v4221 = vsel %vm1612, %v4216, %v4220
        %v4223 = vshrl.u32 %v3880, 16
        %v4225 = vrot.slane %v4223, 4
        %v4226 = vshll.u32 %v3880, 16
        %v4228 = vrot.slane %v4226, 5
        %v4229 = vor.u32 %v4225, %v4228
        %v4230 = vrot.slane %v4229, 4
        %v4232 = vshll.u32 %v3881, 16
        %v4234 = vrot.slane %v4232, 5
        %v4235 = vsel %vm1612, %v4230, %v4234
        %v4236 = vshrl.u32 %v3881, 16
        %v4238 = vrot.slane %v4236, 4
        %v4239 = vor.u32 %v4238, %v4234
        %v4240 = vrot.slane %v4239, 4
        %v4242 = vshll.u32 %v3882, 16
        %v4244 = vrot.slane %v4242, 5
        %v4245 = vsel %vm1612, %v4240, %v4244
        %v4247 = vshrl.u32 %v3883, 16
        %v4249 = vrot.slane %v4247, 4
        %v4250 = vshll.u32 %v3883, 16
        %v4252 = vrot.slane %v4250, 5
        %v4253 = vor.u32 %v4249, %v4252
        %v4254 = vrot.slane %v4253, 4
        %v4256 = vshll.u32 %v3884, 16
        %v4258 = vrot.slane %v4256, 5
        %v4259 = vsel %vm1612, %v4254, %v4258
        %v4260 = vshrl.u32 %v3884, 16
        %v4262 = vrot.slane %v4260, 4
        %v4263 = vor.u32 %v4262, %v4258
        %v4264 = vrot.slane %v4263, 4
        %v4266 = vshll.u32 %v3885, 16
        %v4268 = vrot.slane %v4266, 5
        %v4269 = vsel %vm1612, %v4264, %v4268
        %v4270 = vunpack.c.l.b16 %v3899
        %v4271 = vunpack.c.l.b16 %v3909
        %v4272 = vunpack.c.l.b16 %v3923
        %v4273 = vunpack.c.l.b16 %v3933
        %v4274 = vunpack.c.l.b16 %v3947
        %v4275 = vunpack.c.l.b16 %v3957
        %v4276 = vunpack.c.l.b16 %v3971
        %v4277 = vunpack.c.l.b16 %v3981
        %v4278 = vunpack.c.l.b16 %v3995
        %v4279 = vunpack.c.l.b16 %v4005
        %v4280 = vunpack.c.l.b16 %v4019
        %v4281 = vunpack.c.l.b16 %v4029
        %v4282 = vunpack.c.l.b16 %v4043
        %v4283 = vunpack.c.l.b16 %v4053
        %v4284 = vunpack.c.l.b16 %v4067
        %v4285 = vunpack.c.l.b16 %v4077
        %v4286 = vunpack.c.l.b16 %v4091
        %v4287 = vunpack.c.l.b16 %v4101
        %v4288 = vunpack.c.l.b16 %v4115
        %v4289 = vunpack.c.l.b16 %v4125
        %v4290 = vunpack.c.l.b16 %v4139
        %v4291 = vunpack.c.l.b16 %v4149
        %v4292 = vunpack.c.l.b16 %v4163
        %v4293 = vunpack.c.l.b16 %v4173
        %v4294 = vunpack.c.l.b16 %v4187
        %v4295 = vunpack.c.l.b16 %v4197
        %v4296 = vunpack.c.l.b16 %v4211
        %v4297 = vunpack.c.l.b16 %v4221
        %v4298 = vunpack.c.l.b16 %v4235
        %v4299 = vunpack.c.l.b16 %v4245
        %v4300 = vunpack.c.l.b16 %v4259
        %v4301 = vunpack.c.l.b16 %v4269
        %v4302 = vpack.c.b16 %v4271, %v4270
        %v4303 = vpack.c.b16 %v4273, %v4272
        %v4304 = vpack.c.b16 %v4275, %v4274
        %v4305 = vpack.c.b16 %v4277, %v4276
        %v4306 = vpack.c.b16 %v4279, %v4278
        %v4307 = vpack.c.b16 %v4281, %v4280
        %v4308 = vpack.c.b16 %v4283, %v4282
        %v4309 = vpack.c.b16 %v4285, %v4284
        %v4310 = vpack.c.b16 %v4287, %v4286
        %v4311 = vpack.c.b16 %v4289, %v4288
        %v4312 = vpack.c.b16 %v4291, %v4290
        %v4313 = vpack.c.b16 %v4293, %v4292
        %v4314 = vpack.c.b16 %v4295, %v4294
        %v4315 = vpack.c.b16 %v4297, %v4296
        %v4316 = vpack.c.b16 %v4299, %v4298
        %v4317 = vpack.c.b16 %v4301, %v4300
        %4334 = vst [vmem:[#allocation3 + $0x40] sm:$0xff] %v4302
        %4335 = vst [vmem:[#allocation3 + $0x88] sm:$0xff] %v4303
        %4336 = vst [vmem:[#allocation3 + $0xd0] sm:$0xff] %v4304
        %4337 = vst [vmem:[#allocation3 + $0x118] sm:$0xff] %v4305
        %4338 = vst [vmem:[#allocation3 + $0x160] sm:$0xff] %v4306
        %4339 = vst [vmem:[#allocation3 + $0x1a8] sm:$0xff] %v4307
        %4340 = vst [vmem:[#allocation3 + $0x1f0] sm:$0xff] %v4308
        %4341 = vst [vmem:[#allocation3 + $0x238] sm:$0xff] %v4309
        %4342 = vst [vmem:[#allocation3 + $0x280] sm:$0xff] %v4310
        %4343 = vst [vmem:[#allocation3 + $0x2c8] sm:$0xff] %v4311
        %4344 = vst [vmem:[#allocation3 + $0x310] sm:$0xff] %v4312
        %4345 = vst [vmem:[#allocation3 + $0x358] sm:$0xff] %v4313
        %4346 = vst [vmem:[#allocation3 + $0x3a0] sm:$0xff] %v4314
        %4347 = vst [vmem:[#allocation3 + $0x3e8] sm:$0xff] %v4315
        %4348 = vst [vmem:[#allocation3 + $0x430] sm:$0xff] %v4316
        %4349 = vst [vmem:[#allocation3 + $0x478] sm:$0xff] %v4317
        %v4350 = vld [vmem:[#allocation3] sm:$0xff]
        %v4351 = vld [vmem:[#allocation3 + $0x8] sm:$0xff]
        %v4352 = vld [vmem:[#allocation3 + $0x10] sm:$0xff]
        %v4353 = vld [vmem:[#allocation3 + $0x18] sm:$0xff]
        %v4354 = vld [vmem:[#allocation3 + $0x20] sm:$0xff]
        %v4355 = vld [vmem:[#allocation3 + $0x28] sm:$0xff]
        %v4356 = vld [vmem:[#allocation3 + $0x30] sm:$0xff]
        %v4357 = vld [vmem:[#allocation3 + $0x38] sm:$0xff]
        %v4358 = vld [vmem:[#allocation3 + $0x40] sm:$0xff]
        %v4359 = vld [vmem:[#allocation3 + $0x48] sm:$0xff]
        %v4360 = vld [vmem:[#allocation3 + $0x50] sm:$0xff]
        %v4361 = vld [vmem:[#allocation3 + $0x58] sm:$0xff]
        %v4362 = vld [vmem:[#allocation3 + $0x60] sm:$0xff]
        %v4363 = vld [vmem:[#allocation3 + $0x68] sm:$0xff]
        %v4364 = vld [vmem:[#allocation3 + $0x70] sm:$0xff]
        %v4365 = vld [vmem:[#allocation3 + $0x78] sm:$0xff]
        %v4366 = vld [vmem:[#allocation3 + $0x80] sm:$0xff]
        %v4367 = vld [vmem:[#allocation3 + $0x88] sm:$0xff]
        %v4368 = vld [vmem:[#allocation3 + $0x90] sm:$0xff]
        %v4369 = vld [vmem:[#allocation3 + $0x98] sm:$0xff]
        %v4370 = vld [vmem:[#allocation3 + $0xa0] sm:$0xff]
        %v4371 = vld [vmem:[#allocation3 + $0xa8] sm:$0xff]
        %v4372 = vld [vmem:[#allocation3 + $0xb0] sm:$0xff]
        %v4373 = vld [vmem:[#allocation3 + $0xb8] sm:$0xff]
        %v4374 = vld [vmem:[#allocation3 + $0xc0] sm:$0xff]
        %v4375 = vld [vmem:[#allocation3 + $0xc8] sm:$0xff]
        %v4376 = vld [vmem:[#allocation3 + $0xd0] sm:$0xff]
        %v4377 = vld [vmem:[#allocation3 + $0xd8] sm:$0xff]
        %v4378 = vld [vmem:[#allocation3 + $0xe0] sm:$0xff]
        %v4379 = vld [vmem:[#allocation3 + $0xe8] sm:$0xff]
        %v4380 = vld [vmem:[#allocation3 + $0xf0] sm:$0xff]
        %v4381 = vld [vmem:[#allocation3 + $0xf8] sm:$0xff]
        %v4382 = vld [vmem:[#allocation3 + $0x100] sm:$0xff]
        %v4383 = vld [vmem:[#allocation3 + $0x108] sm:$0xff]
        %v4384 = vld [vmem:[#allocation3 + $0x110] sm:$0xff]
        %v4385 = vld [vmem:[#allocation3 + $0x118] sm:$0xff]
        %v4386 = vld [vmem:[#allocation3 + $0x120] sm:$0xff]
        %v4387 = vld [vmem:[#allocation3 + $0x128] sm:$0xff]
        %v4388 = vld [vmem:[#allocation3 + $0x130] sm:$0xff]
        %v4389 = vld [vmem:[#allocation3 + $0x138] sm:$0xff]
        %v4390 = vld [vmem:[#allocation3 + $0x140] sm:$0xff]
        %v4391 = vld [vmem:[#allocation3 + $0x148] sm:$0xff]
        %v4392 = vld [vmem:[#allocation3 + $0x150] sm:$0xff]
        %v4393 = vld [vmem:[#allocation3 + $0x158] sm:$0xff]
        %v4394 = vld [vmem:[#allocation3 + $0x160] sm:$0xff]
        %v4395 = vld [vmem:[#allocation3 + $0x168] sm:$0xff]
        %v4396 = vld [vmem:[#allocation3 + $0x170] sm:$0xff]
        %v4397 = vld [vmem:[#allocation3 + $0x178] sm:$0xff]
        %v4398 = vld [vmem:[#allocation3 + $0x180] sm:$0xff]
        %v4399 = vld [vmem:[#allocation3 + $0x188] sm:$0xff]
        %v4400 = vld [vmem:[#allocation3 + $0x190] sm:$0xff]
        %v4401 = vld [vmem:[#allocation3 + $0x198] sm:$0xff]
        %v4402 = vld [vmem:[#allocation3 + $0x1a0] sm:$0xff]
        %v4403 = vld [vmem:[#allocation3 + $0x1a8] sm:$0xff]
        %v4404 = vld [vmem:[#allocation3 + $0x1b0] sm:$0xff]
        %v4405 = vld [vmem:[#allocation3 + $0x1b8] sm:$0xff]
        %v4406 = vld [vmem:[#allocation3 + $0x1c0] sm:$0xff]
        %v4407 = vld [vmem:[#allocation3 + $0x1c8] sm:$0xff]
        %v4408 = vld [vmem:[#allocation3 + $0x1d0] sm:$0xff]
        %v4409 = vld [vmem:[#allocation3 + $0x1d8] sm:$0xff]
        %v4410 = vld [vmem:[#allocation3 + $0x1e0] sm:$0xff]
        %v4411 = vld [vmem:[#allocation3 + $0x1e8] sm:$0xff]
        %v4412 = vld [vmem:[#allocation3 + $0x1f0] sm:$0xff]
        %v4413 = vld [vmem:[#allocation3 + $0x1f8] sm:$0xff]
        %v4414 = vld [vmem:[#allocation3 + $0x200] sm:$0xff]
        %v4415 = vld [vmem:[#allocation3 + $0x208] sm:$0xff]
        %v4416 = vld [vmem:[#allocation3 + $0x210] sm:$0xff]
        %v4417 = vld [vmem:[#allocation3 + $0x218] sm:$0xff]
        %v4418 = vld [vmem:[#allocation3 + $0x220] sm:$0xff]
        %v4419 = vld [vmem:[#allocation3 + $0x228] sm:$0xff]
        %v4420 = vld [vmem:[#allocation3 + $0x230] sm:$0xff]
        %v4421 = vld [vmem:[#allocation3 + $0x238] sm:$0xff]
        %v4422 = vld [vmem:[#allocation3 + $0x240] sm:$0xff]
        %v4423 = vld [vmem:[#allocation3 + $0x248] sm:$0xff]
        %v4424 = vld [vmem:[#allocation3 + $0x250] sm:$0xff]
        %v4425 = vld [vmem:[#allocation3 + $0x258] sm:$0xff]
        %v4426 = vld [vmem:[#allocation3 + $0x260] sm:$0xff]
        %v4427 = vld [vmem:[#allocation3 + $0x268] sm:$0xff]
        %v4428 = vld [vmem:[#allocation3 + $0x270] sm:$0xff]
        %v4429 = vld [vmem:[#allocation3 + $0x278] sm:$0xff]
        %v4430 = vld [vmem:[#allocation3 + $0x280] sm:$0xff]
        %v4431 = vld [vmem:[#allocation3 + $0x288] sm:$0xff]
        %v4432 = vld [vmem:[#allocation3 + $0x290] sm:$0xff]
        %v4433 = vld [vmem:[#allocation3 + $0x298] sm:$0xff]
        %v4434 = vld [vmem:[#allocation3 + $0x2a0] sm:$0xff]
        %v4435 = vld [vmem:[#allocation3 + $0x2a8] sm:$0xff]
        %v4436 = vld [vmem:[#allocation3 + $0x2b0] sm:$0xff]
        %v4437 = vld [vmem:[#allocation3 + $0x2b8] sm:$0xff]
        %v4438 = vld [vmem:[#allocation3 + $0x2c0] sm:$0xff]
        %v4439 = vld [vmem:[#allocation3 + $0x2c8] sm:$0xff]
        %v4440 = vld [vmem:[#allocation3 + $0x2d0] sm:$0xff]
        %v4441 = vld [vmem:[#allocation3 + $0x2d8] sm:$0xff]
        %v4442 = vld [vmem:[#allocation3 + $0x2e0] sm:$0xff]
        %v4443 = vld [vmem:[#allocation3 + $0x2e8] sm:$0xff]
        %v4444 = vld [vmem:[#allocation3 + $0x2f0] sm:$0xff]
        %v4445 = vld [vmem:[#allocation3 + $0x2f8] sm:$0xff]
        %v4446 = vld [vmem:[#allocation3 + $0x300] sm:$0xff]
        %v4447 = vld [vmem:[#allocation3 + $0x308] sm:$0xff]
        %v4448 = vld [vmem:[#allocation3 + $0x310] sm:$0xff]
        %v4449 = vld [vmem:[#allocation3 + $0x318] sm:$0xff]
        %v4450 = vld [vmem:[#allocation3 + $0x320] sm:$0xff]
        %v4451 = vld [vmem:[#allocation3 + $0x328] sm:$0xff]
        %v4452 = vld [vmem:[#allocation3 + $0x330] sm:$0xff]
        %v4453 = vld [vmem:[#allocation3 + $0x338] sm:$0xff]
        %v4454 = vld [vmem:[#allocation3 + $0x340] sm:$0xff]
        %v4455 = vld [vmem:[#allocation3 + $0x348] sm:$0xff]
        %v4456 = vld [vmem:[#allocation3 + $0x350] sm:$0xff]
        %v4457 = vld [vmem:[#allocation3 + $0x358] sm:$0xff]
        %v4458 = vld [vmem:[#allocation3 + $0x360] sm:$0xff]
        %v4459 = vld [vmem:[#allocation3 + $0x368] sm:$0xff]
        %v4460 = vld [vmem:[#allocation3 + $0x370] sm:$0xff]
        %v4461 = vld [vmem:[#allocation3 + $0x378] sm:$0xff]
        %v4462 = vld [vmem:[#allocation3 + $0x380] sm:$0xff]
        %v4463 = vld [vmem:[#allocation3 + $0x388] sm:$0xff]
        %v4464 = vld [vmem:[#allocation3 + $0x390] sm:$0xff]
        %v4465 = vld [vmem:[#allocation3 + $0x398] sm:$0xff]
        %v4466 = vld [vmem:[#allocation3 + $0x3a0] sm:$0xff]
        %v4467 = vld [vmem:[#allocation3 + $0x3a8] sm:$0xff]
        %v4468 = vld [vmem:[#allocation3 + $0x3b0] sm:$0xff]
        %v4469 = vld [vmem:[#allocation3 + $0x3b8] sm:$0xff]
        %v4470 = vld [vmem:[#allocation3 + $0x3c0] sm:$0xff]
        %v4471 = vld [vmem:[#allocation3 + $0x3c8] sm:$0xff]
        %v4472 = vld [vmem:[#allocation3 + $0x3d0] sm:$0xff]
        %v4473 = vld [vmem:[#allocation3 + $0x3d8] sm:$0xff]
        %v4474 = vld [vmem:[#allocation3 + $0x3e0] sm:$0xff]
        %v4475 = vld [vmem:[#allocation3 + $0x3e8] sm:$0xff]
        %v4476 = vld [vmem:[#allocation3 + $0x3f0] sm:$0xff]
        %v4477 = vld [vmem:[#allocation3 + $0x3f8] sm:$0xff]
        %v4478 = vld [vmem:[#allocation3 + $0x400] sm:$0xff]
        %v4479 = vld [vmem:[#allocation3 + $0x408] sm:$0xff]
        %v4480 = vld [vmem:[#allocation3 + $0x410] sm:$0xff]
        %v4481 = vld [vmem:[#allocation3 + $0x418] sm:$0xff]
        %v4482 = vld [vmem:[#allocation3 + $0x420] sm:$0xff]
        %v4483 = vld [vmem:[#allocation3 + $0x428] sm:$0xff]
        %v4484 = vld [vmem:[#allocation3 + $0x430] sm:$0xff]
        %v4485 = vld [vmem:[#allocation3 + $0x438] sm:$0xff]
        %v4486 = vld [vmem:[#allocation3 + $0x440] sm:$0xff]
        %v4487 = vld [vmem:[#allocation3 + $0x448] sm:$0xff]
        %v4488 = vld [vmem:[#allocation3 + $0x450] sm:$0xff]
        %v4489 = vld [vmem:[#allocation3 + $0x458] sm:$0xff]
        %v4490 = vld [vmem:[#allocation3 + $0x460] sm:$0xff]
        %v4491 = vld [vmem:[#allocation3 + $0x468] sm:$0xff]
        %v4492 = vld [vmem:[#allocation3 + $0x470] sm:$0xff]
        %v4493 = vld [vmem:[#allocation3 + $0x478] sm:$0xff]
        %v4494 = vld [vmem:[#allocation9] sm:$0xf]
        %v4495 = vld [vmem:[#allocation9 + $0x4] sm:$0xf]
        %v4496 = vld [vmem:[#allocation9 + $0x8] sm:$0xf]
        %v4497 = vld [vmem:[#allocation9 + $0xc] sm:$0xf]
        %v4498 = vld [vmem:[#allocation9 + $0x10] sm:$0xf]
        %v4499 = vld [vmem:[#allocation9 + $0x14] sm:$0xf]
        %v4500 = vld [vmem:[#allocation9 + $0x18] sm:$0xf]
        %v4501 = vld [vmem:[#allocation9 + $0x1c] sm:$0xf]
        %v4502 = vld [vmem:[#allocation9 + $0x20] sm:$0xf]
        %v4503 = vld [vmem:[#allocation9 + $0x24] sm:$0xf]
        %v4504 = vld [vmem:[#allocation9 + $0x28] sm:$0xf]
        %v4505 = vld [vmem:[#allocation9 + $0x2c] sm:$0xf]
        %v4506 = vld [vmem:[#allocation9 + $0x30] sm:$0xf]
        %v4507 = vld [vmem:[#allocation9 + $0x34] sm:$0xf]
        %v4508 = vld [vmem:[#allocation9 + $0x38] sm:$0xf]
        %v4509 = vld [vmem:[#allocation9 + $0x3c] sm:$0xf]
        %v4510 = vld [vmem:[#allocation9 + $0x40] sm:$0xf]
        %v4511 = vld [vmem:[#allocation9 + $0x44] sm:$0xf]
        %v4512 = vld [vmem:[#allocation9 + $0x48] sm:$0xf]
        %v4513 = vld [vmem:[#allocation9 + $0x4c] sm:$0xf]
        %v4514 = vld [vmem:[#allocation9 + $0x50] sm:$0xf]
        %v4515 = vld [vmem:[#allocation9 + $0x54] sm:$0xf]
        %v4516 = vld [vmem:[#allocation9 + $0x58] sm:$0xf]
        %v4517 = vld [vmem:[#allocation9 + $0x5c] sm:$0xf]
        %v4518 = vld [vmem:[#allocation9 + $0x60] sm:$0xf]
        %v4519 = vld [vmem:[#allocation9 + $0x64] sm:$0xf]
        %v4520 = vld [vmem:[#allocation9 + $0x68] sm:$0xf]
        %v4521 = vld [vmem:[#allocation9 + $0x6c] sm:$0xf]
        %v4522 = vld [vmem:[#allocation9 + $0x70] sm:$0xf]
        %v4523 = vld [vmem:[#allocation9 + $0x74] sm:$0xf]
        %v4524 = vld [vmem:[#allocation9 + $0x78] sm:$0xf]
        %v4525 = vld [vmem:[#allocation9 + $0x7c] sm:$0xf]
        %v4526 = vld [vmem:[#allocation9 + $0x80] sm:$0xf]
        %v4527 = vld [vmem:[#allocation9 + $0x84] sm:$0xf]
        %v4528 = vld [vmem:[#allocation9 + $0x88] sm:$0xf]
        %v4529 = vld [vmem:[#allocation9 + $0x8c] sm:$0xf]
        %v4530 = vld [vmem:[#allocation9 + $0x90] sm:$0xf]
        %v4531 = vld [vmem:[#allocation9 + $0x94] sm:$0xf]
        %v4532 = vld [vmem:[#allocation9 + $0x98] sm:$0xf]
        %v4533 = vld [vmem:[#allocation9 + $0x9c] sm:$0xf]
        %v4534 = vld [vmem:[#allocation9 + $0xa0] sm:$0xf]
        %v4535 = vld [vmem:[#allocation9 + $0xa4] sm:$0xf]
        %v4536 = vld [vmem:[#allocation9 + $0xa8] sm:$0xf]
        %v4537 = vld [vmem:[#allocation9 + $0xac] sm:$0xf]
        %v4538 = vld [vmem:[#allocation9 + $0xb0] sm:$0xf]
        %v4539 = vld [vmem:[#allocation9 + $0xb4] sm:$0xf]
        %v4540 = vld [vmem:[#allocation9 + $0xb8] sm:$0xf]
        %v4541 = vld [vmem:[#allocation9 + $0xbc] sm:$0xf]
        %v4542 = vld [vmem:[#allocation9 + $0xc0] sm:$0xf]
        %v4543 = vld [vmem:[#allocation9 + $0xc4] sm:$0xf]
        %v4544 = vld [vmem:[#allocation9 + $0xc8] sm:$0xf]
        %v4545 = vld [vmem:[#allocation9 + $0xcc] sm:$0xf]
        %v4546 = vld [vmem:[#allocation9 + $0xd0] sm:$0xf]
        %v4547 = vld [vmem:[#allocation9 + $0xd4] sm:$0xf]
        %v4548 = vld [vmem:[#allocation9 + $0xd8] sm:$0xf]
        %v4549 = vld [vmem:[#allocation9 + $0xdc] sm:$0xf]
        %v4550 = vld [vmem:[#allocation9 + $0xe0] sm:$0xf]
        %v4551 = vld [vmem:[#allocation9 + $0xe4] sm:$0xf]
        %v4552 = vld [vmem:[#allocation9 + $0xe8] sm:$0xf]
        %v4553 = vld [vmem:[#allocation9 + $0xec] sm:$0xf]
        %v4554 = vld [vmem:[#allocation9 + $0xf0] sm:$0xf]
        %v4555 = vld [vmem:[#allocation9 + $0xf4] sm:$0xf]
        %v4556 = vld [vmem:[#allocation9 + $0xf8] sm:$0xf]
        %v4557 = vld [vmem:[#allocation9 + $0xfc] sm:$0xf]
        %v4558 = vld [vmem:[#allocation9 + $0x100] sm:$0xf]
        %v4559 = vld [vmem:[#allocation9 + $0x104] sm:$0xf]
        %v4560 = vld [vmem:[#allocation9 + $0x108] sm:$0xf]
        %v4561 = vld [vmem:[#allocation9 + $0x10c] sm:$0xf]
        %v4562 = vld [vmem:[#allocation9 + $0x110] sm:$0xf]
        %v4563 = vld [vmem:[#allocation9 + $0x114] sm:$0xf]
        %v4564 = vld [vmem:[#allocation9 + $0x118] sm:$0xf]
        %v4565 = vld [vmem:[#allocation9 + $0x11c] sm:$0xf]
        %v4566 = vld [vmem:[#allocation9 + $0x120] sm:$0xf]
        %v4567 = vld [vmem:[#allocation9 + $0x124] sm:$0xf]
        %v4568 = vld [vmem:[#allocation9 + $0x128] sm:$0xf]
        %v4569 = vld [vmem:[#allocation9 + $0x12c] sm:$0xf]
        %v4570 = vld [vmem:[#allocation9 + $0x130] sm:$0xf]
        %v4571 = vld [vmem:[#allocation9 + $0x134] sm:$0xf]
        %v4572 = vld [vmem:[#allocation9 + $0x138] sm:$0xf]
        %v4573 = vld [vmem:[#allocation9 + $0x13c] sm:$0xf]
        %v4574 = vld [vmem:[#allocation9 + $0x140] sm:$0xf]
        %v4575 = vld [vmem:[#allocation9 + $0x144] sm:$0xf]
        %v4576 = vld [vmem:[#allocation9 + $0x148] sm:$0xf]
        %v4577 = vld [vmem:[#allocation9 + $0x14c] sm:$0xf]
        %v4578 = vld [vmem:[#allocation9 + $0x150] sm:$0xf]
        %v4579 = vld [vmem:[#allocation9 + $0x154] sm:$0xf]
        %v4580 = vld [vmem:[#allocation9 + $0x158] sm:$0xf]
        %v4581 = vld [vmem:[#allocation9 + $0x15c] sm:$0xf]
        %v4582 = vld [vmem:[#allocation9 + $0x160] sm:$0xf]
        %v4583 = vld [vmem:[#allocation9 + $0x164] sm:$0xf]
        %v4584 = vld [vmem:[#allocation9 + $0x168] sm:$0xf]
        %v4585 = vld [vmem:[#allocation9 + $0x16c] sm:$0xf]
        %v4586 = vld [vmem:[#allocation9 + $0x170] sm:$0xf]
        %v4587 = vld [vmem:[#allocation9 + $0x174] sm:$0xf]
        %v4588 = vld [vmem:[#allocation9 + $0x178] sm:$0xf]
        %v4589 = vld [vmem:[#allocation9 + $0x17c] sm:$0xf]
        %v4590 = vld [vmem:[#allocation9 + $0x180] sm:$0xf]
        %v4591 = vld [vmem:[#allocation9 + $0x184] sm:$0xf]
        %v4592 = vld [vmem:[#allocation9 + $0x188] sm:$0xf]
        %v4593 = vld [vmem:[#allocation9 + $0x18c] sm:$0xf]
        %v4594 = vld [vmem:[#allocation9 + $0x190] sm:$0xf]
        %v4595 = vld [vmem:[#allocation9 + $0x194] sm:$0xf]
        %v4596 = vld [vmem:[#allocation9 + $0x198] sm:$0xf]
        %v4597 = vld [vmem:[#allocation9 + $0x19c] sm:$0xf]
        %v4598 = vld [vmem:[#allocation9 + $0x1a0] sm:$0xf]
        %v4599 = vld [vmem:[#allocation9 + $0x1a4] sm:$0xf]
        %v4600 = vld [vmem:[#allocation9 + $0x1a8] sm:$0xf]
        %v4601 = vld [vmem:[#allocation9 + $0x1ac] sm:$0xf]
        %v4602 = vld [vmem:[#allocation9 + $0x1b0] sm:$0xf]
        %v4603 = vld [vmem:[#allocation9 + $0x1b4] sm:$0xf]
        %v4604 = vld [vmem:[#allocation9 + $0x1b8] sm:$0xf]
        %v4605 = vld [vmem:[#allocation9 + $0x1bc] sm:$0xf]
        %v4606 = vld [vmem:[#allocation9 + $0x1c0] sm:$0xf]
        %v4607 = vld [vmem:[#allocation9 + $0x1c4] sm:$0xf]
        %v4608 = vld [vmem:[#allocation9 + $0x1c8] sm:$0xf]
        %v4609 = vld [vmem:[#allocation9 + $0x1cc] sm:$0xf]
        %v4610 = vld [vmem:[#allocation9 + $0x1d0] sm:$0xf]
        %v4611 = vld [vmem:[#allocation9 + $0x1d4] sm:$0xf]
        %v4612 = vld [vmem:[#allocation9 + $0x1d8] sm:$0xf]
        %v4613 = vld [vmem:[#allocation9 + $0x1dc] sm:$0xf]
        %v4614 = vld [vmem:[#allocation9 + $0x1e0] sm:$0xf]
        %v4615 = vld [vmem:[#allocation9 + $0x1e4] sm:$0xf]
        %v4616 = vld [vmem:[#allocation9 + $0x1e8] sm:$0xf]
        %v4617 = vld [vmem:[#allocation9 + $0x1ec] sm:$0xf]
        %v4618 = vld [vmem:[#allocation9 + $0x1f0] sm:$0xf]
        %v4619 = vld [vmem:[#allocation9 + $0x1f4] sm:$0xf]
        %v4620 = vld [vmem:[#allocation9 + $0x1f8] sm:$0xf]
        %v4621 = vld [vmem:[#allocation9 + $0x1fc] sm:$0xf]
        %v4622 = vld [vmem:[#allocation9 + $0x200] sm:$0xf]
        %v4623 = vld [vmem:[#allocation9 + $0x204] sm:$0xf]
        %v4624 = vld [vmem:[#allocation9 + $0x208] sm:$0xf]
        %v4625 = vld [vmem:[#allocation9 + $0x20c] sm:$0xf]
        %v4626 = vld [vmem:[#allocation9 + $0x210] sm:$0xf]
        %v4627 = vld [vmem:[#allocation9 + $0x214] sm:$0xf]
        %v4628 = vld [vmem:[#allocation9 + $0x218] sm:$0xf]
        %v4629 = vld [vmem:[#allocation9 + $0x21c] sm:$0xf]
        %v4630 = vld [vmem:[#allocation9 + $0x220] sm:$0xf]
        %v4631 = vld [vmem:[#allocation9 + $0x224] sm:$0xf]
        %v4632 = vld [vmem:[#allocation9 + $0x228] sm:$0xf]
        %v4633 = vld [vmem:[#allocation9 + $0x22c] sm:$0xf]
        %v4634 = vld [vmem:[#allocation9 + $0x230] sm:$0xf]
        %v4635 = vld [vmem:[#allocation9 + $0x234] sm:$0xf]
        %v4636 = vld [vmem:[#allocation9 + $0x238] sm:$0xf]
        %v4637 = vld [vmem:[#allocation9 + $0x23c] sm:$0xf]
        %v4782 = vunpack.c.l.b16 %v4494
        %v4783 = vunpack.c.l.b16 %v4495
        %v4784 = vunpack.c.l.b16 %v4496
        %v4785 = vunpack.c.l.b16 %v4497
        %v4786 = vunpack.c.l.b16 %v4498
        %v4787 = vunpack.c.l.b16 %v4499
        %v4788 = vunpack.c.l.b16 %v4500
        %v4789 = vunpack.c.l.b16 %v4501
        %v4790 = vunpack.c.l.b16 %v4502
        %v4791 = vunpack.c.l.b16 %v4503
        %v4792 = vunpack.c.l.b16 %v4504
        %v4793 = vunpack.c.l.b16 %v4505
        %v4794 = vunpack.c.l.b16 %v4506
        %v4795 = vunpack.c.l.b16 %v4507
        %v4796 = vunpack.c.l.b16 %v4508
        %v4797 = vunpack.c.l.b16 %v4509
        %v4798 = vunpack.c.l.b16 %v4510
        %v4799 = vunpack.c.l.b16 %v4511
        %v4800 = vunpack.c.l.b16 %v4512
        %v4801 = vunpack.c.l.b16 %v4513
        %v4802 = vunpack.c.l.b16 %v4514
        %v4803 = vunpack.c.l.b16 %v4515
        %v4804 = vunpack.c.l.b16 %v4516
        %v4805 = vunpack.c.l.b16 %v4517
        %v4806 = vunpack.c.l.b16 %v4518
        %v4807 = vunpack.c.l.b16 %v4519
        %v4808 = vunpack.c.l.b16 %v4520
        %v4809 = vunpack.c.l.b16 %v4521
        %v4810 = vunpack.c.l.b16 %v4522
        %v4811 = vunpack.c.l.b16 %v4523
        %v4812 = vunpack.c.l.b16 %v4524
        %v4813 = vunpack.c.l.b16 %v4525
        %v4814 = vunpack.c.l.b16 %v4526
        %v4815 = vunpack.c.l.b16 %v4527
        %v4816 = vunpack.c.l.b16 %v4528
        %v4817 = vunpack.c.l.b16 %v4529
        %v4818 = vunpack.c.l.b16 %v4530
        %v4819 = vunpack.c.l.b16 %v4531
        %v4820 = vunpack.c.l.b16 %v4532
        %v4821 = vunpack.c.l.b16 %v4533
        %v4822 = vunpack.c.l.b16 %v4534
        %v4823 = vunpack.c.l.b16 %v4535
        %v4824 = vunpack.c.l.b16 %v4536
        %v4825 = vunpack.c.l.b16 %v4537
        %v4826 = vunpack.c.l.b16 %v4538
        %v4827 = vunpack.c.l.b16 %v4539
        %v4828 = vunpack.c.l.b16 %v4540
        %v4829 = vunpack.c.l.b16 %v4541
        %v4830 = vunpack.c.l.b16 %v4542
        %v4831 = vunpack.c.l.b16 %v4543
        %v4832 = vunpack.c.l.b16 %v4544
        %v4833 = vunpack.c.l.b16 %v4545
        %v4834 = vunpack.c.l.b16 %v4546
        %v4835 = vunpack.c.l.b16 %v4547
        %v4836 = vunpack.c.l.b16 %v4548
        %v4837 = vunpack.c.l.b16 %v4549
        %v4838 = vunpack.c.l.b16 %v4550
        %v4839 = vunpack.c.l.b16 %v4551
        %v4840 = vunpack.c.l.b16 %v4552
        %v4841 = vunpack.c.l.b16 %v4553
        %v4842 = vunpack.c.l.b16 %v4554
        %v4843 = vunpack.c.l.b16 %v4555
        %v4844 = vunpack.c.l.b16 %v4556
        %v4845 = vunpack.c.l.b16 %v4557
        %v4846 = vunpack.c.l.b16 %v4558
        %v4847 = vunpack.c.l.b16 %v4559
        %v4848 = vunpack.c.l.b16 %v4560
        %v4849 = vunpack.c.l.b16 %v4561
        %v4850 = vunpack.c.l.b16 %v4562
        %v4851 = vunpack.c.l.b16 %v4563
        %v4852 = vunpack.c.l.b16 %v4564
        %v4853 = vunpack.c.l.b16 %v4565
        %v4854 = vunpack.c.l.b16 %v4566
        %v4855 = vunpack.c.l.b16 %v4567
        %v4856 = vunpack.c.l.b16 %v4568
        %v4857 = vunpack.c.l.b16 %v4569
        %v4858 = vunpack.c.l.b16 %v4570
        %v4859 = vunpack.c.l.b16 %v4571
        %v4860 = vunpack.c.l.b16 %v4572
        %v4861 = vunpack.c.l.b16 %v4573
        %v4862 = vunpack.c.l.b16 %v4574
        %v4863 = vunpack.c.l.b16 %v4575
        %v4864 = vunpack.c.l.b16 %v4576
        %v4865 = vunpack.c.l.b16 %v4577
        %v4866 = vunpack.c.l.b16 %v4578
        %v4867 = vunpack.c.l.b16 %v4579
        %v4868 = vunpack.c.l.b16 %v4580
        %v4869 = vunpack.c.l.b16 %v4581
        %v4870 = vunpack.c.l.b16 %v4582
        %v4871 = vunpack.c.l.b16 %v4583
        %v4872 = vunpack.c.l.b16 %v4584
        %v4873 = vunpack.c.l.b16 %v4585
        %v4874 = vunpack.c.l.b16 %v4586
        %v4875 = vunpack.c.l.b16 %v4587
        %v4876 = vunpack.c.l.b16 %v4588
        %v4877 = vunpack.c.l.b16 %v4589
        %v4878 = vunpack.c.l.b16 %v4590
        %v4879 = vunpack.c.l.b16 %v4591
        %v4880 = vunpack.c.l.b16 %v4592
        %v4881 = vunpack.c.l.b16 %v4593
        %v4882 = vunpack.c.l.b16 %v4594
        %v4883 = vunpack.c.l.b16 %v4595
        %v4884 = vunpack.c.l.b16 %v4596
        %v4885 = vunpack.c.l.b16 %v4597
        %v4886 = vunpack.c.l.b16 %v4598
        %v4887 = vunpack.c.l.b16 %v4599
        %v4888 = vunpack.c.l.b16 %v4600
        %v4889 = vunpack.c.l.b16 %v4601
        %v4890 = vunpack.c.l.b16 %v4602
        %v4891 = vunpack.c.l.b16 %v4603
        %v4892 = vunpack.c.l.b16 %v4604
        %v4893 = vunpack.c.l.b16 %v4605
        %v4894 = vunpack.c.l.b16 %v4606
        %v4895 = vunpack.c.l.b16 %v4607
        %v4896 = vunpack.c.l.b16 %v4608
        %v4897 = vunpack.c.l.b16 %v4609
        %v4898 = vunpack.c.l.b16 %v4610
        %v4899 = vunpack.c.l.b16 %v4611
        %v4900 = vunpack.c.l.b16 %v4612
        %v4901 = vunpack.c.l.b16 %v4613
        %v4902 = vunpack.c.l.b16 %v4614
        %v4903 = vunpack.c.l.b16 %v4615
        %v4904 = vunpack.c.l.b16 %v4616
        %v4905 = vunpack.c.l.b16 %v4617
        %v4906 = vunpack.c.l.b16 %v4618
        %v4907 = vunpack.c.l.b16 %v4619
        %v4908 = vunpack.c.l.b16 %v4620
        %v4909 = vunpack.c.l.b16 %v4621
        %v4910 = vunpack.c.l.b16 %v4622
        %v4911 = vunpack.c.l.b16 %v4623
        %v4912 = vunpack.c.l.b16 %v4624
        %v4913 = vunpack.c.l.b16 %v4625
        %v4914 = vunpack.c.l.b16 %v4626
        %v4915 = vunpack.c.l.b16 %v4627
        %v4916 = vunpack.c.l.b16 %v4628
        %v4917 = vunpack.c.l.b16 %v4629
        %v4918 = vunpack.c.l.b16 %v4630
        %v4919 = vunpack.c.l.b16 %v4631
        %v4920 = vunpack.c.l.b16 %v4632
        %v4921 = vunpack.c.l.b16 %v4633
        %v4922 = vunpack.c.l.b16 %v4634
        %v4923 = vunpack.c.l.b16 %v4635
        %v4924 = vunpack.c.l.b16 %v4636
        %v4925 = vunpack.c.l.b16 %v4637
        %v4926 = vpack.c.b16 %v4783, %v4782
        %v4927 = vpack.c.b16 %v4785, %v4784
        %v4928 = vpack.c.b16 %v4787, %v4786
        %v4929 = vpack.c.b16 %v4789, %v4788
        %v4930 = vpack.c.b16 %v4791, %v4790
        %v4931 = vpack.c.b16 %v4793, %v4792
        %v4932 = vpack.c.b16 %v4795, %v4794
        %v4933 = vpack.c.b16 %v4797, %v4796
        %v4934 = vpack.c.b16 %v4799, %v4798
        %v4935 = vpack.c.b16 %v4801, %v4800
        %v4936 = vpack.c.b16 %v4803, %v4802
        %v4937 = vpack.c.b16 %v4805, %v4804
        %v4938 = vpack.c.b16 %v4807, %v4806
        %v4939 = vpack.c.b16 %v4809, %v4808
        %v4940 = vpack.c.b16 %v4811, %v4810
        %v4941 = vpack.c.b16 %v4813, %v4812
        %v4942 = vpack.c.b16 %v4815, %v4814
        %v4943 = vpack.c.b16 %v4817, %v4816
        %v4944 = vpack.c.b16 %v4819, %v4818
        %v4945 = vpack.c.b16 %v4821, %v4820
        %v4946 = vpack.c.b16 %v4823, %v4822
        %v4947 = vpack.c.b16 %v4825, %v4824
        %v4948 = vpack.c.b16 %v4827, %v4826
        %v4949 = vpack.c.b16 %v4829, %v4828
        %v4950 = vpack.c.b16 %v4831, %v4830
        %v4951 = vpack.c.b16 %v4833, %v4832
        %v4952 = vpack.c.b16 %v4835, %v4834
        %v4953 = vpack.c.b16 %v4837, %v4836
        %v4954 = vpack.c.b16 %v4839, %v4838
        %v4955 = vpack.c.b16 %v4841, %v4840
        %v4956 = vpack.c.b16 %v4843, %v4842
        %v4957 = vpack.c.b16 %v4845, %v4844
        %v4958 = vpack.c.b16 %v4847, %v4846
        %v4959 = vpack.c.b16 %v4849, %v4848
        %v4960 = vpack.c.b16 %v4851, %v4850
        %v4961 = vpack.c.b16 %v4853, %v4852
        %v4962 = vpack.c.b16 %v4855, %v4854
        %v4963 = vpack.c.b16 %v4857, %v4856
        %v4964 = vpack.c.b16 %v4859, %v4858
        %v4965 = vpack.c.b16 %v4861, %v4860
        %v4966 = vpack.c.b16 %v4863, %v4862
        %v4967 = vpack.c.b16 %v4865, %v4864
        %v4968 = vpack.c.b16 %v4867, %v4866
        %v4969 = vpack.c.b16 %v4869, %v4868
        %v4970 = vpack.c.b16 %v4871, %v4870
        %v4971 = vpack.c.b16 %v4873, %v4872
        %v4972 = vpack.c.b16 %v4875, %v4874
        %v4973 = vpack.c.b16 %v4877, %v4876
        %v4974 = vpack.c.b16 %v4879, %v4878
        %v4975 = vpack.c.b16 %v4881, %v4880
        %v4976 = vpack.c.b16 %v4883, %v4882
        %v4977 = vpack.c.b16 %v4885, %v4884
        %v4978 = vpack.c.b16 %v4887, %v4886
        %v4979 = vpack.c.b16 %v4889, %v4888
        %v4980 = vpack.c.b16 %v4891, %v4890
        %v4981 = vpack.c.b16 %v4893, %v4892
        %v4982 = vpack.c.b16 %v4895, %v4894
        %v4983 = vpack.c.b16 %v4897, %v4896
        %v4984 = vpack.c.b16 %v4899, %v4898
        %v4985 = vpack.c.b16 %v4901, %v4900
        %v4986 = vpack.c.b16 %v4903, %v4902
        %v4987 = vpack.c.b16 %v4905, %v4904
        %v4988 = vpack.c.b16 %v4907, %v4906
        %v4989 = vpack.c.b16 %v4909, %v4908
        %v4990 = vpack.c.b16 %v4911, %v4910
        %v4991 = vpack.c.b16 %v4913, %v4912
        %v4992 = vpack.c.b16 %v4915, %v4914
        %v4993 = vpack.c.b16 %v4917, %v4916
        %v4994 = vpack.c.b16 %v4919, %v4918
        %v4995 = vpack.c.b16 %v4921, %v4920
        %v4996 = vpack.c.b16 %v4923, %v4922
        %v4997 = vpack.c.b16 %v4925, %v4924
        %5070 = vmatprep.subr.bf16.mxu0 0
        %5071 = vmatpush1.bf16.msra.mxu0 %v4926
        %5072 = vmatprep.subr.bf16.mxu0 0
        %5073 = vmatpush1.bf16.msra.mxu0 %v4927
        %5074 = vmatprep.subr.bf16.mxu0 0
        %5075 = vmatpush1.bf16.msra.mxu0 %v4928
        %5076 = vmatprep.subr.bf16.mxu0 0
        %5077 = vmatpush1.bf16.msra.mxu0 %v4929
        %5078 = vmatprep.subr.bf16.mxu0 0
        %5079 = vmatpush1.bf16.msra.mxu0 %v4930
        %5080 = vmatprep.subr.bf16.mxu0 0
        %5081 = vmatpush1.bf16.msra.mxu0 %v4931
        %5082 = vmatprep.subr.bf16.mxu0 0
        %5083 = vmatpush1.bf16.msra.mxu0 %v4932
        %5084 = vmatprep.subr.bf16.mxu0 0
        %5085 = vmatpush1.bf16.msra.mxu0 %v4933
        %5086 = vmatprep.subr.bf16.mxu0 0
        %5087 = vmatpush1.bf16.msra.mxu0 %v4934
        %5088 = vmatprep.subr.bf16.mxu0 0
        %5089 = vmatpush1.bf16.msra.mxu0 %v4935
        %5090 = vmatprep.subr.bf16.mxu0 0
        %5091 = vmatpush1.bf16.msra.mxu0 %v4936
        %5092 = vmatprep.subr.bf16.mxu0 0
        %5093 = vmatpush1.bf16.msra.mxu0 %v4937
        %5094 = vmatprep.subr.bf16.mxu0 0
        %5095 = vmatpush1.bf16.msra.mxu0 %v4938
        %5096 = vmatprep.subr.bf16.mxu0 0
        %5097 = vmatpush1.bf16.msra.mxu0 %v4939
        %5098 = vmatprep.subr.bf16.mxu0 0
        %5099 = vmatpush1.bf16.msra.mxu0 %v4940
        %5100 = vmatprep.subr.bf16.mxu0 0
        %5101 = vmatpush1.bf16.msra.mxu0 %v4941
        %5102 = vmatprep.mubr.bf16.mxu0 %v4351
        %5103 = vmatmul.mubr.bf16.gmra.mrb[0].mxu0 %v4350
        %v5104 = vpop.f32.mrb[0].mxu0
        %v5105 = vadd.f32 0.0, %v5104
        %v5106 = vpop.f32.mrb[0].mxu0
        %v5107 = vpop.f32.mrb[0].mxu0
        %v5108 = vadd.f32 0.0, %v5107
        %v5109 = vpop.f32.mrb[0].mxu0
        %5110 = vmatprep.mubr.bf16.mxu0 %v4360
        %5111 = vmatmul.mubr.bf16.gmra.mrb[0].mxu0 %v4359
        %v5112 = vpop.f32.mrb[0].mxu0
        %v5113 = vadd.f32 0.0, %v5112
        %v5114 = vpop.f32.mrb[0].mxu0
        %v5115 = vpop.f32.mrb[0].mxu0
        %v5116 = vadd.f32 0.0, %v5115
        %v5117 = vpop.f32.mrb[0].mxu0
        %5118 = vmatprep.mubr.bf16.mxu0 %v4369
        %5119 = vmatmul.mubr.bf16.gmra.mrb[0].mxu0 %v4368
        %v5120 = vpop.f32.mrb[0].mxu0
        %v5121 = vadd.f32 0.0, %v5120
        %v5122 = vpop.f32.mrb[0].mxu0
        %v5123 = vpop.f32.mrb[0].mxu0
        %v5124 = vadd.f32 0.0, %v5123
        %v5125 = vpop.f32.mrb[0].mxu0
        %5126 = vmatprep.mubr.bf16.mxu0 %v4378
        %5127 = vmatmul.mubr.bf16.gmra.mrb[0].mxu0 %v4377
        %v5128 = vpop.f32.mrb[0].mxu0
        %v5129 = vadd.f32 0.0, %v5128
        %v5130 = vpop.f32.mrb[0].mxu0
        %v5131 = vpop.f32.mrb[0].mxu0
        %v5132 = vadd.f32 0.0, %v5131
        %v5133 = vpop.f32.mrb[0].mxu0
        %5134 = vmatprep.mubr.bf16.mxu0 %v4387
        %5135 = vmatmul.mubr.bf16.gmra.mrb[0].mxu0 %v4386
        %v5136 = vpop.f32.mrb[0].mxu0
        %v5137 = vadd.f32 0.0, %v5136
        %v5138 = vpop.f32.mrb[0].mxu0
        %v5139 = vpop.f32.mrb[0].mxu0
        %v5140 = vadd.f32 0.0, %v5139
        %v5141 = vpop.f32.mrb[0].mxu0
        %5142 = vmatprep.mubr.bf16.mxu0 %v4396
        %5143 = vmatmul.mubr.bf16.gmra.mrb[0].mxu0 %v4395
        %v5144 = vpop.f32.mrb[0].mxu0
        %v5145 = vadd.f32 0.0, %v5144
        %v5146 = vpop.f32.mrb[0].mxu0
        %v5147 = vpop.f32.mrb[0].mxu0
        %v5148 = vadd.f32 0.0, %v5147
        %v5149 = vpop.f32.mrb[0].mxu0
        %5150 = vmatprep.mubr.bf16.mxu0 %v4405
        %5151 = vmatmul.mubr.bf16.gmra.mrb[0].mxu0 %v4404
        %v5152 = vpop.f32.mrb[0].mxu0
        %v5153 = vadd.f32 0.0, %v5152
        %v5154 = vpop.f32.mrb[0].mxu0
        %v5155 = vpop.f32.mrb[0].mxu0
        %v5156 = vadd.f32 0.0, %v5155
        %v5157 = vpop.f32.mrb[0].mxu0
        %5158 = vmatprep.mubr.bf16.mxu0 %v4414
        %5159 = vmatmul.mubr.bf16.gmra.mrb[0].mxu0 %v4413
        %v5160 = vpop.f32.mrb[0].mxu0
        %v5161 = vadd.f32 0.0, %v5160
        %v5162 = vpop.f32.mrb[0].mxu0
        %v5163 = vpop.f32.mrb[0].mxu0
        %v5164 = vadd.f32 0.0, %v5163
        %v5165 = vpop.f32.mrb[0].mxu0
        %5166 = vmatprep.mubr.bf16.mxu0 %v4423
        %5167 = vmatmul.mubr.bf16.gmra.mrb[0].mxu0 %v4422
        %v5168 = vpop.f32.mrb[0].mxu0
        %v5169 = vadd.f32 0.0, %v5168
        %v5170 = vpop.f32.mrb[0].mxu0
        %v5171 = vpop.f32.mrb[0].mxu0
        %v5172 = vadd.f32 0.0, %v5171
        %v5173 = vpop.f32.mrb[0].mxu0
        %5174 = vmatprep.mubr.bf16.mxu0 %v4432
        %5175 = vmatmul.mubr.bf16.gmra.mrb[0].mxu0 %v4431
        %v5176 = vpop.f32.mrb[0].mxu0
        %v5177 = vadd.f32 0.0, %v5176
        %v5178 = vpop.f32.mrb[0].mxu0
        %v5179 = vpop.f32.mrb[0].mxu0
        %v5180 = vadd.f32 0.0, %v5179
        %v5181 = vpop.f32.mrb[0].mxu0
        %5182 = vmatprep.mubr.bf16.mxu0 %v4441
        %5183 = vmatmul.mubr.bf16.gmra.mrb[0].mxu0 %v4440
        %v5184 = vpop.f32.mrb[0].mxu0
        %v5185 = vadd.f32 0.0, %v5184
        %v5186 = vpop.f32.mrb[0].mxu0
        %v5187 = vpop.f32.mrb[0].mxu0
        %v5188 = vadd.f32 0.0, %v5187
        %v5189 = vpop.f32.mrb[0].mxu0
        %5190 = vmatprep.mubr.bf16.mxu0 %v4450
        %5191 = vmatmul.mubr.bf16.gmra.mrb[0].mxu0 %v4449
        %v5192 = vpop.f32.mrb[0].mxu0
        %v5193 = vadd.f32 0.0, %v5192
        %v5194 = vpop.f32.mrb[0].mxu0
        %v5195 = vpop.f32.mrb[0].mxu0
        %v5196 = vadd.f32 0.0, %v5195
        %v5197 = vpop.f32.mrb[0].mxu0
        %5198 = vmatprep.mubr.bf16.mxu0 %v4459
        %5199 = vmatmul.mubr.bf16.gmra.mrb[0].mxu0 %v4458
        %v5200 = vpop.f32.mrb[0].mxu0
        %v5201 = vadd.f32 0.0, %v5200
        %v5202 = vpop.f32.mrb[0].mxu0
        %v5203 = vpop.f32.mrb[0].mxu0
        %v5204 = vadd.f32 0.0, %v5203
        %v5205 = vpop.f32.mrb[0].mxu0
        %5206 = vmatprep.mubr.bf16.mxu0 %v4468
        %5207 = vmatmul.mubr.bf16.gmra.mrb[0].mxu0 %v4467
        %v5208 = vpop.f32.mrb[0].mxu0
        %v5209 = vadd.f32 0.0, %v5208
        %v5210 = vpop.f32.mrb[0].mxu0
        %v5211 = vpop.f32.mrb[0].mxu0
        %v5212 = vadd.f32 0.0, %v5211
        %v5213 = vpop.f32.mrb[0].mxu0
        %5214 = vmatprep.mubr.bf16.mxu0 %v4477
        %5215 = vmatmul.mubr.bf16.gmra.mrb[0].mxu0 %v4476
        %v5216 = vpop.f32.mrb[0].mxu0
        %v5217 = vadd.f32 0.0, %v5216
        %v5218 = vpop.f32.mrb[0].mxu0
        %v5219 = vpop.f32.mrb[0].mxu0
        %v5220 = vadd.f32 0.0, %v5219
        %v5221 = vpop.f32.mrb[0].mxu0
        %5222 = vmatprep.mubr.bf16.mxu0 %v4486
        %5223 = vmatmul.mubr.bf16.gmra.mrb[0].mxu0 %v4485
        %v5224 = vpop.f32.mrb[0].mxu0
        %v5225 = vadd.f32 0.0, %v5224
        %v5226 = vpop.f32.mrb[0].mxu0
        %v5227 = vpop.f32.mrb[0].mxu0
        %v5228 = vadd.f32 0.0, %v5227
        %v5229 = vpop.f32.mrb[0].mxu0
        %5230 = vdwg.mxu0
        %5231 = vmatprep.subr.bf16.mxu0 0
        %5232 = vmatpush1.bf16.msra.mxu0 %v4942
        %5233 = vmatprep.subr.bf16.mxu0 0
        %5234 = vmatpush1.bf16.msra.mxu0 %v4943
        %5235 = vmatprep.subr.bf16.mxu0 0
        %5236 = vmatpush1.bf16.msra.mxu0 %v4944
        %5237 = vmatprep.subr.bf16.mxu0 0
        %5238 = vmatpush1.bf16.msra.mxu0 %v4945
        %5239 = vmatprep.subr.bf16.mxu0 0
        %5240 = vmatpush1.bf16.msra.mxu0 %v4946
        %5241 = vmatprep.subr.bf16.mxu0 0
        %5242 = vmatpush1.bf16.msra.mxu0 %v4947
        %5243 = vmatprep.subr.bf16.mxu0 0
        %5244 = vmatpush1.bf16.msra.mxu0 %v4948
        %5245 = vmatprep.subr.bf16.mxu0 0
        %5246 = vmatpush1.bf16.msra.mxu0 %v4949
        %5247 = vmatprep.subr.bf16.mxu0 0
        %5248 = vmatpush1.bf16.msra.mxu0 %v4950
        %5249 = vmatprep.subr.bf16.mxu0 0
        %5250 = vmatpush1.bf16.msra.mxu0 %v4951
        %5251 = vmatprep.subr.bf16.mxu0 0
        %5252 = vmatpush1.bf16.msra.mxu0 %v4952
        %5253 = vmatprep.subr.bf16.mxu0 0
        %5254 = vmatpush1.bf16.msra.mxu0 %v4953
        %5255 = vmatprep.subr.bf16.mxu0 0
        %5256 = vmatpush1.bf16.msra.mxu0 %v4954
        %5257 = vmatprep.subr.bf16.mxu0 0
        %5258 = vmatpush1.bf16.msra.mxu0 %v4955
        %5259 = vmatprep.subr.bf16.mxu0 0
        %5260 = vmatpush1.bf16.msra.mxu0 %v4956
        %5261 = vmatprep.subr.bf16.mxu0 0
        %5262 = vmatpush1.bf16.msra.mxu0 %v4957
        %5263 = vmatprep.mubr.bf16.mxu0 %v4353
        %5264 = vmatmul.mubr.bf16.gmra.mrb[0].mxu0 %v4352
        %v5265 = vpop.f32.mrb[0].mxu0
        %v5266 = vadd.f32 %v5105, %v5265
        %v5267 = vpop.f32.mrb[0].mxu0
        %v5268 = vpop.f32.mrb[0].mxu0
        %v5269 = vadd.f32 %v5108, %v5268
        %v5270 = vpop.f32.mrb[0].mxu0
        %5271 = vmatprep.mubr.bf16.mxu0 %v4362
        %5272 = vmatmul.mubr.bf16.gmra.mrb[0].mxu0 %v4361
        %v5273 = vpop.f32.mrb[0].mxu0
        %v5274 = vadd.f32 %v5113, %v5273
        %v5275 = vpop.f32.mrb[0].mxu0
        %v5276 = vpop.f32.mrb[0].mxu0
        %v5277 = vadd.f32 %v5116, %v5276
        %v5278 = vpop.f32.mrb[0].mxu0
        %5279 = vmatprep.mubr.bf16.mxu0 %v4371
        %5280 = vmatmul.mubr.bf16.gmra.mrb[0].mxu0 %v4370
        %v5281 = vpop.f32.mrb[0].mxu0
        %v5282 = vadd.f32 %v5121, %v5281
        %v5283 = vpop.f32.mrb[0].mxu0
        %v5284 = vpop.f32.mrb[0].mxu0
        %v5285 = vadd.f32 %v5124, %v5284
        %v5286 = vpop.f32.mrb[0].mxu0
        %5287 = vmatprep.mubr.bf16.mxu0 %v4380
        %5288 = vmatmul.mubr.bf16.gmra.mrb[0].mxu0 %v4379
        %v5289 = vpop.f32.mrb[0].mxu0
        %v5290 = vadd.f32 %v5129, %v5289
        %v5291 = vpop.f32.mrb[0].mxu0
        %v5292 = vpop.f32.mrb[0].mxu0
        %v5293 = vadd.f32 %v5132, %v5292
        %v5294 = vpop.f32.mrb[0].mxu0
        %5295 = vmatprep.mubr.bf16.mxu0 %v4389
        %5296 = vmatmul.mubr.bf16.gmra.mrb[0].mxu0 %v4388
        %v5297 = vpop.f32.mrb[0].mxu0
        %v5298 = vadd.f32 %v5137, %v5297
        %v5299 = vpop.f32.mrb[0].mxu0
        %v5300 = vpop.f32.mrb[0].mxu0
        %v5301 = vadd.f32 %v5140, %v5300
        %v5302 = vpop.f32.mrb[0].mxu0
        %5303 = vmatprep.mubr.bf16.mxu0 %v4398
        %5304 = vmatmul.mubr.bf16.gmra.mrb[0].mxu0 %v4397
        %v5305 = vpop.f32.mrb[0].mxu0
        %v5306 = vadd.f32 %v5145, %v5305
        %v5307 = vpop.f32.mrb[0].mxu0
        %v5308 = vpop.f32.mrb[0].mxu0
        %v5309 = vadd.f32 %v5148, %v5308
        %v5310 = vpop.f32.mrb[0].mxu0
        %5311 = vmatprep.mubr.bf16.mxu0 %v4407
        %5312 = vmatmul.mubr.bf16.gmra.mrb[0].mxu0 %v4406
        %v5313 = vpop.f32.mrb[0].mxu0
        %v5314 = vadd.f32 %v5153, %v5313
        %v5315 = vpop.f32.mrb[0].mxu0
        %v5316 = vpop.f32.mrb[0].mxu0
        %v5317 = vadd.f32 %v5156, %v5316
        %v5318 = vpop.f32.mrb[0].mxu0
        %5319 = vmatprep.mubr.bf16.mxu0 %v4416
        %5320 = vmatmul.mubr.bf16.gmra.mrb[0].mxu0 %v4415
        %v5321 = vpop.f32.mrb[0].mxu0
        %v5322 = vadd.f32 %v5161, %v5321
        %v5323 = vpop.f32.mrb[0].mxu0
        %v5324 = vpop.f32.mrb[0].mxu0
        %v5325 = vadd.f32 %v5164, %v5324
        %v5326 = vpop.f32.mrb[0].mxu0
        %5327 = vmatprep.mubr.bf16.mxu0 %v4425
        %5328 = vmatmul.mubr.bf16.gmra.mrb[0].mxu0 %v4424
        %v5329 = vpop.f32.mrb[0].mxu0
        %v5330 = vadd.f32 %v5169, %v5329
        %v5331 = vpop.f32.mrb[0].mxu0
        %v5332 = vpop.f32.mrb[0].mxu0
        %v5333 = vadd.f32 %v5172, %v5332
        %v5334 = vpop.f32.mrb[0].mxu0
        %5335 = vmatprep.mubr.bf16.mxu0 %v4434
        %5336 = vmatmul.mubr.bf16.gmra.mrb[0].mxu0 %v4433
        %v5337 = vpop.f32.mrb[0].mxu0
        %v5338 = vadd.f32 %v5177, %v5337
        %v5339 = vpop.f32.mrb[0].mxu0
        %v5340 = vpop.f32.mrb[0].mxu0
        %v5341 = vadd.f32 %v5180, %v5340
        %v5342 = vpop.f32.mrb[0].mxu0
        %5343 = vmatprep.mubr.bf16.mxu0 %v4443
        %5344 = vmatmul.mubr.bf16.gmra.mrb[0].mxu0 %v4442
        %v5345 = vpop.f32.mrb[0].mxu0
        %v5346 = vadd.f32 %v5185, %v5345
        %v5347 = vpop.f32.mrb[0].mxu0
        %v5348 = vpop.f32.mrb[0].mxu0
        %v5349 = vadd.f32 %v5188, %v5348
        %v5350 = vpop.f32.mrb[0].mxu0
        %5351 = vmatprep.mubr.bf16.mxu0 %v4452
        %5352 = vmatmul.mubr.bf16.gmra.mrb[0].mxu0 %v4451
        %v5353 = vpop.f32.mrb[0].mxu0
        %v5354 = vadd.f32 %v5193, %v5353
        %v5355 = vpop.f32.mrb[0].mxu0
        %v5356 = vpop.f32.mrb[0].mxu0
        %v5357 = vadd.f32 %v5196, %v5356
        %v5358 = vpop.f32.mrb[0].mxu0
        %5359 = vmatprep.mubr.bf16.mxu0 %v4461
        %5360 = vmatmul.mubr.bf16.gmra.mrb[0].mxu0 %v4460
        %v5361 = vpop.f32.mrb[0].mxu0
        %v5362 = vadd.f32 %v5201, %v5361
        %v5363 = vpop.f32.mrb[0].mxu0
        %v5364 = vpop.f32.mrb[0].mxu0
        %v5365 = vadd.f32 %v5204, %v5364
        %v5366 = vpop.f32.mrb[0].mxu0
        %5367 = vmatprep.mubr.bf16.mxu0 %v4470
        %5368 = vmatmul.mubr.bf16.gmra.mrb[0].mxu0 %v4469
        %v5369 = vpop.f32.mrb[0].mxu0
        %v5370 = vadd.f32 %v5209, %v5369
        %v5371 = vpop.f32.mrb[0].mxu0
        %v5372 = vpop.f32.mrb[0].mxu0
        %v5373 = vadd.f32 %v5212, %v5372
        %v5374 = vpop.f32.mrb[0].mxu0
        %5375 = vmatprep.mubr.bf16.mxu0 %v4479
        %5376 = vmatmul.mubr.bf16.gmra.mrb[0].mxu0 %v4478
        %v5377 = vpop.f32.mrb[0].mxu0
        %v5378 = vadd.f32 %v5217, %v5377
        %v5379 = vpop.f32.mrb[0].mxu0
        %v5380 = vpop.f32.mrb[0].mxu0
        %v5381 = vadd.f32 %v5220, %v5380
        %v5382 = vpop.f32.mrb[0].mxu0
        %5383 = vmatprep.mubr.bf16.mxu0 %v4488
        %5384 = vmatmul.mubr.bf16.gmra.mrb[0].mxu0 %v4487
        %v5385 = vpop.f32.mrb[0].mxu0
        %v5386 = vadd.f32 %v5225, %v5385
        %v5387 = vpop.f32.mrb[0].mxu0
        %v5388 = vpop.f32.mrb[0].mxu0
        %v5389 = vadd.f32 %v5228, %v5388
        %v5390 = vpop.f32.mrb[0].mxu0
        %5391 = vdwg.mxu0
        %5392 = vmatprep.subr.bf16.mxu0 0
        %5393 = vmatpush1.bf16.msra.mxu0 %v4958
        %5394 = vmatprep.subr.bf16.mxu0 0
        %5395 = vmatpush1.bf16.msra.mxu0 %v4959
        %5396 = vmatprep.subr.bf16.mxu0 0
        %5397 = vmatpush1.bf16.msra.mxu0 %v4960
        %5398 = vmatprep.subr.bf16.mxu0 0
        %5399 = vmatpush1.bf16.msra.mxu0 %v4961
        %5400 = vmatprep.subr.bf16.mxu0 0
        %5401 = vmatpush1.bf16.msra.mxu0 %v4962
        %5402 = vmatprep.subr.bf16.mxu0 0
        %5403 = vmatpush1.bf16.msra.mxu0 %v4963
        %5404 = vmatprep.subr.bf16.mxu0 0
        %5405 = vmatpush1.bf16.msra.mxu0 %v4964
        %5406 = vmatprep.subr.bf16.mxu0 0
        %5407 = vmatpush1.bf16.msra.mxu0 %v4965
        %5408 = vmatprep.subr.bf16.mxu0 0
        %5409 = vmatpush1.bf16.msra.mxu0 %v4966
        %5410 = vmatprep.subr.bf16.mxu0 0
        %5411 = vmatpush1.bf16.msra.mxu0 %v4967
        %5412 = vmatprep.subr.bf16.mxu0 0
        %5413 = vmatpush1.bf16.msra.mxu0 %v4968
        %5414 = vmatprep.subr.bf16.mxu0 0
        %5415 = vmatpush1.bf16.msra.mxu0 %v4969
        %5416 = vmatprep.subr.bf16.mxu0 0
        %5417 = vmatpush1.bf16.msra.mxu0 %v4970
        %5418 = vmatprep.subr.bf16.mxu0 0
        %5419 = vmatpush1.bf16.msra.mxu0 %v4971
        %5420 = vmatprep.subr.bf16.mxu0 0
        %5421 = vmatpush1.bf16.msra.mxu0 %v4972
        %5422 = vmatprep.subr.bf16.mxu0 0
        %5423 = vmatpush1.bf16.msra.mxu0 %v4973
        %5424 = vmatprep.mubr.bf16.mxu0 %v4355
        %5425 = vmatmul.mubr.bf16.gmra.mrb[0].mxu0 %v4354
        %v5426 = vpop.f32.mrb[0].mxu0
        %v5427 = vadd.f32 %v5266, %v5426
        %v5428 = vpop.f32.mrb[0].mxu0
        %v5429 = vpop.f32.mrb[0].mxu0
        %v5430 = vadd.f32 %v5269, %v5429
        %v5431 = vpop.f32.mrb[0].mxu0
        %5432 = vmatprep.mubr.bf16.mxu0 %v4364
        %5433 = vmatmul.mubr.bf16.gmra.mrb[0].mxu0 %v4363
        %v5434 = vpop.f32.mrb[0].mxu0
        %v5435 = vadd.f32 %v5274, %v5434
        %v5436 = vpop.f32.mrb[0].mxu0
        %v5437 = vpop.f32.mrb[0].mxu0
        %v5438 = vadd.f32 %v5277, %v5437
        %v5439 = vpop.f32.mrb[0].mxu0
        %5440 = vmatprep.mubr.bf16.mxu0 %v4373
        %5441 = vmatmul.mubr.bf16.gmra.mrb[0].mxu0 %v4372
        %v5442 = vpop.f32.mrb[0].mxu0
        %v5443 = vadd.f32 %v5282, %v5442
        %v5444 = vpop.f32.mrb[0].mxu0
        %v5445 = vpop.f32.mrb[0].mxu0
        %v5446 = vadd.f32 %v5285, %v5445
        %v5447 = vpop.f32.mrb[0].mxu0
        %5448 = vmatprep.mubr.bf16.mxu0 %v4382
        %5449 = vmatmul.mubr.bf16.gmra.mrb[0].mxu0 %v4381
        %v5450 = vpop.f32.mrb[0].mxu0
        %v5451 = vadd.f32 %v5290, %v5450
        %v5452 = vpop.f32.mrb[0].mxu0
        %v5453 = vpop.f32.mrb[0].mxu0
        %v5454 = vadd.f32 %v5293, %v5453
        %v5455 = vpop.f32.mrb[0].mxu0
        %5456 = vmatprep.mubr.bf16.mxu0 %v4391
        %5457 = vmatmul.mubr.bf16.gmra.mrb[0].mxu0 %v4390
        %v5458 = vpop.f32.mrb[0].mxu0
        %v5459 = vadd.f32 %v5298, %v5458
        %v5460 = vpop.f32.mrb[0].mxu0
        %v5461 = vpop.f32.mrb[0].mxu0
        %v5462 = vadd.f32 %v5301, %v5461
        %v5463 = vpop.f32.mrb[0].mxu0
        %5464 = vmatprep.mubr.bf16.mxu0 %v4400
        %5465 = vmatmul.mubr.bf16.gmra.mrb[0].mxu0 %v4399
        %v5466 = vpop.f32.mrb[0].mxu0
        %v5467 = vadd.f32 %v5306, %v5466
        %v5468 = vpop.f32.mrb[0].mxu0
        %v5469 = vpop.f32.mrb[0].mxu0
        %v5470 = vadd.f32 %v5309, %v5469
        %v5471 = vpop.f32.mrb[0].mxu0
        %5472 = vmatprep.mubr.bf16.mxu0 %v4409
        %5473 = vmatmul.mubr.bf16.gmra.mrb[0].mxu0 %v4408
        %v5474 = vpop.f32.mrb[0].mxu0
        %v5475 = vadd.f32 %v5314, %v5474
        %v5476 = vpop.f32.mrb[0].mxu0
        %v5477 = vpop.f32.mrb[0].mxu0
        %v5478 = vadd.f32 %v5317, %v5477
        %v5479 = vpop.f32.mrb[0].mxu0
        %5480 = vmatprep.mubr.bf16.mxu0 %v4418
        %5481 = vmatmul.mubr.bf16.gmra.mrb[0].mxu0 %v4417
        %v5482 = vpop.f32.mrb[0].mxu0
        %v5483 = vadd.f32 %v5322, %v5482
        %v5484 = vpop.f32.mrb[0].mxu0
        %v5485 = vpop.f32.mrb[0].mxu0
        %v5486 = vadd.f32 %v5325, %v5485
        %v5487 = vpop.f32.mrb[0].mxu0
        %5488 = vmatprep.mubr.bf16.mxu0 %v4427
        %5489 = vmatmul.mubr.bf16.gmra.mrb[0].mxu0 %v4426
        %v5490 = vpop.f32.mrb[0].mxu0
        %v5491 = vadd.f32 %v5330, %v5490
        %v5492 = vpop.f32.mrb[0].mxu0
        %v5493 = vpop.f32.mrb[0].mxu0
        %v5494 = vadd.f32 %v5333, %v5493
        %v5495 = vpop.f32.mrb[0].mxu0
        %5496 = vmatprep.mubr.bf16.mxu0 %v4436
        %5497 = vmatmul.mubr.bf16.gmra.mrb[0].mxu0 %v4435
        %v5498 = vpop.f32.mrb[0].mxu0
        %v5499 = vadd.f32 %v5338, %v5498
        %v5500 = vpop.f32.mrb[0].mxu0
        %v5501 = vpop.f32.mrb[0].mxu0
        %v5502 = vadd.f32 %v5341, %v5501
        %v5503 = vpop.f32.mrb[0].mxu0
        %5504 = vmatprep.mubr.bf16.mxu0 %v4445
        %5505 = vmatmul.mubr.bf16.gmra.mrb[0].mxu0 %v4444
        %v5506 = vpop.f32.mrb[0].mxu0
        %v5507 = vadd.f32 %v5346, %v5506
        %v5508 = vpop.f32.mrb[0].mxu0
        %v5509 = vpop.f32.mrb[0].mxu0
        %v5510 = vadd.f32 %v5349, %v5509
        %v5511 = vpop.f32.mrb[0].mxu0
        %5512 = vmatprep.mubr.bf16.mxu0 %v4454
        %5513 = vmatmul.mubr.bf16.gmra.mrb[0].mxu0 %v4453
        %v5514 = vpop.f32.mrb[0].mxu0
        %v5515 = vadd.f32 %v5354, %v5514
        %v5516 = vpop.f32.mrb[0].mxu0
        %v5517 = vpop.f32.mrb[0].mxu0
        %v5518 = vadd.f32 %v5357, %v5517
        %v5519 = vpop.f32.mrb[0].mxu0
        %5520 = vmatprep.mubr.bf16.mxu0 %v4463
        %5521 = vmatmul.mubr.bf16.gmra.mrb[0].mxu0 %v4462
        %v5522 = vpop.f32.mrb[0].mxu0
        %v5523 = vadd.f32 %v5362, %v5522
        %v5524 = vpop.f32.mrb[0].mxu0
        %v5525 = vpop.f32.mrb[0].mxu0
        %v5526 = vadd.f32 %v5365, %v5525
        %v5527 = vpop.f32.mrb[0].mxu0
        %5528 = vmatprep.mubr.bf16.mxu0 %v4472
        %5529 = vmatmul.mubr.bf16.gmra.mrb[0].mxu0 %v4471
        %v5530 = vpop.f32.mrb[0].mxu0
        %v5531 = vadd.f32 %v5370, %v5530
        %v5532 = vpop.f32.mrb[0].mxu0
        %v5533 = vpop.f32.mrb[0].mxu0
        %v5534 = vadd.f32 %v5373, %v5533
        %v5535 = vpop.f32.mrb[0].mxu0
        %5536 = vmatprep.mubr.bf16.mxu0 %v4481
        %5537 = vmatmul.mubr.bf16.gmra.mrb[0].mxu0 %v4480
        %v5538 = vpop.f32.mrb[0].mxu0
        %v5539 = vadd.f32 %v5378, %v5538
        %v5540 = vpop.f32.mrb[0].mxu0
        %v5541 = vpop.f32.mrb[0].mxu0
        %v5542 = vadd.f32 %v5381, %v5541
        %v5543 = vpop.f32.mrb[0].mxu0
        %5544 = vmatprep.mubr.bf16.mxu0 %v4490
        %5545 = vmatmul.mubr.bf16.gmra.mrb[0].mxu0 %v4489
        %v5546 = vpop.f32.mrb[0].mxu0
        %v5547 = vadd.f32 %v5386, %v5546
        %v5548 = vpop.f32.mrb[0].mxu0
        %v5549 = vpop.f32.mrb[0].mxu0
        %v5550 = vadd.f32 %v5389, %v5549
        %v5551 = vpop.f32.mrb[0].mxu0
        %5552 = vdwg.mxu0
        %5553 = vmatprep.subr.bf16.mxu0 0
        %5554 = vmatpush1.bf16.msra.mxu0 %v4974
        %5555 = vmatprep.subr.bf16.mxu0 0
        %5556 = vmatpush1.bf16.msra.mxu0 %v4975
        %5557 = vmatprep.subr.bf16.mxu0 0
        %5558 = vmatpush1.bf16.msra.mxu0 %v4976
        %5559 = vmatprep.subr.bf16.mxu0 0
        %5560 = vmatpush1.bf16.msra.mxu0 %v4977
        %5561 = vmatprep.subr.bf16.mxu0 0
        %5562 = vmatpush1.bf16.msra.mxu0 %v4978
        %5563 = vmatprep.subr.bf16.mxu0 0
        %5564 = vmatpush1.bf16.msra.mxu0 %v4979
        %5565 = vmatprep.subr.bf16.mxu0 0
        %5566 = vmatpush1.bf16.msra.mxu0 %v4980
        %5567 = vmatprep.subr.bf16.mxu0 0
        %5568 = vmatpush1.bf16.msra.mxu0 %v4981
        %5569 = vmatprep.subr.bf16.mxu0 0
        %5570 = vmatpush1.bf16.msra.mxu0 %v4982
        %5571 = vmatprep.subr.bf16.mxu0 0
        %5572 = vmatpush1.bf16.msra.mxu0 %v4983
        %5573 = vmatprep.subr.bf16.mxu0 0
        %5574 = vmatpush1.bf16.msra.mxu0 %v4984
        %5575 = vmatprep.subr.bf16.mxu0 0
        %5576 = vmatpush1.bf16.msra.mxu0 %v4985
        %5577 = vmatprep.subr.bf16.mxu0 0
        %5578 = vmatpush1.bf16.msra.mxu0 %v4986
        %5579 = vmatprep.subr.bf16.mxu0 0
        %5580 = vmatpush1.bf16.msra.mxu0 %v4987
        %5581 = vmatprep.subr.bf16.mxu0 0
        %5582 = vmatpush1.bf16.msra.mxu0 %v4988
        %5583 = vmatprep.subr.bf16.mxu0 0
        %5584 = vmatpush1.bf16.msra.mxu0 %v4989
        %5585 = vmatprep.mubr.bf16.mxu0 %v4357
        %5586 = vmatmul.mubr.bf16.gmra.mrb[0].mxu0 %v4356
        %v5587 = vpop.f32.mrb[0].mxu0
        %v5588 = vadd.f32 %v5427, %v5587
        %v5589 = vpop.f32.mrb[0].mxu0
        %v5590 = vpop.f32.mrb[0].mxu0
        %v5591 = vadd.f32 %v5430, %v5590
        %v5592 = vpop.f32.mrb[0].mxu0
        %5593 = vmatprep.mubr.bf16.mxu0 %v4366
        %5594 = vmatmul.mubr.bf16.gmra.mrb[0].mxu0 %v4365
        %v5595 = vpop.f32.mrb[0].mxu0
        %v5596 = vadd.f32 %v5435, %v5595
        %v5597 = vpop.f32.mrb[0].mxu0
        %v5598 = vpop.f32.mrb[0].mxu0
        %v5599 = vadd.f32 %v5438, %v5598
        %v5600 = vpop.f32.mrb[0].mxu0
        %5601 = vmatprep.mubr.bf16.mxu0 %v4375
        %5602 = vmatmul.mubr.bf16.gmra.mrb[0].mxu0 %v4374
        %v5603 = vpop.f32.mrb[0].mxu0
        %v5604 = vadd.f32 %v5443, %v5603
        %v5605 = vpop.f32.mrb[0].mxu0
        %v5606 = vpop.f32.mrb[0].mxu0
        %v5607 = vadd.f32 %v5446, %v5606
        %v5608 = vpop.f32.mrb[0].mxu0
        %5609 = vmatprep.mubr.bf16.mxu0 %v4384
        %5610 = vmatmul.mubr.bf16.gmra.mrb[0].mxu0 %v4383
        %v5611 = vpop.f32.mrb[0].mxu0
        %v5612 = vadd.f32 %v5451, %v5611
        %v5613 = vpop.f32.mrb[0].mxu0
        %v5614 = vpop.f32.mrb[0].mxu0
        %v5615 = vadd.f32 %v5454, %v5614
        %v5616 = vpop.f32.mrb[0].mxu0
        %5617 = vmatprep.mubr.bf16.mxu0 %v4393
        %5618 = vmatmul.mubr.bf16.gmra.mrb[0].mxu0 %v4392
        %v5619 = vpop.f32.mrb[0].mxu0
        %v5620 = vadd.f32 %v5459, %v5619
        %v5621 = vpop.f32.mrb[0].mxu0
        %v5622 = vpop.f32.mrb[0].mxu0
        %v5623 = vadd.f32 %v5462, %v5622
        %v5624 = vpop.f32.mrb[0].mxu0
        %5625 = vmatprep.mubr.bf16.mxu0 %v4402
        %5626 = vmatmul.mubr.bf16.gmra.mrb[0].mxu0 %v4401
        %v5627 = vpop.f32.mrb[0].mxu0
        %v5628 = vadd.f32 %v5467, %v5627
        %v5629 = vpop.f32.mrb[0].mxu0
        %v5630 = vpop.f32.mrb[0].mxu0
        %v5631 = vadd.f32 %v5470, %v5630
        %v5632 = vpop.f32.mrb[0].mxu0
        %5633 = vmatprep.mubr.bf16.mxu0 %v4411
        %5634 = vmatmul.mubr.bf16.gmra.mrb[0].mxu0 %v4410
        %v5635 = vpop.f32.mrb[0].mxu0
        %v5636 = vadd.f32 %v5475, %v5635
        %v5637 = vpop.f32.mrb[0].mxu0
        %v5638 = vpop.f32.mrb[0].mxu0
        %v5639 = vadd.f32 %v5478, %v5638
        %v5640 = vpop.f32.mrb[0].mxu0
        %5641 = vmatprep.mubr.bf16.mxu0 %v4420
        %5642 = vmatmul.mubr.bf16.gmra.mrb[0].mxu0 %v4419
        %v5643 = vpop.f32.mrb[0].mxu0
        %v5644 = vadd.f32 %v5483, %v5643
        %v5645 = vpop.f32.mrb[0].mxu0
        %v5646 = vpop.f32.mrb[0].mxu0
        %v5647 = vadd.f32 %v5486, %v5646
        %v5648 = vpop.f32.mrb[0].mxu0
        %5649 = vmatprep.mubr.bf16.mxu0 %v4429
        %5650 = vmatmul.mubr.bf16.gmra.mrb[0].mxu0 %v4428
        %v5651 = vpop.f32.mrb[0].mxu0
        %v5652 = vadd.f32 %v5491, %v5651
        %v5653 = vpop.f32.mrb[0].mxu0
        %v5654 = vpop.f32.mrb[0].mxu0
        %v5655 = vadd.f32 %v5494, %v5654
        %v5656 = vpop.f32.mrb[0].mxu0
        %5657 = vmatprep.mubr.bf16.mxu0 %v4438
        %5658 = vmatmul.mubr.bf16.gmra.mrb[0].mxu0 %v4437
        %v5659 = vpop.f32.mrb[0].mxu0
        %v5660 = vadd.f32 %v5499, %v5659
        %v5661 = vpop.f32.mrb[0].mxu0
        %v5662 = vpop.f32.mrb[0].mxu0
        %v5663 = vadd.f32 %v5502, %v5662
        %v5664 = vpop.f32.mrb[0].mxu0
        %5665 = vmatprep.mubr.bf16.mxu0 %v4447
        %5666 = vmatmul.mubr.bf16.gmra.mrb[0].mxu0 %v4446
        %v5667 = vpop.f32.mrb[0].mxu0
        %v5668 = vadd.f32 %v5507, %v5667
        %v5669 = vpop.f32.mrb[0].mxu0
        %v5670 = vpop.f32.mrb[0].mxu0
        %v5671 = vadd.f32 %v5510, %v5670
        %v5672 = vpop.f32.mrb[0].mxu0
        %5673 = vmatprep.mubr.bf16.mxu0 %v4456
        %5674 = vmatmul.mubr.bf16.gmra.mrb[0].mxu0 %v4455
        %v5675 = vpop.f32.mrb[0].mxu0
        %v5676 = vadd.f32 %v5515, %v5675
        %v5677 = vpop.f32.mrb[0].mxu0
        %v5678 = vpop.f32.mrb[0].mxu0
        %v5679 = vadd.f32 %v5518, %v5678
        %v5680 = vpop.f32.mrb[0].mxu0
        %5681 = vmatprep.mubr.bf16.mxu0 %v4465
        %5682 = vmatmul.mubr.bf16.gmra.mrb[0].mxu0 %v4464
        %v5683 = vpop.f32.mrb[0].mxu0
        %v5684 = vadd.f32 %v5523, %v5683
        %v5685 = vpop.f32.mrb[0].mxu0
        %v5686 = vpop.f32.mrb[0].mxu0
        %v5687 = vadd.f32 %v5526, %v5686
        %v5688 = vpop.f32.mrb[0].mxu0
        %5689 = vmatprep.mubr.bf16.mxu0 %v4474
        %5690 = vmatmul.mubr.bf16.gmra.mrb[0].mxu0 %v4473
        %v5691 = vpop.f32.mrb[0].mxu0
        %v5692 = vadd.f32 %v5531, %v5691
        %v5693 = vpop.f32.mrb[0].mxu0
        %v5694 = vpop.f32.mrb[0].mxu0
        %v5695 = vadd.f32 %v5534, %v5694
        %v5696 = vpop.f32.mrb[0].mxu0
        %5697 = vmatprep.mubr.bf16.mxu0 %v4483
        %5698 = vmatmul.mubr.bf16.gmra.mrb[0].mxu0 %v4482
        %v5699 = vpop.f32.mrb[0].mxu0
        %v5700 = vadd.f32 %v5539, %v5699
        %v5701 = vpop.f32.mrb[0].mxu0
        %v5702 = vpop.f32.mrb[0].mxu0
        %v5703 = vadd.f32 %v5542, %v5702
        %v5704 = vpop.f32.mrb[0].mxu0
        %5705 = vmatprep.mubr.bf16.mxu0 %v4492
        %5706 = vmatmul.mubr.bf16.gmra.mrb[0].mxu0 %v4491
        %v5707 = vpop.f32.mrb[0].mxu0
        %v5708 = vadd.f32 %v5547, %v5707
        %v5709 = vpop.f32.mrb[0].mxu0
        %v5710 = vpop.f32.mrb[0].mxu0
        %v5711 = vadd.f32 %v5550, %v5710
        %v5712 = vpop.f32.mrb[0].mxu0
        %5713 = vdwg.mxu0
        %5714 = vmatprep.subr.bf16.mxu0 0
        %5715 = vmatpush1.bf16.msra.mxu0 %v4990
        %5716 = vmatprep.subr.bf16.mxu0 0
        %5717 = vmatpush1.bf16.msra.mxu0 %v4991
        %5718 = vmatprep.subr.bf16.mxu0 0
        %5719 = vmatpush1.bf16.msra.mxu0 %v4992
        %5720 = vmatprep.subr.bf16.mxu0 0
        %5721 = vmatpush1.bf16.msra.mxu0 %v4993
        %5722 = vmatprep.subr.bf16.mxu0 0
        %5723 = vmatpush1.bf16.msra.mxu0 %v4994
        %5724 = vmatprep.subr.bf16.mxu0 0
        %5725 = vmatpush1.bf16.msra.mxu0 %v4995
        %5726 = vmatprep.subr.bf16.mxu0 0
        %5727 = vmatpush1.bf16.msra.mxu0 %v4996
        %5728 = vmatprep.subr.bf16.mxu0 0
        %5729 = vmatpush1.bf16.msra.mxu0 %v4997
        %5730 = vmatprep.subr.bf16.mxu0 0
        %5731 = vmatpush1.bf16.msra.mxu0 0
        %5732 = vmatprep.subr.bf16.mxu0 0
        %5733 = vmatpush1.bf16.msra.mxu0 0
        %5734 = vmatprep.subr.bf16.mxu0 0
        %5735 = vmatpush1.bf16.msra.mxu0 0
        %5736 = vmatprep.subr.bf16.mxu0 0
        %5737 = vmatpush1.bf16.msra.mxu0 0
        %5738 = vmatprep.subr.bf16.mxu0 0
        %5739 = vmatpush1.bf16.msra.mxu0 0
        %5740 = vmatprep.subr.bf16.mxu0 0
        %5741 = vmatpush1.bf16.msra.mxu0 0
        %5742 = vmatprep.subr.bf16.mxu0 0
        %5743 = vmatpush1.bf16.msra.mxu0 0
        %5744 = vmatprep.subr.bf16.mxu0 0
        %5745 = vmatpush1.bf16.msra.mxu0 0
        %5746 = vmatprep.mubr.bf16.mxu0 0
        %5747 = vmatmul.mubr.bf16.gmra.mrb[0].mxu0 %v4358
        %v5748 = vpop.f32.mrb[0].mxu0
        %v5749 = vadd.f32 %v5588, %v5748
        %v5750 = vpop.f32.mrb[0].mxu0
        %v5751 = vpop.f32.mrb[0].mxu0
        %v5752 = vadd.f32 %v5591, %v5751
        %v5753 = vpop.f32.mrb[0].mxu0
        %5754 = vmatprep.mubr.bf16.mxu0 0
        %5755 = vmatmul.mubr.bf16.gmra.mrb[0].mxu0 %v4367
        %v5756 = vpop.f32.mrb[0].mxu0
        %v5757 = vadd.f32 %v5596, %v5756
        %v5758 = vpop.f32.mrb[0].mxu0
        %v5759 = vpop.f32.mrb[0].mxu0
        %v5760 = vadd.f32 %v5599, %v5759
        %v5761 = vpop.f32.mrb[0].mxu0
        %5762 = vmatprep.mubr.bf16.mxu0 0
        %5763 = vmatmul.mubr.bf16.gmra.mrb[0].mxu0 %v4376
        %v5764 = vpop.f32.mrb[0].mxu0
        %v5765 = vadd.f32 %v5604, %v5764
        %v5766 = vpop.f32.mrb[0].mxu0
        %v5767 = vpop.f32.mrb[0].mxu0
        %v5768 = vadd.f32 %v5607, %v5767
        %v5769 = vpop.f32.mrb[0].mxu0
        %5770 = vmatprep.mubr.bf16.mxu0 0
        %5771 = vmatmul.mubr.bf16.gmra.mrb[0].mxu0 %v4385
        %v5772 = vpop.f32.mrb[0].mxu0
        %v5773 = vadd.f32 %v5612, %v5772
        %v5774 = vpop.f32.mrb[0].mxu0
        %v5775 = vpop.f32.mrb[0].mxu0
        %v5776 = vadd.f32 %v5615, %v5775
        %v5777 = vpop.f32.mrb[0].mxu0
        %5778 = vmatprep.mubr.bf16.mxu0 0
        %5779 = vmatmul.mubr.bf16.gmra.mrb[0].mxu0 %v4394
        %v5780 = vpop.f32.mrb[0].mxu0
        %v5781 = vadd.f32 %v5620, %v5780
        %v5782 = vpop.f32.mrb[0].mxu0
        %v5783 = vpop.f32.mrb[0].mxu0
        %v5784 = vadd.f32 %v5623, %v5783
        %v5785 = vpop.f32.mrb[0].mxu0
        %5786 = vmatprep.mubr.bf16.mxu0 0
        %5787 = vmatmul.mubr.bf16.gmra.mrb[0].mxu0 %v4403
        %v5788 = vpop.f32.mrb[0].mxu0
        %v5789 = vadd.f32 %v5628, %v5788
        %v5790 = vpop.f32.mrb[0].mxu0
        %v5791 = vpop.f32.mrb[0].mxu0
        %v5792 = vadd.f32 %v5631, %v5791
        %v5793 = vpop.f32.mrb[0].mxu0
        %5794 = vmatprep.mubr.bf16.mxu0 0
        %5795 = vmatmul.mubr.bf16.gmra.mrb[0].mxu0 %v4412
        %v5796 = vpop.f32.mrb[0].mxu0
        %v5797 = vadd.f32 %v5636, %v5796
        %v5798 = vpop.f32.mrb[0].mxu0
        %v5799 = vpop.f32.mrb[0].mxu0
        %v5800 = vadd.f32 %v5639, %v5799
        %v5801 = vpop.f32.mrb[0].mxu0
        %5802 = vmatprep.mubr.bf16.mxu0 0
        %5803 = vmatmul.mubr.bf16.gmra.mrb[0].mxu0 %v4421
        %v5804 = vpop.f32.mrb[0].mxu0
        %v5805 = vadd.f32 %v5644, %v5804
        %v5806 = vpop.f32.mrb[0].mxu0
        %v5807 = vpop.f32.mrb[0].mxu0
        %v5808 = vadd.f32 %v5647, %v5807
        %v5809 = vpop.f32.mrb[0].mxu0
        %5810 = vmatprep.mubr.bf16.mxu0 0
        %5811 = vmatmul.mubr.bf16.gmra.mrb[0].mxu0 %v4430
        %v5812 = vpop.f32.mrb[0].mxu0
        %v5813 = vadd.f32 %v5652, %v5812
        %v5814 = vpop.f32.mrb[0].mxu0
        %v5815 = vpop.f32.mrb[0].mxu0
        %v5816 = vadd.f32 %v5655, %v5815
        %v5817 = vpop.f32.mrb[0].mxu0
        %5818 = vmatprep.mubr.bf16.mxu0 0
        %5819 = vmatmul.mubr.bf16.gmra.mrb[0].mxu0 %v4439
        %v5820 = vpop.f32.mrb[0].mxu0
        %v5821 = vadd.f32 %v5660, %v5820
        %v5822 = vpop.f32.mrb[0].mxu0
        %v5823 = vpop.f32.mrb[0].mxu0
        %v5824 = vadd.f32 %v5663, %v5823
        %v5825 = vpop.f32.mrb[0].mxu0
        %5826 = vmatprep.mubr.bf16.mxu0 0
        %5827 = vmatmul.mubr.bf16.gmra.mrb[0].mxu0 %v4448
        %v5828 = vpop.f32.mrb[0].mxu0
        %v5829 = vadd.f32 %v5668, %v5828
        %v5830 = vpop.f32.mrb[0].mxu0
        %v5831 = vpop.f32.mrb[0].mxu0
        %v5832 = vadd.f32 %v5671, %v5831
        %v5833 = vpop.f32.mrb[0].mxu0
        %5834 = vmatprep.mubr.bf16.mxu0 0
        %5835 = vmatmul.mubr.bf16.gmra.mrb[0].mxu0 %v4457
        %v5836 = vpop.f32.mrb[0].mxu0
        %v5837 = vadd.f32 %v5676, %v5836
        %v5838 = vpop.f32.mrb[0].mxu0
        %v5839 = vpop.f32.mrb[0].mxu0
        %v5840 = vadd.f32 %v5679, %v5839
        %v5841 = vpop.f32.mrb[0].mxu0
        %5842 = vmatprep.mubr.bf16.mxu0 0
        %5843 = vmatmul.mubr.bf16.gmra.mrb[0].mxu0 %v4466
        %v5844 = vpop.f32.mrb[0].mxu0
        %v5845 = vadd.f32 %v5684, %v5844
        %v5846 = vpop.f32.mrb[0].mxu0
        %v5847 = vpop.f32.mrb[0].mxu0
        %v5848 = vadd.f32 %v5687, %v5847
        %v5849 = vpop.f32.mrb[0].mxu0
        %5850 = vmatprep.mubr.bf16.mxu0 0
        %5851 = vmatmul.mubr.bf16.gmra.mrb[0].mxu0 %v4475
        %v5852 = vpop.f32.mrb[0].mxu0
        %v5853 = vadd.f32 %v5692, %v5852
        %v5854 = vpop.f32.mrb[0].mxu0
        %v5855 = vpop.f32.mrb[0].mxu0
        %v5856 = vadd.f32 %v5695, %v5855
        %v5857 = vpop.f32.mrb[0].mxu0
        %5858 = vmatprep.mubr.bf16.mxu0 0
        %5859 = vmatmul.mubr.bf16.gmra.mrb[0].mxu0 %v4484
        %v5860 = vpop.f32.mrb[0].mxu0
        %v5861 = vadd.f32 %v5700, %v5860
        %v5862 = vpop.f32.mrb[0].mxu0
        %v5863 = vpop.f32.mrb[0].mxu0
        %v5864 = vadd.f32 %v5703, %v5863
        %v5865 = vpop.f32.mrb[0].mxu0
        %5866 = vmatprep.mubr.bf16.mxu0 0
        %5867 = vmatmul.mubr.bf16.gmra.mrb[0].mxu0 %v4493
        %v5868 = vpop.f32.mrb[0].mxu0
        %v5869 = vadd.f32 %v5708, %v5868
        %v5870 = vpop.f32.mrb[0].mxu0
        %v5871 = vpop.f32.mrb[0].mxu0
        %v5872 = vadd.f32 %v5711, %v5871
        %v5873 = vpop.f32.mrb[0].mxu0
        %5874 = vdwg.mxu0
        %v5875 = vmax.f32 %v5749, 0.0
        %v5876 = vmax.f32 %v5752, 0.0
        %v5877 = vmax.f32 %v5757, 0.0
        %v5878 = vmax.f32 %v5760, 0.0
        %v5879 = vmax.f32 %v5765, 0.0
        %v5880 = vmax.f32 %v5768, 0.0
        %v5881 = vmax.f32 %v5773, 0.0
        %v5882 = vmax.f32 %v5776, 0.0
        %v5883 = vmax.f32 %v5781, 0.0
        %v5884 = vmax.f32 %v5784, 0.0
        %v5885 = vmax.f32 %v5789, 0.0
        %v5886 = vmax.f32 %v5792, 0.0
        %v5887 = vmax.f32 %v5797, 0.0
        %v5888 = vmax.f32 %v5800, 0.0
        %v5889 = vmax.f32 %v5805, 0.0
        %v5890 = vmax.f32 %v5808, 0.0
        %v5891 = vmax.f32 %v5813, 0.0
        %v5892 = vmax.f32 %v5816, 0.0
        %v5893 = vmax.f32 %v5821, 0.0
        %v5894 = vmax.f32 %v5824, 0.0
        %v5895 = vmax.f32 %v5829, 0.0
        %v5896 = vmax.f32 %v5832, 0.0
        %v5897 = vmax.f32 %v5837, 0.0
        %v5898 = vmax.f32 %v5840, 0.0
        %v5899 = vmax.f32 %v5845, 0.0
        %v5900 = vmax.f32 %v5848, 0.0
        %v5901 = vmax.f32 %v5853, 0.0
        %v5902 = vmax.f32 %v5856, 0.0
        %v5903 = vmax.f32 %v5861, 0.0
        %v5904 = vmax.f32 %v5864, 0.0
        %v5905 = vmax.f32 %v5869, 0.0
        %v5906 = vmax.f32 %v5872, 0.0
        %v5907 = vpack.c.bf16 %v5876, %v5875
        %v5908 = vpack.c.bf16 %v5878, %v5877
        %v5909 = vpack.c.bf16 %v5880, %v5879
        %v5910 = vpack.c.bf16 %v5882, %v5881
        %v5911 = vpack.c.bf16 %v5884, %v5883
        %v5912 = vpack.c.bf16 %v5886, %v5885
        %v5913 = vpack.c.bf16 %v5888, %v5887
        %v5914 = vpack.c.bf16 %v5890, %v5889
        %v5915 = vpack.c.bf16 %v5892, %v5891
        %v5916 = vpack.c.bf16 %v5894, %v5893
        %v5917 = vpack.c.bf16 %v5896, %v5895
        %v5918 = vpack.c.bf16 %v5898, %v5897
        %v5919 = vpack.c.bf16 %v5900, %v5899
        %v5920 = vpack.c.bf16 %v5902, %v5901
        %v5921 = vpack.c.bf16 %v5904, %v5903
        %v5922 = vpack.c.bf16 %v5906, %v5905
        %v5923 = vld [vmem:[#allocation10] sm:$0xf]
        %v5924 = vld [vmem:[#allocation10 + $0x4] sm:$0xf]
        %v5925 = vld [vmem:[#allocation10 + $0x8] sm:$0xf]
        %v5926 = vld [vmem:[#allocation10 + $0xc] sm:$0xf]
        %v5927 = vld [vmem:[#allocation10 + $0x10] sm:$0xf]
        %v5928 = vld [vmem:[#allocation10 + $0x14] sm:$0xf]
        %v5929 = vld [vmem:[#allocation10 + $0x18] sm:$0xf]
        %v5930 = vld [vmem:[#allocation10 + $0x1c] sm:$0xf]
        %v5931 = vld [vmem:[#allocation10 + $0x20] sm:$0xf]
        %v5932 = vld [vmem:[#allocation10 + $0x24] sm:$0xf]
        %v5933 = vld [vmem:[#allocation10 + $0x28] sm:$0xf]
        %v5934 = vld [vmem:[#allocation10 + $0x2c] sm:$0xf]
        %v5935 = vld [vmem:[#allocation10 + $0x30] sm:$0xf]
        %v5936 = vld [vmem:[#allocation10 + $0x34] sm:$0xf]
        %v5937 = vld [vmem:[#allocation10 + $0x38] sm:$0xf]
        %v5938 = vld [vmem:[#allocation10 + $0x3c] sm:$0xf]
        %v5939 = vunpack.c.l.bf16 %v261
        %v5940 = vunpack.c.l.bf16 %v262
        %v5941 = vunpack.c.l.bf16 %v263
        %v5942 = vunpack.c.l.bf16 %v264
        %v5943 = vunpack.c.l.bf16 %v265
        %v5944 = vunpack.c.l.bf16 %v266
        %v5945 = vunpack.c.l.bf16 %v267
        %v5946 = vunpack.c.l.bf16 %v268
        %v5947 = vunpack.c.l.bf16 %v269
        %v5948 = vunpack.c.l.bf16 %v270
        %v5949 = vunpack.c.l.bf16 %v271
        %v5950 = vunpack.c.l.bf16 %v272
        %v5951 = vunpack.c.l.bf16 %v273
        %v5952 = vunpack.c.l.bf16 %v274
        %v5953 = vunpack.c.l.bf16 %v275
        %v5954 = vunpack.c.l.bf16 %v276
        %v5955 = vunpack.c.l.bf16 %v277
        %v5956 = vunpack.c.l.bf16 %v278
        %v5957 = vunpack.c.l.bf16 %v279
        %v5958 = vunpack.c.l.bf16 %v280
        %v5959 = vunpack.c.l.bf16 %v281
        %v5960 = vunpack.c.l.bf16 %v282
        %v5961 = vunpack.c.l.bf16 %v283
        %v5962 = vunpack.c.l.bf16 %v284
        %v5963 = vunpack.c.l.bf16 %v285
        %v5964 = vunpack.c.l.bf16 %v286
        %v5965 = vunpack.c.l.bf16 %v287
        %v5966 = vunpack.c.l.bf16 %v288
        %v5967 = vunpack.c.l.bf16 %v289
        %v5968 = vunpack.c.l.bf16 %v290
        %v5969 = vunpack.c.l.bf16 %v291
        %v5970 = vunpack.c.l.bf16 %v292
        %v5987 = vunpack.c.l.b16 %v5923
        %v5988 = vunpack.c.l.b16 %v5924
        %v5989 = vunpack.c.l.b16 %v5925
        %v5990 = vunpack.c.l.b16 %v5926
        %v5991 = vunpack.c.l.b16 %v5927
        %v5992 = vunpack.c.l.b16 %v5928
        %v5993 = vunpack.c.l.b16 %v5929
        %v5994 = vunpack.c.l.b16 %v5930
        %v5995 = vunpack.c.l.b16 %v5931
        %v5996 = vunpack.c.l.b16 %v5932
        %v5997 = vunpack.c.l.b16 %v5933
        %v5998 = vunpack.c.l.b16 %v5934
        %v5999 = vunpack.c.l.b16 %v5935
        %v6000 = vunpack.c.l.b16 %v5936
        %v6001 = vunpack.c.l.b16 %v5937
        %v6002 = vunpack.c.l.b16 %v5938
        %v6003 = vpack.c.b16 %v5988, %v5987
        %v6004 = vpack.c.b16 %v5990, %v5989
        %v6005 = vpack.c.b16 %v5992, %v5991
        %v6006 = vpack.c.b16 %v5994, %v5993
        %v6007 = vpack.c.b16 %v5996, %v5995
        %v6008 = vpack.c.b16 %v5998, %v5997
        %v6009 = vpack.c.b16 %v6000, %v5999
        %v6010 = vpack.c.b16 %v6002, %v6001
        %6019 = vmatprep.subr.bf16.mxu0 0
        %6020 = vmatpush1.bf16.msra.mxu0 %v6003
        %6021 = vmatprep.subr.bf16.mxu0 0
        %6022 = vmatpush1.bf16.msra.mxu0 %v6004
        %6023 = vmatprep.subr.bf16.mxu0 0
        %6024 = vmatpush1.bf16.msra.mxu0 %v6005
        %6025 = vmatprep.subr.bf16.mxu0 0
        %6026 = vmatpush1.bf16.msra.mxu0 %v6006
        %6027 = vmatprep.subr.bf16.mxu0 0
        %6028 = vmatpush1.bf16.msra.mxu0 %v6007
        %6029 = vmatprep.subr.bf16.mxu0 0
        %6030 = vmatpush1.bf16.msra.mxu0 %v6008
        %6031 = vmatprep.subr.bf16.mxu0 0
        %6032 = vmatpush1.bf16.msra.mxu0 %v6009
        %6033 = vmatprep.subr.bf16.mxu0 0
        %6034 = vmatpush1.bf16.msra.mxu0 %v6010
        %6035 = vmatprep.subr.bf16.mxu0 0
        %6036 = vmatpush1.bf16.msra.mxu0 0
        %6037 = vmatprep.subr.bf16.mxu0 0
        %6038 = vmatpush1.bf16.msra.mxu0 0
        %6039 = vmatprep.subr.bf16.mxu0 0
        %6040 = vmatpush1.bf16.msra.mxu0 0
        %6041 = vmatprep.subr.bf16.mxu0 0
        %6042 = vmatpush1.bf16.msra.mxu0 0
        %6043 = vmatprep.subr.bf16.mxu0 0
        %6044 = vmatpush1.bf16.msra.mxu0 0
        %6045 = vmatprep.subr.bf16.mxu0 0
        %6046 = vmatpush1.bf16.msra.mxu0 0
        %6047 = vmatprep.subr.bf16.mxu0 0
        %6048 = vmatpush1.bf16.msra.mxu0 0
        %6049 = vmatprep.subr.bf16.mxu0 0
        %6050 = vmatpush1.bf16.msra.mxu0 0
        %6051 = vmatprep.mubr.bf16.mxu0 0
        %6052 = vmatmul.mubr.bf16.gmra.mrb[0].mxu0 %v5907
        %v6053 = vpop.f32.mrb[0].mxu0
        %v6054 = vadd.f32 %v5939, %v6053
        %v6055 = vpop.f32.mrb[0].mxu0
        %v6056 = vpop.f32.mrb[0].mxu0
        %v6057 = vadd.f32 %v5940, %v6056
        %v6058 = vpop.f32.mrb[0].mxu0
        %6059 = vmatprep.mubr.bf16.mxu0 0
        %6060 = vmatmul.mubr.bf16.gmra.mrb[0].mxu0 %v5908
        %v6061 = vpop.f32.mrb[0].mxu0
        %v6062 = vadd.f32 %v5941, %v6061
        %v6063 = vpop.f32.mrb[0].mxu0
        %v6064 = vpop.f32.mrb[0].mxu0
        %v6065 = vadd.f32 %v5942, %v6064
        %v6066 = vpop.f32.mrb[0].mxu0
        %6067 = vmatprep.mubr.bf16.mxu0 0
        %6068 = vmatmul.mubr.bf16.gmra.mrb[0].mxu0 %v5909
        %v6069 = vpop.f32.mrb[0].mxu0
        %v6070 = vadd.f32 %v5943, %v6069
        %v6071 = vpop.f32.mrb[0].mxu0
        %v6072 = vpop.f32.mrb[0].mxu0
        %v6073 = vadd.f32 %v5944, %v6072
        %v6074 = vpop.f32.mrb[0].mxu0
        %6075 = vmatprep.mubr.bf16.mxu0 0
        %6076 = vmatmul.mubr.bf16.gmra.mrb[0].mxu0 %v5910
        %v6077 = vpop.f32.mrb[0].mxu0
        %v6078 = vadd.f32 %v5945, %v6077
        %v6079 = vpop.f32.mrb[0].mxu0
        %v6080 = vpop.f32.mrb[0].mxu0
        %v6081 = vadd.f32 %v5946, %v6080
        %v6082 = vpop.f32.mrb[0].mxu0
        %6083 = vmatprep.mubr.bf16.mxu0 0
        %6084 = vmatmul.mubr.bf16.gmra.mrb[0].mxu0 %v5911
        %v6085 = vpop.f32.mrb[0].mxu0
        %v6086 = vadd.f32 %v5947, %v6085
        %v6087 = vpop.f32.mrb[0].mxu0
        %v6088 = vpop.f32.mrb[0].mxu0
        %v6089 = vadd.f32 %v5948, %v6088
        %v6090 = vpop.f32.mrb[0].mxu0
        %6091 = vmatprep.mubr.bf16.mxu0 0
        %6092 = vmatmul.mubr.bf16.gmra.mrb[0].mxu0 %v5912
        %v6093 = vpop.f32.mrb[0].mxu0
        %v6094 = vadd.f32 %v5949, %v6093
        %v6095 = vpop.f32.mrb[0].mxu0
        %v6096 = vpop.f32.mrb[0].mxu0
        %v6097 = vadd.f32 %v5950, %v6096
        %v6098 = vpop.f32.mrb[0].mxu0
        %6099 = vmatprep.mubr.bf16.mxu0 0
        %6100 = vmatmul.mubr.bf16.gmra.mrb[0].mxu0 %v5913
        %v6101 = vpop.f32.mrb[0].mxu0
        %v6102 = vadd.f32 %v5951, %v6101
        %v6103 = vpop.f32.mrb[0].mxu0
        %v6104 = vpop.f32.mrb[0].mxu0
        %v6105 = vadd.f32 %v5952, %v6104
        %v6106 = vpop.f32.mrb[0].mxu0
        %6107 = vmatprep.mubr.bf16.mxu0 0
        %6108 = vmatmul.mubr.bf16.gmra.mrb[0].mxu0 %v5914
        %v6109 = vpop.f32.mrb[0].mxu0
        %v6110 = vadd.f32 %v5953, %v6109
        %v6111 = vpop.f32.mrb[0].mxu0
        %v6112 = vpop.f32.mrb[0].mxu0
        %v6113 = vadd.f32 %v5954, %v6112
        %v6114 = vpop.f32.mrb[0].mxu0
        %6115 = vmatprep.mubr.bf16.mxu0 0
        %6116 = vmatmul.mubr.bf16.gmra.mrb[0].mxu0 %v5915
        %v6117 = vpop.f32.mrb[0].mxu0
        %v6118 = vadd.f32 %v5955, %v6117
        %v6119 = vpop.f32.mrb[0].mxu0
        %v6120 = vpop.f32.mrb[0].mxu0
        %v6121 = vadd.f32 %v5956, %v6120
        %v6122 = vpop.f32.mrb[0].mxu0
        %6123 = vmatprep.mubr.bf16.mxu0 0
        %6124 = vmatmul.mubr.bf16.gmra.mrb[0].mxu0 %v5916
        %v6125 = vpop.f32.mrb[0].mxu0
        %v6126 = vadd.f32 %v5957, %v6125
        %v6127 = vpop.f32.mrb[0].mxu0
        %v6128 = vpop.f32.mrb[0].mxu0
        %v6129 = vadd.f32 %v5958, %v6128
        %v6130 = vpop.f32.mrb[0].mxu0
        %6131 = vmatprep.mubr.bf16.mxu0 0
        %6132 = vmatmul.mubr.bf16.gmra.mrb[0].mxu0 %v5917
        %v6133 = vpop.f32.mrb[0].mxu0
        %v6134 = vadd.f32 %v5959, %v6133
        %v6135 = vpop.f32.mrb[0].mxu0
        %v6136 = vpop.f32.mrb[0].mxu0
        %v6137 = vadd.f32 %v5960, %v6136
        %v6138 = vpop.f32.mrb[0].mxu0
        %6139 = vmatprep.mubr.bf16.mxu0 0
        %6140 = vmatmul.mubr.bf16.gmra.mrb[0].mxu0 %v5918
        %v6141 = vpop.f32.mrb[0].mxu0
        %v6142 = vadd.f32 %v5961, %v6141
        %v6143 = vpop.f32.mrb[0].mxu0
        %v6144 = vpop.f32.mrb[0].mxu0
        %v6145 = vadd.f32 %v5962, %v6144
        %v6146 = vpop.f32.mrb[0].mxu0
        %6147 = vmatprep.mubr.bf16.mxu0 0
        %6148 = vmatmul.mubr.bf16.gmra.mrb[0].mxu0 %v5919
        %v6149 = vpop.f32.mrb[0].mxu0
        %v6150 = vadd.f32 %v5963, %v6149
        %v6151 = vpop.f32.mrb[0].mxu0
        %v6152 = vpop.f32.mrb[0].mxu0
        %v6153 = vadd.f32 %v5964, %v6152
        %v6154 = vpop.f32.mrb[0].mxu0
        %6155 = vmatprep.mubr.bf16.mxu0 0
        %6156 = vmatmul.mubr.bf16.gmra.mrb[0].mxu0 %v5920
        %v6157 = vpop.f32.mrb[0].mxu0
        %v6158 = vadd.f32 %v5965, %v6157
        %v6159 = vpop.f32.mrb[0].mxu0
        %v6160 = vpop.f32.mrb[0].mxu0
        %v6161 = vadd.f32 %v5966, %v6160
        %v6162 = vpop.f32.mrb[0].mxu0
        %6163 = vmatprep.mubr.bf16.mxu0 0
        %6164 = vmatmul.mubr.bf16.gmra.mrb[0].mxu0 %v5921
        %v6165 = vpop.f32.mrb[0].mxu0
        %v6166 = vadd.f32 %v5967, %v6165
        %v6167 = vpop.f32.mrb[0].mxu0
        %v6168 = vpop.f32.mrb[0].mxu0
        %v6169 = vadd.f32 %v5968, %v6168
        %v6170 = vpop.f32.mrb[0].mxu0
        %6171 = vmatprep.mubr.bf16.mxu0 0
        %6172 = vmatmul.mubr.bf16.gmra.mrb[0].mxu0 %v5922
        %v6173 = vpop.f32.mrb[0].mxu0
        %v6174 = vadd.f32 %v5969, %v6173
        %v6175 = vpop.f32.mrb[0].mxu0
        %v6176 = vpop.f32.mrb[0].mxu0
        %v6177 = vadd.f32 %v5970, %v6176
        %v6178 = vpop.f32.mrb[0].mxu0
        %6179 = vdwg.mxu0
        %v6180 = vmax.f32 %v6054, 0.0
        %v6181 = vmax.f32 %v6057, 0.0
        %v6182 = vmax.f32 %v6062, 0.0
        %v6183 = vmax.f32 %v6065, 0.0
        %v6184 = vmax.f32 %v6070, 0.0
        %v6185 = vmax.f32 %v6073, 0.0
        %v6186 = vmax.f32 %v6078, 0.0
        %v6187 = vmax.f32 %v6081, 0.0
        %v6188 = vmax.f32 %v6086, 0.0
        %v6189 = vmax.f32 %v6089, 0.0
        %v6190 = vmax.f32 %v6094, 0.0
        %v6191 = vmax.f32 %v6097, 0.0
        %v6192 = vmax.f32 %v6102, 0.0
        %v6193 = vmax.f32 %v6105, 0.0
        %v6194 = vmax.f32 %v6110, 0.0
        %v6195 = vmax.f32 %v6113, 0.0
        %v6196 = vmax.f32 %v6118, 0.0
        %v6197 = vmax.f32 %v6121, 0.0
        %v6198 = vmax.f32 %v6126, 0.0
        %v6199 = vmax.f32 %v6129, 0.0
        %v6200 = vmax.f32 %v6134, 0.0
        %v6201 = vmax.f32 %v6137, 0.0
        %v6202 = vmax.f32 %v6142, 0.0
        %v6203 = vmax.f32 %v6145, 0.0
        %v6204 = vmax.f32 %v6150, 0.0
        %v6205 = vmax.f32 %v6153, 0.0
        %v6206 = vmax.f32 %v6158, 0.0
        %v6207 = vmax.f32 %v6161, 0.0
        %v6208 = vmax.f32 %v6166, 0.0
        %v6209 = vmax.f32 %v6169, 0.0
        %v6210 = vmax.f32 %v6174, 0.0
        %v6211 = vmax.f32 %v6177, 0.0
        %6212 = vst [vmem:[%s259] sm:$0xff] %v6180
        %6213 = vst [vmem:[%s259 + $0x8] sm:$0xff] %v6181
        %6214 = vst [vmem:[%s259 + $0x10] sm:$0xff] %v6182
        %6215 = vst [vmem:[%s259 + $0x18] sm:$0xff] %v6183
        %6216 = vst [vmem:[%s259 + $0x20] sm:$0xff] %v6184
        %6217 = vst [vmem:[%s259 + $0x28] sm:$0xff] %v6185
        %6218 = vst [vmem:[%s259 + $0x30] sm:$0xff] %v6186
        %6219 = vst [vmem:[%s259 + $0x38] sm:$0xff] %v6187
        %6220 = vst [vmem:[%s259 + $0x40] sm:$0xff] %v6188
        %6221 = vst [vmem:[%s259 + $0x48] sm:$0xff] %v6189
        %6222 = vst [vmem:[%s259 + $0x50] sm:$0xff] %v6190
        %6223 = vst [vmem:[%s259 + $0x58] sm:$0xff] %v6191
        %6224 = vst [vmem:[%s259 + $0x60] sm:$0xff] %v6192
        %6225 = vst [vmem:[%s259 + $0x68] sm:$0xff] %v6193
        %6226 = vst [vmem:[%s259 + $0x70] sm:$0xff] %v6194
        %6227 = vst [vmem:[%s259 + $0x78] sm:$0xff] %v6195
        %6228 = vst [vmem:[%s259 + $0x80] sm:$0xff] %v6196
        %6229 = vst [vmem:[%s259 + $0x88] sm:$0xff] %v6197
        %6230 = vst [vmem:[%s259 + $0x90] sm:$0xff] %v6198
        %6231 = vst [vmem:[%s259 + $0x98] sm:$0xff] %v6199
        %6232 = vst [vmem:[%s259 + $0xa0] sm:$0xff] %v6200
        %6233 = vst [vmem:[%s259 + $0xa8] sm:$0xff] %v6201
        %6234 = vst [vmem:[%s259 + $0xb0] sm:$0xff] %v6202
        %6235 = vst [vmem:[%s259 + $0xb8] sm:$0xff] %v6203
        %6236 = vst [vmem:[%s259 + $0xc0] sm:$0xff] %v6204
        %6237 = vst [vmem:[%s259 + $0xc8] sm:$0xff] %v6205
        %6238 = vst [vmem:[%s259 + $0xd0] sm:$0xff] %v6206
        %6239 = vst [vmem:[%s259 + $0xd8] sm:$0xff] %v6207
        %6240 = vst [vmem:[%s259 + $0xe0] sm:$0xff] %v6208
        %6241 = vst [vmem:[%s259 + $0xe8] sm:$0xff] %v6209
        %6242 = vst [vmem:[%s259 + $0xf0] sm:$0xff] %v6210
        %6243 = vst [vmem:[%s259 + $0xf8] sm:$0xff] %v6211
        %s6244 = sand.u32 %s120, 1
        %s6245 = scalar_lea.sflag [#allocation6], %s6244
        %s6246 = sand.u32 %s120, 1
        %s6247 = smul.addr %s6246, 256
        %s6248 = scalar_lea.vmem [#allocation12], %s6247
        // Predicated region
        $region53: #{tpu_custom_call.1} parent=35 // pred_check
          %p6249 = pneg %p130
        $region54: #{tpu_custom_call.1} parent=35 // pred_check_branch
          %6251 = sbr.rel (%p6249) target = $region56
        $region55: #{tpu_custom_call.1} parent=35 // pred_region
          %s6253 = ssub.s32 4096, 4096
          %6254 = vsyncadd %s6245, %s6253
          %s6255 = smul.addr %s23, 32
          %s6256 = smul.addr %s6255, 128
          %s6257 = scalar_lea.hbm %s4, %s6256
          %s6258 = sshll.u32 %s6248, 4
          %s6259 = int_to_ptr.vmem [resolvable:$true] %s6258
          %6264 = dma.vmem_to_hbm [thread:$0]  %s6259, 4096, %s6257, %s6245, 128, 128, 8
        $region56: #{tpu_custom_call.1} parent=35 // pred_fallthru
          _
      $region36: #{tpu_custom_call.1} parent=5 // pred_fallthru
        _
      %p6265 = scmp.le.s32.totalorder 2, %s18
      // Predicated region
      $region57: #{tpu_custom_call.1} parent=5 // pred_check
        %p6266 = pneg %p6265
      $region58: #{tpu_custom_call.1} parent=5 // pred_check_branch
        %6268 = sbr.rel (%p6266) target = $region60
      $region59: #{tpu_custom_call.1} parent=5 // pred_region
        %s6269 = ssub.s32 %s18, 2
        // Predicated region
        $region61: #{tpu_custom_call.1} parent=59 // pred_check
          %p6270 = pneg %p136
        $region62: #{tpu_custom_call.1} parent=59 // pred_check_branch
          %6272 = sbr.rel (%p6270) target = $region64
        $region63: #{tpu_custom_call.1} parent=59 // pred_region
          %s6273 = sand.u32 %s121, 1
          %s6274 = scalar_lea.sflag [#allocation6], %s6273
          %s6275 = sand.u32 %s121, 1
          %s6276 = smul.addr %s6275, 256
          %s6277 = scalar_lea.vmem [#allocation12], %s6276
          %6278 = dma.done %s6274, 4096
        $region64: #{tpu_custom_call.1} parent=59 // pred_fallthru
          _
      $region60: #{tpu_custom_call.1} parent=5 // pred_fallthru
        _
    $region6: #{tpu_custom_call.1} parent=1 // loop_footer
      %s22 = sadd.s32 1, %s18
    $region7: #{tpu_custom_call.1} parent=1 // loop_footer_branch
      %17 = sbr.rel target = $region3
    $region8: #{tpu_custom_call.1} parent=1 // loop_exit
      _
    %6279 = vsyncpa [#allocation5], 1
    %s6280 = scalar_lea.sflag [#allocation5], 1
    %6281 = vsyncpa %s6280, 1
    %6282 = vsyncpa [#allocation8], 1
    %6283 = vsyncpa [#allocation11], 1
    %6284 = vsyncpa [#allocation6], 1
    %s6285 = scalar_lea.sflag [#allocation6], 1
    %6286 = vsyncpa %s6285, 1

</llo_original>
